<compile_context>
chip_gen: v7x
topology: tpu7x:2x2x1
jax: 0.10.0
libtpu: 0.0.40
codegen_flags: <defaults>
</compile_context>

<pallas_src>
import jax
import jax.numpy as jnp
from jax.experimental import pallas as pl
from jax.experimental.pallas import tpu as pltpu


def _attention_gate_kernel(x_ref, g_ref, rh_ref, rwt_ref,
                           wth_ref, wph_ref, bph_ref,
                           wps_ref, bps_ref, ww_ref, bw_ref,
                           wy_ref, sig_ref, gup_ref):
    f32 = jnp.float32
    tile_h, hg = rh_ref.shape          # (TILE_H, Hg)
    wg, w = rwt_ref.shape              # (Wg, W)
    cg = gup_ref.shape[0]

    x = x_ref[0]                       # (Cin, TILE_H*W)  bf16
    g = g_ref[0].astype(f32)           # (Cg*Hg, Wg)      f32

    # --- separable bilinear upsample of g (align_corners=True) --------------
    # W axis: single 2-D matmul, lane dim Wg -> W.
    gw = jnp.dot(g, rwt_ref[...], preferred_element_type=f32)     # (Cg*Hg, W)
    gw3 = gw.reshape(cg, hg, w)        # leading-dim split only (layout no-op)
    # H axis + flatten to (Cg, TILE_H*W): short static loop, lane-dense stores.
    rh = rh_ref[...]                   # (TILE_H, Hg) f32
    for t in range(tile_h):
        row_w = rh[t:t + 1, :][..., None]                          # (1, Hg, 1)
        gup_ref[:, t * w:(t + 1) * w] = jnp.sum(gw3 * row_w, axis=1)   # (Cg, W)
    g_up = gup_ref[...]                # (Cg, TILE_H*W) f32

    # --- 1x1 convs as channel matmuls (channels on sublanes, pixels on lanes)
    theta = jnp.dot(wth_ref[...], x, preferred_element_type=f32)          # (Cint, THW)
    phi = jnp.dot(wph_ref[...], g_up, preferred_element_type=f32) + bph_ref[...]
    f = jnp.maximum(theta + phi, 0.0)                                     # ReLU

    # psi: 1-wide output -> VPU multiply + sublane reduce (keeps lanes dense)
    logit = jnp.sum(f * wps_ref[...], axis=0, keepdims=True) + bps_ref[...]
    s = jax.nn.sigmoid(logit)                                             # (1, THW)

    # gate, then output 1x1 conv with BatchNorm folded into the weights
    y = (s * x.astype(f32)).astype(x.dtype)                               # bf16
    wy = jnp.dot(ww_ref[...], y, preferred_element_type=f32) + bw_ref[...]

    wy_ref[0] = wy
    sig_ref[0] = s


def _interp_matrix(s_out, s_in):
    """Bilinear align_corners=True 1-D interpolation matrix (s_out, s_in)."""
    if s_in == 1:
        return jnp.ones((s_out, 1), jnp.float32)
    src = jnp.arange(s_out, dtype=jnp.float32) * (s_in - 1) / (s_out - 1)
    i0 = jnp.clip(jnp.floor(src).astype(jnp.int32), 0, s_in - 1)
    i1 = jnp.clip(i0 + 1, 0, s_in - 1)
    w1 = src - i0.astype(jnp.float32)
    w0 = 1.0 - w1
    cols = jnp.arange(s_in)
    r = (w0[:, None] * (cols[None, :] == i0[:, None]) +
         w1[:, None] * (cols[None, :] == i1[:, None]))
    return r.astype(jnp.float32)


def _pick_tile_h(H, W):
    """Largest H-tile whose flattened spatial extent is lane-friendly and <=2048."""
    divisors = [d for d in range(1, H + 1) if H % d == 0]
    for th in sorted(divisors, reverse=True):
        lanes_ok = (th * W) % 128 == 0 or th == H
        rows_ok = th % 8 == 0 or th == H
        if lanes_ok and rows_ok and th * W <= 2048:
            return th
    return H


def attention_gate(x_nchw, g_nchw, params):
    """x: (B, Cin, H, W), g: (B, Cg, Hg, Wg).  Returns (W_y, sigm_psi_f) in NCHW."""
    B, Cin, H, W = x_nchw.shape
    _, Cg, Hg, Wg = g_nchw.shape
    Cint = params["w_theta"].shape[0]
    HW, HgWg = H * W, Hg * Wg

    tile_h = _pick_tile_h(H, W)
    thw = tile_h * W
    n_t = H // tile_h

    # Metadata-only reshapes (no transposes / HBM round trips); bf16 halves DMA.
    xf = x_nchw.reshape(B, Cin, HW).astype(jnp.bfloat16)
    gf = g_nchw.reshape(B, Cg * Hg, Wg).astype(jnp.bfloat16)

    rh = _interp_matrix(H, Hg)        # (H, Hg)  f32
    rwt = _interp_matrix(W, Wg).T     # (Wg, W)  f32

    wth = params["w_theta"].astype(jnp.bfloat16)   # (Cint, Cin)
    ww = params["w_w_eff"].astype(jnp.bfloat16)    # (Cin, Cin)  BN folded

    def _const(shape):
        n = len(shape)
        return pl.BlockSpec(shape, lambda *_, _n=n: (0,) * _n)

    grid_spec = pltpu.PrefetchScalarGridSpec(
        num_scalar_prefetch=0,
        grid=(B, n_t),
        in_specs=[
            pl.BlockSpec((1, Cin, thw), lambda b, t: (b, 0, t)),       # x tile
            pl.BlockSpec((1, Cg * Hg, Wg), lambda b, t: (b, 0, 0)),    # g (full, per batch)
            pl.BlockSpec((tile_h, Hg), lambda b, t: (t, 0)),           # Rh tile
            _const((Wg, W)),                                           # Rw^T
            _const((Cint, Cin)),                                       # w_theta
            _const((Cint, Cg)),                                        # w_phi
            _const((Cint, 1)),                                         # b_phi
            _const((Cint, 1)),                                         # w_psi
            _const((1, 1)),                                            # b_psi
            _const((Cin, Cin)),                                        # w_w (BN folded)
            _const((Cin, 1)),                                          # b_w (BN folded)
        ],
        out_specs=[
            pl.BlockSpec((1, Cin, thw), lambda b, t: (b, 0, t)),
            pl.BlockSpec((1, 1, thw), lambda b, t: (b, 0, t)),
        ],
        scratch_shapes=[pltpu.VMEM((Cg, thw), jnp.float32)],
    )

    flops = int(2 * B * HW * (Cin * Cint + Cin * Cin + Cint * Cg + Cg * Hg)
                + 2 * B * n_t * Cg * HgWg * W)
    bytes_accessed = int(xf.size * 2 + gf.size * 2 + B * HW * (Cin + 1) * 4
                         + (Cin * Cint + Cin * Cin + Cint * Cg) * 2)

    wy_flat, sig_flat = pl.pallas_call(
        _attention_gate_kernel,
        out_shape=(jax.ShapeDtypeStruct((B, Cin, HW), jnp.float32),
                   jax.ShapeDtypeStruct((B, 1, HW), jnp.float32)),
        grid_spec=grid_spec,
        compiler_params=pltpu.CompilerParams(
            dimension_semantics=("parallel", "parallel"),
            vmem_limit_bytes=32 * 1024 * 1024),
        cost_estimate=pl.CostEstimate(
            flops=flops, transcendentals=int(B * HW),
            bytes_accessed=bytes_accessed),
    )(xf, gf, rh, rwt, wth,
      params["w_phi"], params["b_phi"],
      params["w_psi"], params["b_psi"],
      ww, params["b_eff"])

    W_y = wy_flat.reshape(B, Cin, H, W)
    sigm = sig_flat.reshape(B, 1, H, W)
    return W_y, sigm


def init_params(key, in_channels, gating_channels, inter_channels):
    """Kaiming-style init matching the module's parameter shapes (channels-first)."""
    ks = jax.random.split(key, 8)
    eps = 1e-5

    def kaiming(k, shape, fan_in):
        return jax.random.normal(k, shape, jnp.float32) * (2.0 / fan_in) ** 0.5

    w_theta = kaiming(ks[0], (inter_channels, in_channels), in_channels)
    w_phi = kaiming(ks[1], (inter_channels, gating_channels), gating_channels)
    b_phi = 0.01 * jax.random.normal(ks[2], (inter_channels, 1), jnp.float32)
    w_psi = kaiming(ks[3], (inter_channels, 1), inter_channels)
    b_psi = 0.01 * jax.random.normal(ks[4], (1, 1), jnp.float32)
    w_w = kaiming(ks[5], (in_channels, in_channels), in_channels)
    b_w = 0.01 * jax.random.normal(ks[6], (in_channels, 1), jnp.float32)
    gamma = 1.0 + 0.02 * jax.random.normal(ks[7], (in_channels, 1), jnp.float32)
    beta = jnp.zeros((in_channels, 1), jnp.float32)

    # BatchNorm2d folded in eval mode (running_mean=0, running_var=1).
    # TODO(synk): train-mode batch statistics would need a cross-batch reduction.
    gamma_eff = gamma / jnp.sqrt(1.0 + eps)
    return {
        "w_theta": w_theta,
        "w_phi": w_phi, "b_phi": b_phi,
        "w_psi": w_psi, "b_psi": b_psi,
        "w_w_eff": gamma_eff * w_w,
        "b_eff": gamma_eff * b_w + beta,
    }


def reference(x_nchw, g_nchw, params):
    """Pure-JAX reference of the same math (module order: conv -> upsample),
    with the same bf16 rounding points as the kernel."""
    B, Cin, H, W = x_nchw.shape
    _, Cg, Hg, Wg = g_nchw.shape
    f32 = jnp.float32
    rnd = lambda a: a.astype(jnp.bfloat16).astype(f32)

    x = rnd(x_nchw).reshape(B, Cin, H * W)
    g = rnd(g_nchw)                                        # (B, Cg, Hg, Wg)
    wth = rnd(params["w_theta"])
    ww = rnd(params["w_w_eff"])

    theta = jnp.einsum("oc,bcp->bop", wth, x)
    phi = (jnp.einsum("oc,bchw->bohw", params["w_phi"], g)
           + params["b_phi"][None, :, :, None])
    rh = _interp_matrix(H, Hg)
    rw = _interp_matrix(W, Wg)
    phi_up = jnp.einsum("hH,boHW,wW->bohw", rh, phi, rw).reshape(B, -1, H * W)
    f = jnp.maximum(theta + phi_up, 0.0)
    logit = jnp.sum(f * params["w_psi"][None], axis=1, keepdims=True) + params["b_psi"][None]
    s = jax.nn.sigmoid(logit)
    y = rnd(s * x)
    wy = jnp.einsum("oc,bcp->bop", ww, y) + params["b_eff"][None]
    return wy.reshape(B, Cin, H, W), s.reshape(B, 1, H, W)


if __name__ == "__main__":
    B, Cin, H, W = 2, 8, 16, 16
    Cg, Hg, Wg = 16, 8, 8
    Cint = Cin // 2  # inter_channels default

    key = jax.random.PRNGKey(0)
    kx, kg, kp = jax.random.split(key, 3)
    x = jax.random.normal(kx, (B, Cin, H, W), jnp.float32)
    g = jax.random.normal(kg, (B, Cg, Hg, Wg), jnp.float32)
    params = init_params(kp, Cin, Cg, Cint)

    W_y, sigm = attention_gate(x, g, params)
    jax.block_until_ready((W_y, sigm))

    W_y_ref, sigm_ref = reference(x, g, params)
    assert W_y.shape == (B, Cin, H, W) and sigm.shape == (B, 1, H, W)
    assert jnp.allclose(W_y, W_y_ref, atol=2e-3, rtol=2e-3), \
        float(jnp.max(jnp.abs(W_y - W_y_ref)))
    assert jnp.allclose(sigm, sigm_ref, atol=2e-3, rtol=2e-3), \
        float(jnp.max(jnp.abs(sigm - sigm_ref)))

    print("KERNEL_OK")
</pallas_src>

<mosaic_0001>
module attributes {stable_mosaic.version = 11 : i64} {
  func.func @_attention_gate_kernel(%arg0: i32, %arg1: i32, %arg2: memref<1x8x256xbf16, #tpu.memory_space<vmem>>, %arg3: memref<1x128x8xbf16, #tpu.memory_space<vmem>>, %arg4: memref<16x8xf32, #tpu.memory_space<vmem>>, %arg5: memref<8x16xf32, #tpu.memory_space<vmem>>, %arg6: memref<4x8xbf16, #tpu.memory_space<vmem>>, %arg7: memref<4x16xf32, #tpu.memory_space<vmem>>, %arg8: memref<4x1xf32, #tpu.memory_space<vmem>>, %arg9: memref<4x1xf32, #tpu.memory_space<vmem>>, %arg10: memref<1x1xf32, #tpu.memory_space<vmem>>, %arg11: memref<8x8xbf16, #tpu.memory_space<vmem>>, %arg12: memref<8x1xf32, #tpu.memory_space<vmem>>, %arg13: memref<1x8x256xf32, #tpu.memory_space<vmem>>, %arg14: memref<1x1x256xf32, #tpu.memory_space<vmem>>, %arg15: memref<16x256xf32, #tpu.memory_space<vmem>>) attributes {dimension_semantics = [#tpu.dimension_semantics<parallel>, #tpu.dimension_semantics<parallel>], iteration_bounds = array<i64: 2, 1>, scalar_prefetch = 0 : i64, scratch_operands = 1 : i64, tpu.core_type = #tpu.core_type<tc>, window_params = [{transform_indices = @transform_0, window_bounds = array<i64: 1, 8, 256>}, {transform_indices = @transform_1, window_bounds = array<i64: 1, 128, 8>}, {transform_indices = @transform_2, window_bounds = array<i64: 16, 8>}, {pipeline_mode = #tpu.pipeline_mode<synchronous>, transform_indices = @transform_3, window_bounds = array<i64: 8, 16>}, {pipeline_mode = #tpu.pipeline_mode<synchronous>, transform_indices = @transform_4, window_bounds = array<i64: 4, 8>}, {pipeline_mode = #tpu.pipeline_mode<synchronous>, transform_indices = @transform_5, window_bounds = array<i64: 4, 16>}, {pipeline_mode = #tpu.pipeline_mode<synchronous>, transform_indices = @transform_6, window_bounds = array<i64: 4, 1>}, {pipeline_mode = #tpu.pipeline_mode<synchronous>, transform_indices = @transform_7, window_bounds = array<i64: 4, 1>}, {pipeline_mode = #tpu.pipeline_mode<synchronous>, transform_indices = @transform_8, window_bounds = array<i64: 1, 1>}, {pipeline_mode = #tpu.pipeline_mode<synchronous>, transform_indices = @transform_9, window_bounds = array<i64: 8, 8>}, {pipeline_mode = #tpu.pipeline_mode<synchronous>, transform_indices = @transform_10, window_bounds = array<i64: 8, 1>}, {transform_indices = @transform_11, window_bounds = array<i64: 1, 8, 256>}, {transform_indices = @transform_12, window_bounds = array<i64: 1, 1, 256>}]} {
    %c0 = arith.constant 0 : index
    %c0_0 = arith.constant 0 : index
    %c0_1 = arith.constant 0 : index
    %0 = vector.load %arg2[%c0, %c0_0, %c0_1] : memref<1x8x256xbf16, #tpu.memory_space<vmem>>, vector<1x8x256xbf16>
    %1 = vector.shape_cast %0 : vector<1x8x256xbf16> to vector<8x256xbf16>
    %c0_2 = arith.constant 0 : index
    %c0_3 = arith.constant 0 : index
    %c0_4 = arith.constant 0 : index
    %2 = vector.load %arg3[%c0_2, %c0_3, %c0_4] : memref<1x128x8xbf16, #tpu.memory_space<vmem>>, vector<1x128x8xbf16>
    %3 = vector.shape_cast %2 : vector<1x128x8xbf16> to vector<128x8xbf16>
    %4 = arith.extf %3 : vector<128x8xbf16> to vector<128x8xf32>
    %c0_5 = arith.constant 0 : index
    %c0_6 = arith.constant 0 : index
    %5 = vector.load %arg5[%c0_5, %c0_6] : memref<8x16xf32, #tpu.memory_space<vmem>>, vector<8x16xf32>
    %cst = arith.constant dense<0.000000e+00> : vector<128x16xf32>
    %6 = tpu.matmul %4, %5, %cst {dimension_numbers = #tpu.dot_dimension_numbers<[1], [0], [0], [1], [0, 0, 1, 1], [], []>} : vector<128x8xf32>, vector<8x16xf32>, vector<128x16xf32> -> vector<128x16xf32>
    %7 = vector.shape_cast %6 : vector<128x16xf32> to vector<16x8x16xf32>
    %c0_7 = arith.constant 0 : index
    %c0_8 = arith.constant 0 : index
    %8 = vector.load %arg4[%c0_7, %c0_8] : memref<16x8xf32, #tpu.memory_space<vmem>>, vector<16x8xf32>
    %9 = vector.extract_strided_slice %8 {offsets = [0, 0], sizes = [1, 8], strides = [1, 1]} : vector<16x8xf32> to vector<1x8xf32>
    %10 = vector.shape_cast %9 : vector<1x8xf32> to vector<1x8x1xf32>
    %11 = vector.broadcast %10 : vector<1x8x1xf32> to vector<16x8x16xf32>
    %12 = arith.mulf %7, %11 : vector<16x8x16xf32>
    %cst_9 = arith.constant dense<0.000000e+00> : vector<16x16xf32>
    %13 = vector.multi_reduction <add>, %12, %cst_9 [1] : vector<16x8x16xf32> to vector<16x16xf32>
    %c0_10 = arith.constant 0 : index
    %c0_11 = arith.constant 0 : index
    %14 = vector.load %arg15[%c0_10, %c0_11] : memref<16x256xf32, #tpu.memory_space<vmem>>, vector<16x16xf32>
    tpu.vector_store %arg15[%c0_10, %c0_11], %13 {strides = array<i32>} : memref<16x256xf32, #tpu.memory_space<vmem>>, vector<16x16xf32>,
    %15 = vector.extract_strided_slice %8 {offsets = [1, 0], sizes = [1, 8], strides = [1, 1]} : vector<16x8xf32> to vector<1x8xf32>
    %16 = vector.shape_cast %15 : vector<1x8xf32> to vector<1x8x1xf32>
    %17 = vector.broadcast %16 : vector<1x8x1xf32> to vector<16x8x16xf32>
    %18 = arith.mulf %7, %17 : vector<16x8x16xf32>
    %cst_12 = arith.constant dense<0.000000e+00> : vector<16x16xf32>
    %19 = vector.multi_reduction <add>, %18, %cst_12 [1] : vector<16x8x16xf32> to vector<16x16xf32>
    %c0_13 = arith.constant 0 : index
    %c16 = arith.constant 16 : index
    %20 = vector.load %arg15[%c0_13, %c16] : memref<16x256xf32, #tpu.memory_space<vmem>>, vector<16x16xf32>
    tpu.vector_store %arg15[%c0_13, %c16], %19 {strides = array<i32>} : memref<16x256xf32, #tpu.memory_space<vmem>>, vector<16x16xf32>,
    %21 = vector.extract_strided_slice %8 {offsets = [2, 0], sizes = [1, 8], strides = [1, 1]} : vector<16x8xf32> to vector<1x8xf32>
    %22 = vector.shape_cast %21 : vector<1x8xf32> to vector<1x8x1xf32>
    %23 = vector.broadcast %22 : vector<1x8x1xf32> to vector<16x8x16xf32>
    %24 = arith.mulf %7, %23 : vector<16x8x16xf32>
    %cst_14 = arith.constant dense<0.000000e+00> : vector<16x16xf32>
    %25 = vector.multi_reduction <add>, %24, %cst_14 [1] : vector<16x8x16xf32> to vector<16x16xf32>
    %c0_15 = arith.constant 0 : index
    %c32 = arith.constant 32 : index
    %26 = vector.load %arg15[%c0_15, %c32] : memref<16x256xf32, #tpu.memory_space<vmem>>, vector<16x16xf32>
    tpu.vector_store %arg15[%c0_15, %c32], %25 {strides = array<i32>} : memref<16x256xf32, #tpu.memory_space<vmem>>, vector<16x16xf32>,
    %27 = vector.extract_strided_slice %8 {offsets = [3, 0], sizes = [1, 8], strides = [1, 1]} : vector<16x8xf32> to vector<1x8xf32>
    %28 = vector.shape_cast %27 : vector<1x8xf32> to vector<1x8x1xf32>
    %29 = vector.broadcast %28 : vector<1x8x1xf32> to vector<16x8x16xf32>
    %30 = arith.mulf %7, %29 : vector<16x8x16xf32>
    %cst_16 = arith.constant dense<0.000000e+00> : vector<16x16xf32>
    %31 = vector.multi_reduction <add>, %30, %cst_16 [1] : vector<16x8x16xf32> to vector<16x16xf32>
    %c0_17 = arith.constant 0 : index
    %c48 = arith.constant 48 : index
    %32 = vector.load %arg15[%c0_17, %c48] : memref<16x256xf32, #tpu.memory_space<vmem>>, vector<16x16xf32>
    tpu.vector_store %arg15[%c0_17, %c48], %31 {strides = array<i32>} : memref<16x256xf32, #tpu.memory_space<vmem>>, vector<16x16xf32>,
    %33 = vector.extract_strided_slice %8 {offsets = [4, 0], sizes = [1, 8], strides = [1, 1]} : vector<16x8xf32> to vector<1x8xf32>
    %34 = vector.shape_cast %33 : vector<1x8xf32> to vector<1x8x1xf32>
    %35 = vector.broadcast %34 : vector<1x8x1xf32> to vector<16x8x16xf32>
    %36 = arith.mulf %7, %35 : vector<16x8x16xf32>
    %cst_18 = arith.constant dense<0.000000e+00> : vector<16x16xf32>
    %37 = vector.multi_reduction <add>, %36, %cst_18 [1] : vector<16x8x16xf32> to vector<16x16xf32>
    %c0_19 = arith.constant 0 : index
    %c64 = arith.constant 64 : index
    %38 = vector.load %arg15[%c0_19, %c64] : memref<16x256xf32, #tpu.memory_space<vmem>>, vector<16x16xf32>
    tpu.vector_store %arg15[%c0_19, %c64], %37 {strides = array<i32>} : memref<16x256xf32, #tpu.memory_space<vmem>>, vector<16x16xf32>,
    %39 = vector.extract_strided_slice %8 {offsets = [5, 0], sizes = [1, 8], strides = [1, 1]} : vector<16x8xf32> to vector<1x8xf32>
    %40 = vector.shape_cast %39 : vector<1x8xf32> to vector<1x8x1xf32>
    %41 = vector.broadcast %40 : vector<1x8x1xf32> to vector<16x8x16xf32>
    %42 = arith.mulf %7, %41 : vector<16x8x16xf32>
    %cst_20 = arith.constant dense<0.000000e+00> : vector<16x16xf32>
    %43 = vector.multi_reduction <add>, %42, %cst_20 [1] : vector<16x8x16xf32> to vector<16x16xf32>
    %c0_21 = arith.constant 0 : index
    %c80 = arith.constant 80 : index
    %44 = vector.load %arg15[%c0_21, %c80] : memref<16x256xf32, #tpu.memory_space<vmem>>, vector<16x16xf32>
    tpu.vector_store %arg15[%c0_21, %c80], %43 {strides = array<i32>} : memref<16x256xf32, #tpu.memory_space<vmem>>, vector<16x16xf32>,
    %45 = vector.extract_strided_slice %8 {offsets = [6, 0], sizes = [1, 8], strides = [1, 1]} : vector<16x8xf32> to vector<1x8xf32>
    %46 = vector.shape_cast %45 : vector<1x8xf32> to vector<1x8x1xf32>
    %47 = vector.broadcast %46 : vector<1x8x1xf32> to vector<16x8x16xf32>
    %48 = arith.mulf %7, %47 : vector<16x8x16xf32>
    %cst_22 = arith.constant dense<0.000000e+00> : vector<16x16xf32>
    %49 = vector.multi_reduction <add>, %48, %cst_22 [1] : vector<16x8x16xf32> to vector<16x16xf32>
    %c0_23 = arith.constant 0 : index
    %c96 = arith.constant 96 : index
    %50 = vector.load %arg15[%c0_23, %c96] : memref<16x256xf32, #tpu.memory_space<vmem>>, vector<16x16xf32>
    tpu.vector_store %arg15[%c0_23, %c96], %49 {strides = array<i32>} : memref<16x256xf32, #tpu.memory_space<vmem>>, vector<16x16xf32>,
    %51 = vector.extract_strided_slice %8 {offsets = [7, 0], sizes = [1, 8], strides = [1, 1]} : vector<16x8xf32> to vector<1x8xf32>
    %52 = vector.shape_cast %51 : vector<1x8xf32> to vector<1x8x1xf32>
    %53 = vector.broadcast %52 : vector<1x8x1xf32> to vector<16x8x16xf32>
    %54 = arith.mulf %7, %53 : vector<16x8x16xf32>
    %cst_24 = arith.constant dense<0.000000e+00> : vector<16x16xf32>
    %55 = vector.multi_reduction <add>, %54, %cst_24 [1] : vector<16x8x16xf32> to vector<16x16xf32>
    %c0_25 = arith.constant 0 : index
    %c112 = arith.constant 112 : index
    %56 = vector.load %arg15[%c0_25, %c112] : memref<16x256xf32, #tpu.memory_space<vmem>>, vector<16x16xf32>
    tpu.vector_store %arg15[%c0_25, %c112], %55 {strides = array<i32>} : memref<16x256xf32, #tpu.memory_space<vmem>>, vector<16x16xf32>,
    %57 = vector.extract_strided_slice %8 {offsets = [8, 0], sizes = [1, 8], strides = [1, 1]} : vector<16x8xf32> to vector<1x8xf32>
    %58 = vector.shape_cast %57 : vector<1x8xf32> to vector<1x8x1xf32>
    %59 = vector.broadcast %58 : vector<1x8x1xf32> to vector<16x8x16xf32>
    %60 = arith.mulf %7, %59 : vector<16x8x16xf32>
    %cst_26 = arith.constant dense<0.000000e+00> : vector<16x16xf32>
    %61 = vector.multi_reduction <add>, %60, %cst_26 [1] : vector<16x8x16xf32> to vector<16x16xf32>
    %c0_27 = arith.constant 0 : index
    %c128 = arith.constant 128 : index
    %62 = vector.load %arg15[%c0_27, %c128] : memref<16x256xf32, #tpu.memory_space<vmem>>, vector<16x16xf32>
    tpu.vector_store %arg15[%c0_27, %c128], %61 {strides = array<i32>} : memref<16x256xf32, #tpu.memory_space<vmem>>, vector<16x16xf32>,
    %63 = vector.extract_strided_slice %8 {offsets = [9, 0], sizes = [1, 8], strides = [1, 1]} : vector<16x8xf32> to vector<1x8xf32>
    %64 = vector.shape_cast %63 : vector<1x8xf32> to vector<1x8x1xf32>
    %65 = vector.broadcast %64 : vector<1x8x1xf32> to vector<16x8x16xf32>
    %66 = arith.mulf %7, %65 : vector<16x8x16xf32>
    %cst_28 = arith.constant dense<0.000000e+00> : vector<16x16xf32>
    %67 = vector.multi_reduction <add>, %66, %cst_28 [1] : vector<16x8x16xf32> to vector<16x16xf32>
    %c0_29 = arith.constant 0 : index
    %c144 = arith.constant 144 : index
    %68 = vector.load %arg15[%c0_29, %c144] : memref<16x256xf32, #tpu.memory_space<vmem>>, vector<16x16xf32>
    tpu.vector_store %arg15[%c0_29, %c144], %67 {strides = array<i32>} : memref<16x256xf32, #tpu.memory_space<vmem>>, vector<16x16xf32>,
    %69 = vector.extract_strided_slice %8 {offsets = [10, 0], sizes = [1, 8], strides = [1, 1]} : vector<16x8xf32> to vector<1x8xf32>
    %70 = vector.shape_cast %69 : vector<1x8xf32> to vector<1x8x1xf32>
    %71 = vector.broadcast %70 : vector<1x8x1xf32> to vector<16x8x16xf32>
    %72 = arith.mulf %7, %71 : vector<16x8x16xf32>
    %cst_30 = arith.constant dense<0.000000e+00> : vector<16x16xf32>
    %73 = vector.multi_reduction <add>, %72, %cst_30 [1] : vector<16x8x16xf32> to vector<16x16xf32>
    %c0_31 = arith.constant 0 : index
    %c160 = arith.constant 160 : index
    %74 = vector.load %arg15[%c0_31, %c160] : memref<16x256xf32, #tpu.memory_space<vmem>>, vector<16x16xf32>
    tpu.vector_store %arg15[%c0_31, %c160], %73 {strides = array<i32>} : memref<16x256xf32, #tpu.memory_space<vmem>>, vector<16x16xf32>,
    %75 = vector.extract_strided_slice %8 {offsets = [11, 0], sizes = [1, 8], strides = [1, 1]} : vector<16x8xf32> to vector<1x8xf32>
    %76 = vector.shape_cast %75 : vector<1x8xf32> to vector<1x8x1xf32>
    %77 = vector.broadcast %76 : vector<1x8x1xf32> to vector<16x8x16xf32>
    %78 = arith.mulf %7, %77 : vector<16x8x16xf32>
    %cst_32 = arith.constant dense<0.000000e+00> : vector<16x16xf32>
    %79 = vector.multi_reduction <add>, %78, %cst_32 [1] : vector<16x8x16xf32> to vector<16x16xf32>
    %c0_33 = arith.constant 0 : index
    %c176 = arith.constant 176 : index
    %80 = vector.load %arg15[%c0_33, %c176] : memref<16x256xf32, #tpu.memory_space<vmem>>, vector<16x16xf32>
    tpu.vector_store %arg15[%c0_33, %c176], %79 {strides = array<i32>} : memref<16x256xf32, #tpu.memory_space<vmem>>, vector<16x16xf32>,
    %81 = vector.extract_strided_slice %8 {offsets = [12, 0], sizes = [1, 8], strides = [1, 1]} : vector<16x8xf32> to vector<1x8xf32>
    %82 = vector.shape_cast %81 : vector<1x8xf32> to vector<1x8x1xf32>
    %83 = vector.broadcast %82 : vector<1x8x1xf32> to vector<16x8x16xf32>
    %84 = arith.mulf %7, %83 : vector<16x8x16xf32>
    %cst_34 = arith.constant dense<0.000000e+00> : vector<16x16xf32>
    %85 = vector.multi_reduction <add>, %84, %cst_34 [1] : vector<16x8x16xf32> to vector<16x16xf32>
    %c0_35 = arith.constant 0 : index
    %c192 = arith.constant 192 : index
    %86 = vector.load %arg15[%c0_35, %c192] : memref<16x256xf32, #tpu.memory_space<vmem>>, vector<16x16xf32>
    tpu.vector_store %arg15[%c0_35, %c192], %85 {strides = array<i32>} : memref<16x256xf32, #tpu.memory_space<vmem>>, vector<16x16xf32>,
    %87 = vector.extract_strided_slice %8 {offsets = [13, 0], sizes = [1, 8], strides = [1, 1]} : vector<16x8xf32> to vector<1x8xf32>
    %88 = vector.shape_cast %87 : vector<1x8xf32> to vector<1x8x1xf32>
    %89 = vector.broadcast %88 : vector<1x8x1xf32> to vector<16x8x16xf32>
    %90 = arith.mulf %7, %89 : vector<16x8x16xf32>
    %cst_36 = arith.constant dense<0.000000e+00> : vector<16x16xf32>
    %91 = vector.multi_reduction <add>, %90, %cst_36 [1] : vector<16x8x16xf32> to vector<16x16xf32>
    %c0_37 = arith.constant 0 : index
    %c208 = arith.constant 208 : index
    %92 = vector.load %arg15[%c0_37, %c208] : memref<16x256xf32, #tpu.memory_space<vmem>>, vector<16x16xf32>
    tpu.vector_store %arg15[%c0_37, %c208], %91 {strides = array<i32>} : memref<16x256xf32, #tpu.memory_space<vmem>>, vector<16x16xf32>,
    %93 = vector.extract_strided_slice %8 {offsets = [14, 0], sizes = [1, 8], strides = [1, 1]} : vector<16x8xf32> to vector<1x8xf32>
    %94 = vector.shape_cast %93 : vector<1x8xf32> to vector<1x8x1xf32>
    %95 = vector.broadcast %94 : vector<1x8x1xf32> to vector<16x8x16xf32>
    %96 = arith.mulf %7, %95 : vector<16x8x16xf32>
    %cst_38 = arith.constant dense<0.000000e+00> : vector<16x16xf32>
    %97 = vector.multi_reduction <add>, %96, %cst_38 [1] : vector<16x8x16xf32> to vector<16x16xf32>
    %c0_39 = arith.constant 0 : index
    %c224 = arith.constant 224 : index
    %98 = vector.load %arg15[%c0_39, %c224] : memref<16x256xf32, #tpu.memory_space<vmem>>, vector<16x16xf32>
    tpu.vector_store %arg15[%c0_39, %c224], %97 {strides = array<i32>} : memref<16x256xf32, #tpu.memory_space<vmem>>, vector<16x16xf32>,
    %99 = vector.extract_strided_slice %8 {offsets = [15, 0], sizes = [1, 8], strides = [1, 1]} : vector<16x8xf32> to vector<1x8xf32>
    %100 = vector.shape_cast %99 : vector<1x8xf32> to vector<1x8x1xf32>
    %101 = vector.broadcast %100 : vector<1x8x1xf32> to vector<16x8x16xf32>
    %102 = arith.mulf %7, %101 : vector<16x8x16xf32>
    %cst_40 = arith.constant dense<0.000000e+00> : vector<16x16xf32>
    %103 = vector.multi_reduction <add>, %102, %cst_40 [1] : vector<16x8x16xf32> to vector<16x16xf32>
    %c0_41 = arith.constant 0 : index
    %c240 = arith.constant 240 : index
    %104 = vector.load %arg15[%c0_41, %c240] : memref<16x256xf32, #tpu.memory_space<vmem>>, vector<16x16xf32>
    tpu.vector_store %arg15[%c0_41, %c240], %103 {strides = array<i32>} : memref<16x256xf32, #tpu.memory_space<vmem>>, vector<16x16xf32>,
    %c0_42 = arith.constant 0 : index
    %c0_43 = arith.constant 0 : index
    %105 = vector.load %arg15[%c0_42, %c0_43] : memref<16x256xf32, #tpu.memory_space<vmem>>, vector<16x256xf32>
    %c0_44 = arith.constant 0 : index
    %c0_45 = arith.constant 0 : index
    %106 = vector.load %arg6[%c0_44, %c0_45] : memref<4x8xbf16, #tpu.memory_space<vmem>>, vector<4x8xbf16>
    %cst_46 = arith.constant dense<0.000000e+00> : vector<4x256xf32>
    %107 = tpu.matmul %106, %1, %cst_46 {dimension_numbers = #tpu.dot_dimension_numbers<[1], [0], [0], [1], [0, 0, 1, 1], [], []>} : vector<4x8xbf16>, vector<8x256xbf16>, vector<4x256xf32> -> vector<4x256xf32>
    %c0_47 = arith.constant 0 : index
    %c0_48 = arith.constant 0 : index
    %108 = vector.load %arg7[%c0_47, %c0_48] : memref<4x16xf32, #tpu.memory_space<vmem>>, vector<4x16xf32>
    %cst_49 = arith.constant dense<0.000000e+00> : vector<4x256xf32>
    %109 = tpu.matmul %108, %105, %cst_49 {dimension_numbers = #tpu.dot_dimension_numbers<[1], [0], [0], [1], [0, 0, 1, 1], [], []>} : vector<4x16xf32>, vector<16x256xf32>, vector<4x256xf32> -> vector<4x256xf32>
    %c0_50 = arith.constant 0 : index
    %c0_51 = arith.constant 0 : index
    %110 = vector.load %arg8[%c0_50, %c0_51] : memref<4x1xf32, #tpu.memory_space<vmem>>, vector<4x1xf32>
    %111 = vector.broadcast %110 : vector<4x1xf32> to vector<4x256xf32>
    %112 = arith.addf %109, %111 : vector<4x256xf32>
    %113 = arith.addf %107, %112 : vector<4x256xf32>
    %cst_52 = arith.constant 0.000000e+00 : f32
    %114 = vector.broadcast %cst_52 : f32 to vector<4x256xf32>
    %115 = arith.maximumf %113, %114 : vector<4x256xf32>
    %c0_53 = arith.constant 0 : index
    %c0_54 = arith.constant 0 : index
    %116 = vector.load %arg9[%c0_53, %c0_54] : memref<4x1xf32, #tpu.memory_space<vmem>>, vector<4x1xf32>
    %117 = vector.broadcast %116 : vector<4x1xf32> to vector<4x256xf32>
    %118 = arith.mulf %115, %117 : vector<4x256xf32>
    %cst_55 = arith.constant dense<0.000000e+00> : vector<256xf32>
    %119 = vector.multi_reduction <add>, %118, %cst_55 [0] : vector<4x256xf32> to vector<256xf32>
    %120 = vector.shape_cast %119 : vector<256xf32> to vector<1x256xf32>
    %c0_56 = arith.constant 0 : index
    %c0_57 = arith.constant 0 : index
    %121 = vector.load %arg10[%c0_56, %c0_57] : memref<1x1xf32, #tpu.memory_space<vmem>>, vector<1x1xf32>
    %122 = vector.broadcast %121 : vector<1x1xf32> to vector<1x256xf32>
    %123 = arith.addf %120, %122 : vector<1x256xf32>
    %124 = arith.negf %123 : vector<1x256xf32>
    %125 = math.exp %124 : vector<1x256xf32>
    %cst_58 = arith.constant 1.000000e+00 : f32
    %126 = vector.broadcast %cst_58 : f32 to vector<1x256xf32>
    %127 = arith.addf %126, %125 : vector<1x256xf32>
    %128 = arith.divf %126, %127 : vector<1x256xf32>
    %129 = arith.extf %1 : vector<8x256xbf16> to vector<8x256xf32>
    %130 = vector.broadcast %128 : vector<1x256xf32> to vector<8x256xf32>
    %131 = arith.mulf %130, %129 : vector<8x256xf32>
    %132 = arith.truncf %131 : vector<8x256xf32> to vector<8x256xbf16>
    %c0_59 = arith.constant 0 : index
    %c0_60 = arith.constant 0 : index
    %133 = vector.load %arg11[%c0_59, %c0_60] : memref<8x8xbf16, #tpu.memory_space<vmem>>, vector<8x8xbf16>
    %cst_61 = arith.constant dense<0.000000e+00> : vector<8x256xf32>
    %134 = tpu.matmul %133, %132, %cst_61 {dimension_numbers = #tpu.dot_dimension_numbers<[1], [0], [0], [1], [0, 0, 1, 1], [], []>} : vector<8x8xbf16>, vector<8x256xbf16>, vector<8x256xf32> -> vector<8x256xf32>
    %c0_62 = arith.constant 0 : index
    %c0_63 = arith.constant 0 : index
    %135 = vector.load %arg12[%c0_62, %c0_63] : memref<8x1xf32, #tpu.memory_space<vmem>>, vector<8x1xf32>
    %136 = vector.broadcast %135 : vector<8x1xf32> to vector<8x256xf32>
    %137 = arith.addf %134, %136 : vector<8x256xf32>
    %c0_64 = arith.constant 0 : index
    %c0_65 = arith.constant 0 : index
    %c0_66 = arith.constant 0 : index
    %138 = vector.load %arg13[%c0_64, %c0_65, %c0_66] : memref<1x8x256xf32, #tpu.memory_space<vmem>>, vector<1x8x256xf32>
    %139 = vector.shape_cast %138 : vector<1x8x256xf32> to vector<8x256xf32>
    %140 = vector.shape_cast %137 : vector<8x256xf32> to vector<1x8x256xf32>
    tpu.vector_store %arg13[%c0_64, %c0_65, %c0_66], %140 {strides = array<i32>} : memref<1x8x256xf32, #tpu.memory_space<vmem>>, vector<1x8x256xf32>,
    %c0_67 = arith.constant 0 : index
    %c0_68 = arith.constant 0 : index
    %c0_69 = arith.constant 0 : index
    %141 = vector.load %arg14[%c0_67, %c0_68, %c0_69] : memref<1x1x256xf32, #tpu.memory_space<vmem>>, vector<1x1x256xf32>
    %142 = vector.shape_cast %141 : vector<1x1x256xf32> to vector<1x256xf32>
    %143 = vector.shape_cast %128 : vector<1x256xf32> to vector<1x1x256xf32>
    tpu.vector_store %arg14[%c0_67, %c0_68, %c0_69], %143 {strides = array<i32>} : memref<1x1x256xf32, #tpu.memory_space<vmem>>, vector<1x1x256xf32>,
    return
  }
  func.func @transform_0(%arg0: i32, %arg1: i32) -> (i32, i32, i32) {
    %c0_i32 = arith.constant 0 : i32
    %c0_i32_0 = arith.constant 0 : i32
    return %arg0, %c0_i32, %arg1 : i32, i32, i32
  }
  func.func @transform_1(%arg0: i32, %arg1: i32) -> (i32, i32, i32) {
    %c0_i32 = arith.constant 0 : i32
    %c0_i32_0 = arith.constant 0 : i32
    %c0_i32_1 = arith.constant 0 : i32
    return %arg0, %c0_i32, %c0_i32_0 : i32, i32, i32
  }
  func.func @transform_2(%arg0: i32, %arg1: i32) -> (i32, i32) {
    %c0_i32 = arith.constant 0 : i32
    %c0_i32_0 = arith.constant 0 : i32
    return %arg1, %c0_i32 : i32, i32
  }
  func.func @transform_3(%arg0: i32, %arg1: i32) -> (i32, i32) {
    %c0_i32 = arith.constant 0 : i32
    %c0_i32_0 = arith.constant 0 : i32
    %c0_i32_1 = arith.constant 0 : i32
    return %c0_i32, %c0_i32_0 : i32, i32
  }
  func.func @transform_4(%arg0: i32, %arg1: i32) -> (i32, i32) {
    %c0_i32 = arith.constant 0 : i32
    %c0_i32_0 = arith.constant 0 : i32
    %c0_i32_1 = arith.constant 0 : i32
    return %c0_i32, %c0_i32_0 : i32, i32
  }
  func.func @transform_5(%arg0: i32, %arg1: i32) -> (i32, i32) {
    %c0_i32 = arith.constant 0 : i32
    %c0_i32_0 = arith.constant 0 : i32
    %c0_i32_1 = arith.constant 0 : i32
    return %c0_i32, %c0_i32_0 : i32, i32
  }
  func.func @transform_6(%arg0: i32, %arg1: i32) -> (i32, i32) {
    %c0_i32 = arith.constant 0 : i32
    %c0_i32_0 = arith.constant 0 : i32
    %c0_i32_1 = arith.constant 0 : i32
    return %c0_i32, %c0_i32_0 : i32, i32
  }
  func.func @transform_7(%arg0: i32, %arg1: i32) -> (i32, i32) {
    %c0_i32 = arith.constant 0 : i32
    %c0_i32_0 = arith.constant 0 : i32
    %c0_i32_1 = arith.constant 0 : i32
    return %c0_i32, %c0_i32_0 : i32, i32
  }
  func.func @transform_8(%arg0: i32, %arg1: i32) -> (i32, i32) {
    %c0_i32 = arith.constant 0 : i32
    %c0_i32_0 = arith.constant 0 : i32
    %c0_i32_1 = arith.constant 0 : i32
    return %c0_i32, %c0_i32_0 : i32, i32
  }
  func.func @transform_9(%arg0: i32, %arg1: i32) -> (i32, i32) {
    %c0_i32 = arith.constant 0 : i32
    %c0_i32_0 = arith.constant 0 : i32
    %c0_i32_1 = arith.constant 0 : i32
    return %c0_i32, %c0_i32_0 : i32, i32
  }
  func.func @transform_10(%arg0: i32, %arg1: i32) -> (i32, i32) {
    %c0_i32 = arith.constant 0 : i32
    %c0_i32_0 = arith.constant 0 : i32
    %c0_i32_1 = arith.constant 0 : i32
    return %c0_i32, %c0_i32_0 : i32, i32
  }
  func.func @transform_11(%arg0: i32, %arg1: i32) -> (i32, i32, i32) {
    %c0_i32 = arith.constant 0 : i32
    %c0_i32_0 = arith.constant 0 : i32
    return %arg0, %c0_i32, %arg1 : i32, i32, i32
  }
  func.func @transform_12(%arg0: i32, %arg1: i32) -> (i32, i32, i32) {
    %c0_i32 = arith.constant 0 : i32
    %c0_i32_0 = arith.constant 0 : i32
    return %arg0, %c0_i32, %arg1 : i32, i32, i32
  }
}

</mosaic_0001>

<llo_original>
// kernel: tpu_custom_call.1
$region0: #{tpu_custom_call.1}
  #allocation0 [shape = 'u32[]', space=smem, size = 0x4, offset = 0x4, fixed_abs, tag = 'smem constant byte address 0x4 - core index']
  #allocation1 [shape = 'u32[144,128]{1,0:T(1,128)}', space=vmem, size = 0x12000, scoped, tag = 'internal scratch']
  #allocation2 [shape = 'f32[16,256]{1,0:T(8,128)}', space=vmem, size = 0x4000, scoped, tag = 'scratch operand']
  #allocation3 [shape = 'f32[1,1]{1,0:T(1,128)S(1)}', space=vmem, size = 0x200, scoped, tag = 'scoped memory for tpu_custom_call.1']
  %s0 = inlined_call_operand.vmem [shape: bf16[2,8,256], index: 0, kind: input, shape index: {}]
  %s1 = inlined_call_operand.vmem [shape: bf16[2,128,8], index: 1, kind: input, shape index: {}]
  %s2 = inlined_call_operand.vmem [shape: f32[16,8], index: 2, kind: input, shape index: {}]
  %s3 = inlined_call_operand.vmem [shape: f32[8,16], index: 3, kind: input, shape index: {}]
  %s4 = inlined_call_operand.vmem [shape: bf16[4,8], index: 4, kind: input, shape index: {}]
  %s5 = inlined_call_operand.vmem [shape: f32[4,16], index: 5, kind: input, shape index: {}]
  %s6 = inlined_call_operand.vmem [shape: f32[4,1], index: 6, kind: input, shape index: {}]
  %s7 = inlined_call_operand.vmem [shape: f32[4,1], index: 7, kind: input, shape index: {}]
  %s8 = inlined_call_operand.<no memory space> [shape: f32[1,1], index: 8, kind: input, shape index: {}]
  %s9 = inlined_call_operand.vmem [shape: bf16[8,8], index: 9, kind: input, shape index: {}]
  %s10 = inlined_call_operand.vmem [shape: f32[8,1], index: 10, kind: input, shape index: {}]
  %s11 = inlined_call_operand.hbm [shape: f32[2,8,256], index: 11, kind: output, shape index: {0}]
  %s12 = inlined_call_operand.hbm [shape: f32[2,1,256], index: 12, kind: output, shape index: {1}]
  %13 = xla_tuple %s11, %s12
  %s14 = sld [smem:[#allocation0]]
  $region85: #{tpu_custom_call.1} parent=0
    _
  %s16 = ssub.s32 1, %s14
  %s17 = scalar_select 0, %s16, %s14
  %v18 = vstv %s8
  %19 = vst [vmem:[#allocation3] sm:$0x1] %v18
  $region1: #{tpu_custom_call.1} parent=0
    #allocation4 [shape = 'u8[16384]{0}', space=vmem, size = 0x4000, scoped, tag = 'output window, operand 0']
    #allocation5 [shape = 's32[2]{0}', space=sflag, size = 0x8, scoped, tag = 'scoped memory for tpu_custom_call.1']
    #allocation6 [shape = 'u8[2048]{0}', space=vmem, size = 0x800, scoped, tag = 'output window, operand 1']
    #allocation7 [shape = 's32[2]{0}', space=sflag, size = 0x8, scoped, tag = 'scoped memory for tpu_custom_call.1']
    %20 = vsyncpa [#allocation5], 0
    %s21 = scalar_lea.sflag [#allocation5], 1
    %22 = vsyncpa %s21, 0
    %23 = vsyncpa [#allocation7], 0
    %s24 = scalar_lea.sflag [#allocation7], 1
    %25 = vsyncpa %s24, 0
    loop: start=0, step=1, limit=4
    $region2: #{tpu_custom_call.1} parent=1 // loop_pre_header
      _
    $region3: #{tpu_custom_call.1} parent=1 // loop_header
      %s27 = sphi 0, %s31
      %p28 = scmp.ge.s32.totalorder %s27, 4
      %s34 = sphi 0, %s46
      %s35 = sphi 0, %s42
      %s36 = sphi 0, %s34
      %s37 = sphi 0, %s35
      %s38 = sphi 0, %s36
      %s39 = sphi 0, %s37
      %s51 = sphi 0, %s53
      %s54 = sphi 0, %s51
      %s55 = sphi 0, %s54
      %s71 = sphi 0, %s55
      %s77 = sphi 0, %s79
      %s80 = sphi 0, %s77
      %s81 = sphi 0, %s80
      %s97 = sphi 0, %s81
      %s103 = sphi 0, %s105
      %s106 = sphi 0, %s103
      %s107 = sphi 0, %s106
      %s123 = sphi 0, %s107
      %s127 = sphi 0, %s127
      %s129 = sphi 0, %s127
      %s130 = sphi 0, %s129
      %s144 = sphi 0, %s130
      %s148 = sphi 0, %s148
      %s150 = sphi 0, %s148
      %s151 = sphi 0, %s150
      %s165 = sphi 0, %s151
      %s169 = sphi 0, %s169
      %s171 = sphi 0, %s169
      %s172 = sphi 0, %s171
      %s186 = sphi 0, %s172
      %s190 = sphi 0, %s190
      %s192 = sphi 0, %s190
      %s193 = sphi 0, %s192
      %s207 = sphi 0, %s193
      %s211 = sphi 0, %s211
      %s213 = sphi 0, %s211
      %s214 = sphi 0, %s213
      %s228 = sphi 0, %s214
      %s232 = sphi 0, %s232
      %s234 = sphi 0, %s232
      %s235 = sphi 0, %s234
      %s249 = sphi 0, %s235
      %s253 = sphi 0, %s253
      %s255 = sphi 0, %s253
      %s256 = sphi 0, %s255
      %s270 = sphi 0, %s256
      %s274 = sphi 0, %s274
      %s276 = sphi 0, %s274
      %s277 = sphi 0, %s276
      %s291 = sphi 0, %s277
      %s299 = sphi 0, %s301
      %s302 = sphi 0, %s299
      %s303 = sphi 0, %s302
      %s319 = sphi 0, %s303
      %s327 = sphi 0, %s329
      %s330 = sphi 0, %s327
      %s331 = sphi 0, %s330
      %s347 = sphi 0, %s331
    $region4: #{tpu_custom_call.1} parent=1 // loop_header_branch
      %30 = sbr.rel (%p28) target = $region8
    $region5: #{tpu_custom_call.1} parent=1 // loop_body
      %s32 = ssub.s32 %s27, 1
      %s33 = ssub.s32 %s27, 2
      %s40 = sadd.s32 1, %s35
      %p41 = scmp.ge.s32.totalorder %s40, 1
      %s42 = scalar_select %p41, 0, %s40
      %s43 = sadd.s32 1, %s34
      %s44 = scalar_select %p41, %s43, %s34
      %p45 = scmp.ge.s32.totalorder %s44, 2
      %s46 = scalar_select %p45, 0, %s44
      %s47 = ssub.s32 %s34, %s46
      %s48 = ssub.s32 %s35, %s42
      %s49 = sor.u32 %s47, %s48
      %p50 = scmp.eq.s32.totalorder %s49, 0
      %s52 = sadd.s32 %s51, 1
      %s53 = scalar_select %p50, %s51, %s52
      %p56 = pneg %p50
      %p57 = scmp.eq.s32.totalorder %s27, 1
      %p58 = por %p56, %p57
      %p59 = scmp.ne.s32.totalorder %s51, %s54
      %p60 = scmp.eq.s32.totalorder %s27, 0
      %p61 = por %p59, %p60
      %p62 = scmp.ne.s32.totalorder %s51, %s54
      %p63 = scmp.eq.s32.totalorder %s32, 1
      %p64 = por %p62, %p63
      %p65 = scmp.ne.s32.totalorder %s54, %s55
      %p66 = scmp.eq.s32.totalorder %s32, 0
      %p67 = por %p65, %p66
      %p68 = scmp.ne.s32.totalorder %s54, %s55
      %p69 = scmp.eq.s32.totalorder %s33, 1
      %p70 = por %p68, %p69
      %p72 = scmp.ne.s32.totalorder %s55, %s71
      %p73 = scmp.eq.s32.totalorder %s33, 0
      %p74 = por %p72, %p73
      %s75 = ssub.s32 %s34, %s46
      %p76 = scmp.eq.s32.totalorder %s75, 0
      %s78 = sadd.s32 %s77, 1
      %s79 = scalar_select %p76, %s77, %s78
      %p82 = pneg %p76
      %p83 = scmp.eq.s32.totalorder %s27, 1
      %p84 = por %p82, %p83
      %p85 = scmp.ne.s32.totalorder %s77, %s80
      %p86 = scmp.eq.s32.totalorder %s27, 0
      %p87 = por %p85, %p86
      %p88 = scmp.ne.s32.totalorder %s77, %s80
      %p89 = scmp.eq.s32.totalorder %s32, 1
      %p90 = por %p88, %p89
      %p91 = scmp.ne.s32.totalorder %s80, %s81
      %p92 = scmp.eq.s32.totalorder %s32, 0
      %p93 = por %p91, %p92
      %p94 = scmp.ne.s32.totalorder %s80, %s81
      %p95 = scmp.eq.s32.totalorder %s33, 1
      %p96 = por %p94, %p95
      %p98 = scmp.ne.s32.totalorder %s81, %s97
      %p99 = scmp.eq.s32.totalorder %s33, 0
      %p100 = por %p98, %p99
      %s101 = ssub.s32 %s35, %s42
      %p102 = scmp.eq.s32.totalorder %s101, 0
      %s104 = sadd.s32 %s103, 1
      %s105 = scalar_select %p102, %s103, %s104
      %p108 = pneg %p102
      %p109 = scmp.eq.s32.totalorder %s27, 1
      %p110 = por %p108, %p109
      %p111 = scmp.ne.s32.totalorder %s103, %s106
      %p112 = scmp.eq.s32.totalorder %s27, 0
      %p113 = por %p111, %p112
      %p114 = scmp.ne.s32.totalorder %s103, %s106
      %p115 = scmp.eq.s32.totalorder %s32, 1
      %p116 = por %p114, %p115
      %p117 = scmp.ne.s32.totalorder %s106, %s107
      %p118 = scmp.eq.s32.totalorder %s32, 0
      %p119 = por %p117, %p118
      %p120 = scmp.ne.s32.totalorder %s106, %s107
      %p121 = scmp.eq.s32.totalorder %s33, 1
      %p122 = por %p120, %p121
      %p124 = scmp.ne.s32.totalorder %s107, %s123
      %p125 = scmp.eq.s32.totalorder %s33, 0
      %p126 = por %p124, %p125
      %s128 = sadd.s32 %s127, 1
      %p131 = scmp.eq.s32.totalorder %s27, 1
      %p132 = scmp.ne.s32.totalorder %s127, %s129
      %p133 = scmp.eq.s32.totalorder %s27, 0
      %p134 = por %p132, %p133
      %p135 = scmp.ne.s32.totalorder %s127, %s129
      %p136 = scmp.eq.s32.totalorder %s32, 1
      %p137 = por %p135, %p136
      %p138 = scmp.ne.s32.totalorder %s129, %s130
      %p139 = scmp.eq.s32.totalorder %s32, 0
      %p140 = por %p138, %p139
      %p141 = scmp.ne.s32.totalorder %s129, %s130
      %p142 = scmp.eq.s32.totalorder %s33, 1
      %p143 = por %p141, %p142
      %p145 = scmp.ne.s32.totalorder %s130, %s144
      %p146 = scmp.eq.s32.totalorder %s33, 0
      %p147 = por %p145, %p146
      %s149 = sadd.s32 %s148, 1
      %p152 = scmp.eq.s32.totalorder %s27, 1
      %p153 = scmp.ne.s32.totalorder %s148, %s150
      %p154 = scmp.eq.s32.totalorder %s27, 0
      %p155 = por %p153, %p154
      %p156 = scmp.ne.s32.totalorder %s148, %s150
      %p157 = scmp.eq.s32.totalorder %s32, 1
      %p158 = por %p156, %p157
      %p159 = scmp.ne.s32.totalorder %s150, %s151
      %p160 = scmp.eq.s32.totalorder %s32, 0
      %p161 = por %p159, %p160
      %p162 = scmp.ne.s32.totalorder %s150, %s151
      %p163 = scmp.eq.s32.totalorder %s33, 1
      %p164 = por %p162, %p163
      %p166 = scmp.ne.s32.totalorder %s151, %s165
      %p167 = scmp.eq.s32.totalorder %s33, 0
      %p168 = por %p166, %p167
      %s170 = sadd.s32 %s169, 1
      %p173 = scmp.eq.s32.totalorder %s27, 1
      %p174 = scmp.ne.s32.totalorder %s169, %s171
      %p175 = scmp.eq.s32.totalorder %s27, 0
      %p176 = por %p174, %p175
      %p177 = scmp.ne.s32.totalorder %s169, %s171
      %p178 = scmp.eq.s32.totalorder %s32, 1
      %p179 = por %p177, %p178
      %p180 = scmp.ne.s32.totalorder %s171, %s172
      %p181 = scmp.eq.s32.totalorder %s32, 0
      %p182 = por %p180, %p181
      %p183 = scmp.ne.s32.totalorder %s171, %s172
      %p184 = scmp.eq.s32.totalorder %s33, 1
      %p185 = por %p183, %p184
      %p187 = scmp.ne.s32.totalorder %s172, %s186
      %p188 = scmp.eq.s32.totalorder %s33, 0
      %p189 = por %p187, %p188
      %s191 = sadd.s32 %s190, 1
      %p194 = scmp.eq.s32.totalorder %s27, 1
      %p195 = scmp.ne.s32.totalorder %s190, %s192
      %p196 = scmp.eq.s32.totalorder %s27, 0
      %p197 = por %p195, %p196
      %p198 = scmp.ne.s32.totalorder %s190, %s192
      %p199 = scmp.eq.s32.totalorder %s32, 1
      %p200 = por %p198, %p199
      %p201 = scmp.ne.s32.totalorder %s192, %s193
      %p202 = scmp.eq.s32.totalorder %s32, 0
      %p203 = por %p201, %p202
      %p204 = scmp.ne.s32.totalorder %s192, %s193
      %p205 = scmp.eq.s32.totalorder %s33, 1
      %p206 = por %p204, %p205
      %p208 = scmp.ne.s32.totalorder %s193, %s207
      %p209 = scmp.eq.s32.totalorder %s33, 0
      %p210 = por %p208, %p209
      %s212 = sadd.s32 %s211, 1
      %p215 = scmp.eq.s32.totalorder %s27, 1
      %p216 = scmp.ne.s32.totalorder %s211, %s213
      %p217 = scmp.eq.s32.totalorder %s27, 0
      %p218 = por %p216, %p217
      %p219 = scmp.ne.s32.totalorder %s211, %s213
      %p220 = scmp.eq.s32.totalorder %s32, 1
      %p221 = por %p219, %p220
      %p222 = scmp.ne.s32.totalorder %s213, %s214
      %p223 = scmp.eq.s32.totalorder %s32, 0
      %p224 = por %p222, %p223
      %p225 = scmp.ne.s32.totalorder %s213, %s214
      %p226 = scmp.eq.s32.totalorder %s33, 1
      %p227 = por %p225, %p226
      %p229 = scmp.ne.s32.totalorder %s214, %s228
      %p230 = scmp.eq.s32.totalorder %s33, 0
      %p231 = por %p229, %p230
      %s233 = sadd.s32 %s232, 1
      %p236 = scmp.eq.s32.totalorder %s27, 1
      %p237 = scmp.ne.s32.totalorder %s232, %s234
      %p238 = scmp.eq.s32.totalorder %s27, 0
      %p239 = por %p237, %p238
      %p240 = scmp.ne.s32.totalorder %s232, %s234
      %p241 = scmp.eq.s32.totalorder %s32, 1
      %p242 = por %p240, %p241
      %p243 = scmp.ne.s32.totalorder %s234, %s235
      %p244 = scmp.eq.s32.totalorder %s32, 0
      %p245 = por %p243, %p244
      %p246 = scmp.ne.s32.totalorder %s234, %s235
      %p247 = scmp.eq.s32.totalorder %s33, 1
      %p248 = por %p246, %p247
      %p250 = scmp.ne.s32.totalorder %s235, %s249
      %p251 = scmp.eq.s32.totalorder %s33, 0
      %p252 = por %p250, %p251
      %s254 = sadd.s32 %s253, 1
      %p257 = scmp.eq.s32.totalorder %s27, 1
      %p258 = scmp.ne.s32.totalorder %s253, %s255
      %p259 = scmp.eq.s32.totalorder %s27, 0
      %p260 = por %p258, %p259
      %p261 = scmp.ne.s32.totalorder %s253, %s255
      %p262 = scmp.eq.s32.totalorder %s32, 1
      %p263 = por %p261, %p262
      %p264 = scmp.ne.s32.totalorder %s255, %s256
      %p265 = scmp.eq.s32.totalorder %s32, 0
      %p266 = por %p264, %p265
      %p267 = scmp.ne.s32.totalorder %s255, %s256
      %p268 = scmp.eq.s32.totalorder %s33, 1
      %p269 = por %p267, %p268
      %p271 = scmp.ne.s32.totalorder %s256, %s270
      %p272 = scmp.eq.s32.totalorder %s33, 0
      %p273 = por %p271, %p272
      %s275 = sadd.s32 %s274, 1
      %p278 = scmp.eq.s32.totalorder %s27, 1
      %p279 = scmp.ne.s32.totalorder %s274, %s276
      %p280 = scmp.eq.s32.totalorder %s27, 0
      %p281 = por %p279, %p280
      %p282 = scmp.ne.s32.totalorder %s274, %s276
      %p283 = scmp.eq.s32.totalorder %s32, 1
      %p284 = por %p282, %p283
      %p285 = scmp.ne.s32.totalorder %s276, %s277
      %p286 = scmp.eq.s32.totalorder %s32, 0
      %p287 = por %p285, %p286
      %p288 = scmp.ne.s32.totalorder %s276, %s277
      %p289 = scmp.eq.s32.totalorder %s33, 1
      %p290 = por %p288, %p289
      %p292 = scmp.ne.s32.totalorder %s277, %s291
      %p293 = scmp.eq.s32.totalorder %s33, 0
      %p294 = por %p292, %p293
      %s295 = ssub.s32 %s34, %s46
      %s296 = ssub.s32 %s35, %s42
      %s297 = sor.u32 %s295, %s296
      %p298 = scmp.eq.s32.totalorder %s297, 0
      %s300 = sadd.s32 %s299, 1
      %s301 = scalar_select %p298, %s299, %s300
      %p304 = pneg %p298
      %p305 = scmp.eq.s32.totalorder %s27, 1
      %p306 = por %p304, %p305
      %p307 = scmp.ne.s32.totalorder %s299, %s302
      %p308 = scmp.eq.s32.totalorder %s27, 0
      %p309 = por %p307, %p308
      %p310 = scmp.ne.s32.totalorder %s299, %s302
      %p311 = scmp.eq.s32.totalorder %s32, 1
      %p312 = por %p310, %p311
      %p313 = scmp.ne.s32.totalorder %s302, %s303
      %p314 = scmp.eq.s32.totalorder %s32, 0
      %p315 = por %p313, %p314
      %p316 = scmp.ne.s32.totalorder %s302, %s303
      %p317 = scmp.eq.s32.totalorder %s33, 1
      %p318 = por %p316, %p317
      %p320 = scmp.ne.s32.totalorder %s303, %s319
      %p321 = scmp.eq.s32.totalorder %s33, 0
      %p322 = por %p320, %p321
      %s323 = ssub.s32 %s34, %s46
      %s324 = ssub.s32 %s35, %s42
      %s325 = sor.u32 %s323, %s324
      %p326 = scmp.eq.s32.totalorder %s325, 0
      %s328 = sadd.s32 %s327, 1
      %s329 = scalar_select %p326, %s327, %s328
      %p332 = pneg %p326
      %p333 = scmp.eq.s32.totalorder %s27, 1
      %p334 = por %p332, %p333
      %p335 = scmp.ne.s32.totalorder %s327, %s330
      %p336 = scmp.eq.s32.totalorder %s27, 0
      %p337 = por %p335, %p336
      %p338 = scmp.ne.s32.totalorder %s327, %s330
      %p339 = scmp.eq.s32.totalorder %s32, 1
      %p340 = por %p338, %p339
      %p341 = scmp.ne.s32.totalorder %s330, %s331
      %p342 = scmp.eq.s32.totalorder %s32, 0
      %p343 = por %p341, %p342
      %p344 = scmp.ne.s32.totalorder %s330, %s331
      %p345 = scmp.eq.s32.totalorder %s33, 1
      %p346 = por %p344, %p345
      %p348 = scmp.ne.s32.totalorder %s331, %s347
      %p349 = scmp.eq.s32.totalorder %s33, 0
      %p350 = por %p348, %p349
      %p351 = scmp.le.s32.totalorder 1, %s27
      %p352 = scmp.lt.s32.totalorder %s27, 3
      %p353 = pnand %p351, %p352
      %p354 = pneg %p353
      // Predicated region
      $region9: #{tpu_custom_call.1} parent=5 // pred_check
        _
      $region10: #{tpu_custom_call.1} parent=5 // pred_check_branch
        %356 = sbr.rel (%p353) target = $region12
      $region11: #{tpu_custom_call.1} parent=5 // pred_region
        %s357 = ssub.s32 %s27, 1
        // Predicated region
        $region13: #{tpu_custom_call.1} parent=11 // pred_check
          %p358 = pneg %p119
        $region14: #{tpu_custom_call.1} parent=11 // pred_check_branch
          %360 = sbr.rel (%p358) target = $region16
        $region15: #{tpu_custom_call.1} parent=11 // pred_region
          %s361 = smul.u32 2, %s37
          %p362 = scmp.lt.s32.totalorder %s361, 1
          %s363 = scalar_select %p362, %s361, 1
          %s364 = smul.addr %s363, 8
          %s365 = scalar_lea.vmem %s2, %s364
          %s366 = smul.u32 2, %s37
        $region16: #{tpu_custom_call.1} parent=11 // pred_fallthru
          _
        // Predicated region
        $region17: #{tpu_custom_call.1} parent=11 // pred_check
          %p367 = pneg %p140
        $region18: #{tpu_custom_call.1} parent=11 // pred_check_branch
          %369 = sbr.rel (%p367) target = $region20
        $region19: #{tpu_custom_call.1} parent=11 // pred_region
          _
        $region20: #{tpu_custom_call.1} parent=11 // pred_fallthru
          _
        // Predicated region
        $region21: #{tpu_custom_call.1} parent=11 // pred_check
          %p370 = pneg %p161
        $region22: #{tpu_custom_call.1} parent=11 // pred_check_branch
          %372 = sbr.rel (%p370) target = $region24
        $region23: #{tpu_custom_call.1} parent=11 // pred_region
          _
        $region24: #{tpu_custom_call.1} parent=11 // pred_fallthru
          _
        // Predicated region
        $region25: #{tpu_custom_call.1} parent=11 // pred_check
          %p373 = pneg %p182
        $region26: #{tpu_custom_call.1} parent=11 // pred_check_branch
          %375 = sbr.rel (%p373) target = $region28
        $region27: #{tpu_custom_call.1} parent=11 // pred_region
          _
        $region28: #{tpu_custom_call.1} parent=11 // pred_fallthru
          _
        // Predicated region
        $region29: #{tpu_custom_call.1} parent=11 // pred_check
          %p376 = pneg %p203
        $region30: #{tpu_custom_call.1} parent=11 // pred_check_branch
          %378 = sbr.rel (%p376) target = $region32
        $region31: #{tpu_custom_call.1} parent=11 // pred_region
          _
        $region32: #{tpu_custom_call.1} parent=11 // pred_fallthru
          _
        // Predicated region
        $region33: #{tpu_custom_call.1} parent=11 // pred_check
          %p379 = pneg %p224
        $region34: #{tpu_custom_call.1} parent=11 // pred_check_branch
          %381 = sbr.rel (%p379) target = $region36
        $region35: #{tpu_custom_call.1} parent=11 // pred_region
          _
        $region36: #{tpu_custom_call.1} parent=11 // pred_fallthru
          _
        // Predicated region
        $region37: #{tpu_custom_call.1} parent=11 // pred_check
          %p382 = pneg %p245
        $region38: #{tpu_custom_call.1} parent=11 // pred_check_branch
          %384 = sbr.rel (%p382) target = $region40
        $region39: #{tpu_custom_call.1} parent=11 // pred_region
          _
        $region40: #{tpu_custom_call.1} parent=11 // pred_fallthru
          _
        // Predicated region
        $region41: #{tpu_custom_call.1} parent=11 // pred_check
          %p385 = pneg %p266
        $region42: #{tpu_custom_call.1} parent=11 // pred_check_branch
          %387 = sbr.rel (%p385) target = $region44
        $region43: #{tpu_custom_call.1} parent=11 // pred_region
          _
        $region44: #{tpu_custom_call.1} parent=11 // pred_fallthru
          _
        // Predicated region
        $region45: #{tpu_custom_call.1} parent=11 // pred_check
          %p388 = pneg %p287
        $region46: #{tpu_custom_call.1} parent=11 // pred_check_branch
          %390 = sbr.rel (%p388) target = $region48
        $region47: #{tpu_custom_call.1} parent=11 // pred_region
          _
        $region48: #{tpu_custom_call.1} parent=11 // pred_fallthru
          _
      $region12: #{tpu_custom_call.1} parent=5 // pred_fallthru
        _
      %p391 = scmp.lt.s32.totalorder %s27, 2
      // Predicated region
      $region49: #{tpu_custom_call.1} parent=5 // pred_check
        %p392 = pneg %p391
      $region50: #{tpu_custom_call.1} parent=5 // pred_check_branch
        %394 = sbr.rel (%p392) target = $region52
      $region51: #{tpu_custom_call.1} parent=5 // pred_region
        // Predicated region
        $region53: #{tpu_custom_call.1} parent=51 // pred_check
          %p395 = pneg %p61
        $region54: #{tpu_custom_call.1} parent=51 // pred_check_branch
          %397 = sbr.rel (%p395) target = $region56
        $region55: #{tpu_custom_call.1} parent=51 // pred_region
          %s398 = smul.u32 2, %s35
          %p399 = scmp.lt.s32.totalorder %s34, 1
          %s400 = scalar_select %p399, %s34, 1
          %p401 = scmp.lt.s32.totalorder %s398, 1
          %s402 = scalar_select %p401, %s398, 1
          %s403 = smul.addr %s400, 2
          %s404 = sadd.s32 %s402, %s403
          %s405 = smul.addr %s404, 4
          %s406 = scalar_lea.vmem %s0, %s405
          %s407 = smul.u32 2, %s35
        $region56: #{tpu_custom_call.1} parent=51 // pred_fallthru
          _
        // Predicated region
        $region57: #{tpu_custom_call.1} parent=51 // pred_check
          %p408 = pneg %p87
        $region58: #{tpu_custom_call.1} parent=51 // pred_check_branch
          %410 = sbr.rel (%p408) target = $region60
        $region59: #{tpu_custom_call.1} parent=51 // pred_region
          %p411 = scmp.lt.s32.totalorder %s34, 1
          %s412 = scalar_select %p411, %s34, 1
          %s413 = smul.addr %s412, 16
          %s414 = smul.addr %s413, 4
          %s415 = scalar_lea.vmem %s1, %s414
        $region60: #{tpu_custom_call.1} parent=51 // pred_fallthru
          _
      $region52: #{tpu_custom_call.1} parent=5 // pred_fallthru
        _
      %p416 = scmp.le.s32.totalorder 1, %s27
      %p417 = scmp.lt.s32.totalorder %s27, 3
      %p418 = pnand %p416, %p417
      %p419 = pneg %p418
      // Predicated region
      $region61: #{tpu_custom_call.1} parent=5 // pred_check
        _
      $region62: #{tpu_custom_call.1} parent=5 // pred_check_branch
        %421 = sbr.rel (%p418) target = $region64
      $region63: #{tpu_custom_call.1} parent=5 // pred_region
        %s422 = ssub.s32 %s27, 1
        %s423 = smul.u32 2, %s37
        %p424 = scmp.lt.s32.totalorder %s36, 1
        %s425 = scalar_select %p424, %s36, 1
        %p426 = scmp.lt.s32.totalorder %s423, 1
        %s427 = scalar_select %p426, %s423, 1
        %s428 = smul.addr %s425, 2
        %s429 = sadd.s32 %s427, %s428
        %s430 = smul.addr %s429, 4
        %s431 = scalar_lea.vmem %s0, %s430
        %p432 = pneg %p67
        %p433 = pneg %p64
        %p434 = scmp.lt.s32.totalorder %s36, 1
        %s435 = scalar_select %p434, %s36, 1
        %s436 = smul.addr %s435, 16
        %s437 = smul.addr %s436, 4
        %s438 = scalar_lea.vmem %s1, %s437
        %p439 = pneg %p93
        %p440 = pneg %p90
        %s441 = smul.u32 2, %s37
        %p442 = scmp.lt.s32.totalorder %s441, 1
        %s443 = scalar_select %p442, %s441, 1
        %s444 = smul.addr %s443, 8
        %s445 = scalar_lea.vmem %s2, %s444
        %p446 = pneg %p119
        %p447 = pneg %p116
        %p448 = pneg %p140
        %p449 = pneg %p137
        %p450 = pneg %p161
        %p451 = pneg %p158
        %p452 = pneg %p182
        %p453 = pneg %p179
        %p454 = pneg %p203
        %p455 = pneg %p200
        %p456 = pneg %p224
        %p457 = pneg %p221
        %p458 = pneg %p245
        %p459 = pneg %p242
        %p460 = pneg %p266
        %p461 = pneg %p263
        %p462 = pneg %p287
        %p463 = pneg %p284
        %p464 = pneg %p315
        %p465 = pneg %p312
        %s466 = sand.u32 %s302, 1
        %s467 = scalar_lea.sflag [#allocation5], %s466
        %s468 = sand.u32 %s302, 1
        %s469 = smul.addr %s468, 16
        %s470 = scalar_lea.vmem [#allocation4], %s469
        %p471 = pneg %p343
        %p472 = pneg %p340
        %s473 = sand.u32 %s330, 1
        %s474 = scalar_lea.sflag [#allocation7], %s473
        %s475 = sand.u32 %s330, 1
        %s476 = smul.addr %s475, 2
        %s477 = scalar_lea.vmem [#allocation6], %s476
        %s478 = smul.u32 2, %s37
        %p479 = scmp.lt.s32.totalorder %s36, 1
        %s480 = scalar_select %p479, %s36, 1
        %p481 = scmp.lt.s32.totalorder %s478, 1
        %s482 = scalar_select %p481, %s478, 1
        %s483 = smul.addr %s480, 2
        %s484 = sadd.s32 %s482, %s483
        %s485 = smul.addr %s484, 4
        %s486 = scalar_lea.vmem %s0, %s485
        %s487 = smul.u32 2, %s37
        %p488 = scmp.lt.s32.totalorder %s36, 1
        %s489 = scalar_select %p488, %s36, 1
        %s490 = smul.addr %s489, 16
        %s491 = smul.addr %s490, 4
        %s492 = scalar_lea.vmem %s1, %s491
        %s493 = smul.u32 2, %s37
        %p494 = scmp.lt.s32.totalorder %s493, 1
        %s495 = scalar_select %p494, %s493, 1
        %s496 = smul.addr %s495, 8
        %s497 = scalar_lea.vmem %s2, %s496
        %s498 = smul.u32 2, %s37
        %s499 = smul.u32 2, %s37
        %s500 = smul.u32 2, %s37
        %v502 = vld [vmem:[%s486] sm:$0xff]
        %v503 = vld [vmem:[%s492] sm:$0xf]
        %v504 = vld [vmem:[%s492 + $0x4] sm:$0xf]
        %v505 = vld [vmem:[%s492 + $0x8] sm:$0xf]
        %v506 = vld [vmem:[%s492 + $0xc] sm:$0xf]
        %v507 = vld [vmem:[%s492 + $0x10] sm:$0xf]
        %v508 = vld [vmem:[%s492 + $0x14] sm:$0xf]
        %v509 = vld [vmem:[%s492 + $0x18] sm:$0xf]
        %v510 = vld [vmem:[%s492 + $0x1c] sm:$0xf]
        %v511 = vld [vmem:[%s492 + $0x20] sm:$0xf]
        %v512 = vld [vmem:[%s492 + $0x24] sm:$0xf]
        %v513 = vld [vmem:[%s492 + $0x28] sm:$0xf]
        %v514 = vld [vmem:[%s492 + $0x2c] sm:$0xf]
        %v515 = vld [vmem:[%s492 + $0x30] sm:$0xf]
        %v516 = vld [vmem:[%s492 + $0x34] sm:$0xf]
        %v517 = vld [vmem:[%s492 + $0x38] sm:$0xf]
        %v518 = vld [vmem:[%s492 + $0x3c] sm:$0xf]
        %v519 = vunpack.c.l.bf16 %v503
        %v520 = vunpack.c.l.bf16 %v504
        %v521 = vunpack.c.l.bf16 %v505
        %v522 = vunpack.c.l.bf16 %v506
        %v523 = vunpack.c.l.bf16 %v507
        %v524 = vunpack.c.l.bf16 %v508
        %v525 = vunpack.c.l.bf16 %v509
        %v526 = vunpack.c.l.bf16 %v510
        %v527 = vunpack.c.l.bf16 %v511
        %v528 = vunpack.c.l.bf16 %v512
        %v529 = vunpack.c.l.bf16 %v513
        %v530 = vunpack.c.l.bf16 %v514
        %v531 = vunpack.c.l.bf16 %v515
        %v532 = vunpack.c.l.bf16 %v516
        %v533 = vunpack.c.l.bf16 %v517
        %v534 = vunpack.c.l.bf16 %v518
        %v535 = vld [vmem:[%s3] sm:$0xff]
        %vm536 = vcmask 64512
        %v538 = vsel %vm536, %v519, 0
        %v541 = vsel %vm536, %v520, 0
        %v544 = vsel %vm536, %v521, 0
        %v547 = vsel %vm536, %v522, 0
        %v550 = vsel %vm536, %v523, 0
        %v553 = vsel %vm536, %v524, 0
        %v556 = vsel %vm536, %v525, 0
        %v559 = vsel %vm536, %v526, 0
        %v562 = vsel %vm536, %v527, 0
        %v565 = vsel %vm536, %v528, 0
        %v568 = vsel %vm536, %v529, 0
        %v571 = vsel %vm536, %v530, 0
        %v574 = vsel %vm536, %v531, 0
        %v577 = vsel %vm536, %v532, 0
        %v580 = vsel %vm536, %v533, 0
        %v583 = vsel %vm536, %v534, 0
        %585 = vmatprep.subr.mxu0 0.0
        %586 = vmatpush1.msra.mxu0 %v535
        %587 = vmatprep.subr.mxu0 0.0
        %588 = vmatpush1.msra.mxu0 0.0
        %589 = vmatprep.subr.mxu0 0.0
        %590 = vmatpush1.msra.mxu0 0.0
        %591 = vmatprep.subr.mxu0 0.0
        %592 = vmatpush1.msra.mxu0 0.0
        %593 = vmatprep.subr.mxu0 0.0
        %594 = vmatpush1.msra.mxu0 0.0
        %595 = vmatprep.subr.mxu0 0.0
        %596 = vmatpush1.msra.mxu0 0.0
        %597 = vmatprep.subr.mxu0 0.0
        %598 = vmatpush1.msra.mxu0 0.0
        %599 = vmatprep.subr.mxu0 0.0
        %600 = vmatpush1.msra.mxu0 0.0
        %601 = vmatprep.subr.mxu0 0.0
        %602 = vmatpush1.msra.mxu0 0.0
        %603 = vmatprep.subr.mxu0 0.0
        %604 = vmatpush1.msra.mxu0 0.0
        %605 = vmatprep.subr.mxu0 0.0
        %606 = vmatpush1.msra.mxu0 0.0
        %607 = vmatprep.subr.mxu0 0.0
        %608 = vmatpush1.msra.mxu0 0.0
        %609 = vmatprep.subr.mxu0 0.0
        %610 = vmatpush1.msra.mxu0 0.0
        %611 = vmatprep.subr.mxu0 0.0
        %612 = vmatpush1.msra.mxu0 0.0
        %613 = vmatprep.subr.mxu0 0.0
        %614 = vmatpush1.msra.mxu0 0.0
        %615 = vmatprep.subr.mxu0 0.0
        %616 = vmatpush1.msra.mxu0 0.0
        %617 = vmatprep.subr.mxu0 0.0
        %618 = vmatpush1.msra.mxu0 0.0
        %619 = vmatprep.subr.mxu0 0.0
        %620 = vmatpush1.msra.mxu0 0.0
        %621 = vmatprep.subr.mxu0 0.0
        %622 = vmatpush1.msra.mxu0 0.0
        %623 = vmatprep.subr.mxu0 0.0
        %624 = vmatpush1.msra.mxu0 0.0
        %625 = vmatprep.subr.mxu0 0.0
        %626 = vmatpush1.msra.mxu0 0.0
        %627 = vmatprep.subr.mxu0 0.0
        %628 = vmatpush1.msra.mxu0 0.0
        %629 = vmatprep.subr.mxu0 0.0
        %630 = vmatpush1.msra.mxu0 0.0
        %631 = vmatprep.subr.mxu0 0.0
        %632 = vmatpush1.msra.mxu0 0.0
        %633 = vmatprep.subr.mxu0 0.0
        %634 = vmatpush1.msra.mxu0 0.0
        %635 = vmatprep.subr.mxu0 0.0
        %636 = vmatpush1.msra.mxu0 0.0
        %637 = vmatprep.subr.mxu0 0.0
        %638 = vmatpush1.msra.mxu0 0.0
        %639 = vmatprep.subr.mxu0 0.0
        %640 = vmatpush1.msra.mxu0 0.0
        %641 = vmatprep.subr.mxu0 0.0
        %642 = vmatpush1.msra.mxu0 0.0
        %643 = vmatprep.subr.mxu0 0.0
        %644 = vmatpush1.msra.mxu0 0.0
        %645 = vmatprep.subr.mxu0 0.0
        %646 = vmatpush1.msra.mxu0 0.0
        %647 = vmatprep.subr.mxu0 0.0
        %648 = vmatpush1.msra.mxu0 0.0
        %649 = vmatprep.mubr.f32.mxu0 0.0
        %650 = vmatmul.mubr.f32.gmra.mrb[0].mxu0 %v538
        %v651 = vpop.f32.mrb[0].mxu0
        %v652 = vadd.f32 0.0, %v651
        %v653 = vpop.f32.mrb[0].mxu0
        %654 = vmatprep.mubr.f32.mxu0 0.0
        %655 = vmatmul.mubr.f32.gmra.mrb[0].mxu0 %v541
        %v656 = vpop.f32.mrb[0].mxu0
        %v657 = vadd.f32 0.0, %v656
        %v658 = vpop.f32.mrb[0].mxu0
        %659 = vmatprep.mubr.f32.mxu0 0.0
        %660 = vmatmul.mubr.f32.gmra.mrb[0].mxu0 %v544
        %v661 = vpop.f32.mrb[0].mxu0
        %v662 = vadd.f32 0.0, %v661
        %v663 = vpop.f32.mrb[0].mxu0
        %664 = vmatprep.mubr.f32.mxu0 0.0
        %665 = vmatmul.mubr.f32.gmra.mrb[0].mxu0 %v547
        %v666 = vpop.f32.mrb[0].mxu0
        %v667 = vadd.f32 0.0, %v666
        %v668 = vpop.f32.mrb[0].mxu0
        %669 = vmatprep.mubr.f32.mxu0 0.0
        %670 = vmatmul.mubr.f32.gmra.mrb[0].mxu0 %v550
        %v671 = vpop.f32.mrb[0].mxu0
        %v672 = vadd.f32 0.0, %v671
        %v673 = vpop.f32.mrb[0].mxu0
        %674 = vmatprep.mubr.f32.mxu0 0.0
        %675 = vmatmul.mubr.f32.gmra.mrb[0].mxu0 %v553
        %v676 = vpop.f32.mrb[0].mxu0
        %v677 = vadd.f32 0.0, %v676
        %v678 = vpop.f32.mrb[0].mxu0
        %679 = vmatprep.mubr.f32.mxu0 0.0
        %680 = vmatmul.mubr.f32.gmra.mrb[0].mxu0 %v556
        %v681 = vpop.f32.mrb[0].mxu0
        %v682 = vadd.f32 0.0, %v681
        %v683 = vpop.f32.mrb[0].mxu0
        %684 = vmatprep.mubr.f32.mxu0 0.0
        %685 = vmatmul.mubr.f32.gmra.mrb[0].mxu0 %v559
        %v686 = vpop.f32.mrb[0].mxu0
        %v687 = vadd.f32 0.0, %v686
        %v688 = vpop.f32.mrb[0].mxu0
        %689 = vmatprep.mubr.f32.mxu0 0.0
        %690 = vmatmul.mubr.f32.gmra.mrb[0].mxu0 %v562
        %v691 = vpop.f32.mrb[0].mxu0
        %v692 = vadd.f32 0.0, %v691
        %v693 = vpop.f32.mrb[0].mxu0
        %694 = vmatprep.mubr.f32.mxu0 0.0
        %695 = vmatmul.mubr.f32.gmra.mrb[0].mxu0 %v565
        %v696 = vpop.f32.mrb[0].mxu0
        %v697 = vadd.f32 0.0, %v696
        %v698 = vpop.f32.mrb[0].mxu0
        %699 = vmatprep.mubr.f32.mxu0 0.0
        %700 = vmatmul.mubr.f32.gmra.mrb[0].mxu0 %v568
        %v701 = vpop.f32.mrb[0].mxu0
        %v702 = vadd.f32 0.0, %v701
        %v703 = vpop.f32.mrb[0].mxu0
        %704 = vmatprep.mubr.f32.mxu0 0.0
        %705 = vmatmul.mubr.f32.gmra.mrb[0].mxu0 %v571
        %v706 = vpop.f32.mrb[0].mxu0
        %v707 = vadd.f32 0.0, %v706
        %v708 = vpop.f32.mrb[0].mxu0
        %709 = vmatprep.mubr.f32.mxu0 0.0
        %710 = vmatmul.mubr.f32.gmra.mrb[0].mxu0 %v574
        %v711 = vpop.f32.mrb[0].mxu0
        %v712 = vadd.f32 0.0, %v711
        %v713 = vpop.f32.mrb[0].mxu0
        %714 = vmatprep.mubr.f32.mxu0 0.0
        %715 = vmatmul.mubr.f32.gmra.mrb[0].mxu0 %v577
        %v716 = vpop.f32.mrb[0].mxu0
        %v717 = vadd.f32 0.0, %v716
        %v718 = vpop.f32.mrb[0].mxu0
        %719 = vmatprep.mubr.f32.mxu0 0.0
        %720 = vmatmul.mubr.f32.gmra.mrb[0].mxu0 %v580
        %v721 = vpop.f32.mrb[0].mxu0
        %v722 = vadd.f32 0.0, %v721
        %v723 = vpop.f32.mrb[0].mxu0
        %724 = vmatprep.mubr.f32.mxu0 0.0
        %725 = vmatmul.mubr.f32.gmra.mrb[0].mxu0 %v583
        %v726 = vpop.f32.mrb[0].mxu0
        %v727 = vadd.f32 0.0, %v726
        %v728 = vpop.f32.mrb[0].mxu0
        %729 = vdwg.mxu0
        %v730 = vld [vmem:[%s497] sm:$0xff]
        %v731 = vld [vmem:[%s497 + $0x8] sm:$0xff]
        %v732 = vlaneseq
        %v733 = vshrl.u32 %v732, 7
        %v734 = vsub.s32 0, %v733
        %v735 = vrot.slane %v730, %v734
        %737 = vbcast.lane.b32.xlu0 %v735, 256
        %v738 = vpop.permute.xlu0 %737
        %v739 = vmul.f32 %v652, %v738
        %v740 = vmul.f32 %v657, %v738
        %v741 = vmul.f32 %v662, %v738
        %v742 = vmul.f32 %v667, %v738
        %v743 = vmul.f32 %v672, %v738
        %v744 = vmul.f32 %v677, %v738
        %v745 = vmul.f32 %v682, %v738
        %v746 = vmul.f32 %v687, %v738
        %v747 = vmul.f32 %v692, %v738
        %v748 = vmul.f32 %v697, %v738
        %v749 = vmul.f32 %v702, %v738
        %v750 = vmul.f32 %v707, %v738
        %v751 = vmul.f32 %v712, %v738
        %v752 = vmul.f32 %v717, %v738
        %v753 = vmul.f32 %v722, %v738
        %v754 = vmul.f32 %v727, %v738
        %vm755 = vcmask 130048
        %v756 = vsel %vm755, %v739, 0.0
        %v757 = vrot.slane %v756, 4
        %v758 = vadd.f32 %v756, %v757
        %v759 = vrot.slane %v758, 2
        %v760 = vadd.f32 %v758, %v759
        %v761 = vrot.slane %v760, 1
        %v762 = vadd.f32 %v760, %v761
        %v763 = vsel %vm755, %v740, 0.0
        %v764 = vrot.slane %v763, 4
        %v765 = vadd.f32 %v763, %v764
        %v766 = vrot.slane %v765, 2
        %v767 = vadd.f32 %v765, %v766
        %v768 = vrot.slane %v767, 1
        %v769 = vadd.f32 %v767, %v768
        %v770 = vsel %vm755, %v741, 0.0
        %v771 = vrot.slane %v770, 4
        %v772 = vadd.f32 %v770, %v771
        %v773 = vrot.slane %v772, 2
        %v774 = vadd.f32 %v772, %v773
        %v775 = vrot.slane %v774, 1
        %v776 = vadd.f32 %v774, %v775
        %v777 = vsel %vm755, %v742, 0.0
        %v778 = vrot.slane %v777, 4
        %v779 = vadd.f32 %v777, %v778
        %v780 = vrot.slane %v779, 2
        %v781 = vadd.f32 %v779, %v780
        %v782 = vrot.slane %v781, 1
        %v783 = vadd.f32 %v781, %v782
        %v784 = vsel %vm755, %v743, 0.0
        %v785 = vrot.slane %v784, 4
        %v786 = vadd.f32 %v784, %v785
        %v787 = vrot.slane %v786, 2
        %v788 = vadd.f32 %v786, %v787
        %v789 = vrot.slane %v788, 1
        %v790 = vadd.f32 %v788, %v789
        %v791 = vsel %vm755, %v744, 0.0
        %v792 = vrot.slane %v791, 4
        %v793 = vadd.f32 %v791, %v792
        %v794 = vrot.slane %v793, 2
        %v795 = vadd.f32 %v793, %v794
        %v796 = vrot.slane %v795, 1
        %v797 = vadd.f32 %v795, %v796
        %v798 = vsel %vm755, %v745, 0.0
        %v799 = vrot.slane %v798, 4
        %v800 = vadd.f32 %v798, %v799
        %v801 = vrot.slane %v800, 2
        %v802 = vadd.f32 %v800, %v801
        %v803 = vrot.slane %v802, 1
        %v804 = vadd.f32 %v802, %v803
        %v805 = vsel %vm755, %v746, 0.0
        %v806 = vrot.slane %v805, 4
        %v807 = vadd.f32 %v805, %v806
        %v808 = vrot.slane %v807, 2
        %v809 = vadd.f32 %v807, %v808
        %v810 = vrot.slane %v809, 1
        %v811 = vadd.f32 %v809, %v810
        %v812 = vsel %vm755, %v747, 0.0
        %v813 = vrot.slane %v812, 4
        %v814 = vadd.f32 %v812, %v813
        %v815 = vrot.slane %v814, 2
        %v816 = vadd.f32 %v814, %v815
        %v817 = vrot.slane %v816, 1
        %v818 = vadd.f32 %v816, %v817
        %v819 = vsel %vm755, %v748, 0.0
        %v820 = vrot.slane %v819, 4
        %v821 = vadd.f32 %v819, %v820
        %v822 = vrot.slane %v821, 2
        %v823 = vadd.f32 %v821, %v822
        %v824 = vrot.slane %v823, 1
        %v825 = vadd.f32 %v823, %v824
        %v826 = vsel %vm755, %v749, 0.0
        %v827 = vrot.slane %v826, 4
        %v828 = vadd.f32 %v826, %v827
        %v829 = vrot.slane %v828, 2
        %v830 = vadd.f32 %v828, %v829
        %v831 = vrot.slane %v830, 1
        %v832 = vadd.f32 %v830, %v831
        %v833 = vsel %vm755, %v750, 0.0
        %v834 = vrot.slane %v833, 4
        %v835 = vadd.f32 %v833, %v834
        %v836 = vrot.slane %v835, 2
        %v837 = vadd.f32 %v835, %v836
        %v838 = vrot.slane %v837, 1
        %v839 = vadd.f32 %v837, %v838
        %v840 = vsel %vm755, %v751, 0.0
        %v841 = vrot.slane %v840, 4
        %v842 = vadd.f32 %v840, %v841
        %v843 = vrot.slane %v842, 2
        %v844 = vadd.f32 %v842, %v843
        %v845 = vrot.slane %v844, 1
        %v846 = vadd.f32 %v844, %v845
        %v847 = vsel %vm755, %v752, 0.0
        %v848 = vrot.slane %v847, 4
        %v849 = vadd.f32 %v847, %v848
        %v850 = vrot.slane %v849, 2
        %v851 = vadd.f32 %v849, %v850
        %v852 = vrot.slane %v851, 1
        %v853 = vadd.f32 %v851, %v852
        %v854 = vsel %vm755, %v753, 0.0
        %v855 = vrot.slane %v854, 4
        %v856 = vadd.f32 %v854, %v855
        %v857 = vrot.slane %v856, 2
        %v858 = vadd.f32 %v856, %v857
        %v859 = vrot.slane %v858, 1
        %v860 = vadd.f32 %v858, %v859
        %v861 = vsel %vm755, %v754, 0.0
        %v862 = vrot.slane %v861, 4
        %v863 = vadd.f32 %v861, %v862
        %v864 = vrot.slane %v863, 2
        %v865 = vadd.f32 %v863, %v864
        %v866 = vrot.slane %v865, 1
        %v867 = vadd.f32 %v865, %v866
        %vm884 = vcmask 1041409
        %v885 = vsel %vm884, %v769, %v762
        %vm886 = vcmask 1042434
        %v887 = vsel %vm886, %v776, %v885
        %vm888 = vcmask 1043459
        %v889 = vsel %vm888, %v783, %v887
        %vm890 = vcmask 1044484
        %v891 = vsel %vm890, %v790, %v889
        %vm892 = vcmask 1045509
        %v893 = vsel %vm892, %v797, %v891
        %vm894 = vcmask 1046534
        %v895 = vsel %vm894, %v804, %v893
        %vm896 = vcmask 1047559
        %v897 = vsel %vm896, %v811, %v895
        %v898 = vsel %vm884, %v825, %v818
        %v899 = vsel %vm886, %v832, %v898
        %v900 = vsel %vm888, %v839, %v899
        %v901 = vsel %vm890, %v846, %v900
        %v902 = vsel %vm892, %v853, %v901
        %v903 = vsel %vm894, %v860, %v902
        %v904 = vsel %vm896, %v867, %v903
        %907 = vst.msk [vmem:[#allocation2] sm:$0xff] %vm755, %v897
        %908 = vst.msk [vmem:[#allocation2 + $0x10] sm:$0xff] %vm755, %v904
        %v909 = vlaneseq
        %v910 = vshrl.u32 %v909, 7
        %v911 = vsub.s32 1, %v910
        %v912 = vrot.slane %v730, %v911
        %914 = vbcast.lane.b32.xlu0 %v912, 256
        %v915 = vpop.permute.xlu0 %914
        %v916 = vmul.f32 %v652, %v915
        %v917 = vmul.f32 %v657, %v915
        %v918 = vmul.f32 %v662, %v915
        %v919 = vmul.f32 %v667, %v915
        %v920 = vmul.f32 %v672, %v915
        %v921 = vmul.f32 %v677, %v915
        %v922 = vmul.f32 %v682, %v915
        %v923 = vmul.f32 %v687, %v915
        %v924 = vmul.f32 %v692, %v915
        %v925 = vmul.f32 %v697, %v915
        %v926 = vmul.f32 %v702, %v915
        %v927 = vmul.f32 %v707, %v915
        %v928 = vmul.f32 %v712, %v915
        %v929 = vmul.f32 %v717, %v915
        %v930 = vmul.f32 %v722, %v915
        %v931 = vmul.f32 %v727, %v915
        %v932 = vsel %vm755, %v916, 0.0
        %v933 = vrot.slane %v932, 4
        %v934 = vadd.f32 %v932, %v933
        %v935 = vrot.slane %v934, 2
        %v936 = vadd.f32 %v934, %v935
        %v937 = vrot.slane %v936, 1
        %v938 = vadd.f32 %v936, %v937
        %v939 = vsel %vm755, %v917, 0.0
        %v940 = vrot.slane %v939, 4
        %v941 = vadd.f32 %v939, %v940
        %v942 = vrot.slane %v941, 2
        %v943 = vadd.f32 %v941, %v942
        %v944 = vrot.slane %v943, 1
        %v945 = vadd.f32 %v943, %v944
        %v946 = vsel %vm755, %v918, 0.0
        %v947 = vrot.slane %v946, 4
        %v948 = vadd.f32 %v946, %v947
        %v949 = vrot.slane %v948, 2
        %v950 = vadd.f32 %v948, %v949
        %v951 = vrot.slane %v950, 1
        %v952 = vadd.f32 %v950, %v951
        %v953 = vsel %vm755, %v919, 0.0
        %v954 = vrot.slane %v953, 4
        %v955 = vadd.f32 %v953, %v954
        %v956 = vrot.slane %v955, 2
        %v957 = vadd.f32 %v955, %v956
        %v958 = vrot.slane %v957, 1
        %v959 = vadd.f32 %v957, %v958
        %v960 = vsel %vm755, %v920, 0.0
        %v961 = vrot.slane %v960, 4
        %v962 = vadd.f32 %v960, %v961
        %v963 = vrot.slane %v962, 2
        %v964 = vadd.f32 %v962, %v963
        %v965 = vrot.slane %v964, 1
        %v966 = vadd.f32 %v964, %v965
        %v967 = vsel %vm755, %v921, 0.0
        %v968 = vrot.slane %v967, 4
        %v969 = vadd.f32 %v967, %v968
        %v970 = vrot.slane %v969, 2
        %v971 = vadd.f32 %v969, %v970
        %v972 = vrot.slane %v971, 1
        %v973 = vadd.f32 %v971, %v972
        %v974 = vsel %vm755, %v922, 0.0
        %v975 = vrot.slane %v974, 4
        %v976 = vadd.f32 %v974, %v975
        %v977 = vrot.slane %v976, 2
        %v978 = vadd.f32 %v976, %v977
        %v979 = vrot.slane %v978, 1
        %v980 = vadd.f32 %v978, %v979
        %v981 = vsel %vm755, %v923, 0.0
        %v982 = vrot.slane %v981, 4
        %v983 = vadd.f32 %v981, %v982
        %v984 = vrot.slane %v983, 2
        %v985 = vadd.f32 %v983, %v984
        %v986 = vrot.slane %v985, 1
        %v987 = vadd.f32 %v985, %v986
        %v988 = vsel %vm755, %v924, 0.0
        %v989 = vrot.slane %v988, 4
        %v990 = vadd.f32 %v988, %v989
        %v991 = vrot.slane %v990, 2
        %v992 = vadd.f32 %v990, %v991
        %v993 = vrot.slane %v992, 1
        %v994 = vadd.f32 %v992, %v993
        %v995 = vsel %vm755, %v925, 0.0
        %v996 = vrot.slane %v995, 4
        %v997 = vadd.f32 %v995, %v996
        %v998 = vrot.slane %v997, 2
        %v999 = vadd.f32 %v997, %v998
        %v1000 = vrot.slane %v999, 1
        %v1001 = vadd.f32 %v999, %v1000
        %v1002 = vsel %vm755, %v926, 0.0
        %v1003 = vrot.slane %v1002, 4
        %v1004 = vadd.f32 %v1002, %v1003
        %v1005 = vrot.slane %v1004, 2
        %v1006 = vadd.f32 %v1004, %v1005
        %v1007 = vrot.slane %v1006, 1
        %v1008 = vadd.f32 %v1006, %v1007
        %v1009 = vsel %vm755, %v927, 0.0
        %v1010 = vrot.slane %v1009, 4
        %v1011 = vadd.f32 %v1009, %v1010
        %v1012 = vrot.slane %v1011, 2
        %v1013 = vadd.f32 %v1011, %v1012
        %v1014 = vrot.slane %v1013, 1
        %v1015 = vadd.f32 %v1013, %v1014
        %v1016 = vsel %vm755, %v928, 0.0
        %v1017 = vrot.slane %v1016, 4
        %v1018 = vadd.f32 %v1016, %v1017
        %v1019 = vrot.slane %v1018, 2
        %v1020 = vadd.f32 %v1018, %v1019
        %v1021 = vrot.slane %v1020, 1
        %v1022 = vadd.f32 %v1020, %v1021
        %v1023 = vsel %vm755, %v929, 0.0
        %v1024 = vrot.slane %v1023, 4
        %v1025 = vadd.f32 %v1023, %v1024
        %v1026 = vrot.slane %v1025, 2
        %v1027 = vadd.f32 %v1025, %v1026
        %v1028 = vrot.slane %v1027, 1
        %v1029 = vadd.f32 %v1027, %v1028
        %v1030 = vsel %vm755, %v930, 0.0
        %v1031 = vrot.slane %v1030, 4
        %v1032 = vadd.f32 %v1030, %v1031
        %v1033 = vrot.slane %v1032, 2
        %v1034 = vadd.f32 %v1032, %v1033
        %v1035 = vrot.slane %v1034, 1
        %v1036 = vadd.f32 %v1034, %v1035
        %v1037 = vsel %vm755, %v931, 0.0
        %v1038 = vrot.slane %v1037, 4
        %v1039 = vadd.f32 %v1037, %v1038
        %v1040 = vrot.slane %v1039, 2
        %v1041 = vadd.f32 %v1039, %v1040
        %v1042 = vrot.slane %v1041, 1
        %v1043 = vadd.f32 %v1041, %v1042
        %v1060 = vsel %vm884, %v945, %v938
        %v1061 = vsel %vm886, %v952, %v1060
        %v1062 = vsel %vm888, %v959, %v1061
        %v1063 = vsel %vm890, %v966, %v1062
        %v1064 = vsel %vm892, %v973, %v1063
        %v1065 = vsel %vm894, %v980, %v1064
        %v1066 = vsel %vm896, %v987, %v1065
        %v1067 = vsel %vm884, %v1001, %v994
        %v1068 = vsel %vm886, %v1008, %v1067
        %v1069 = vsel %vm888, %v1015, %v1068
        %v1070 = vsel %vm890, %v1022, %v1069
        %v1071 = vsel %vm892, %v1029, %v1070
        %v1072 = vsel %vm894, %v1036, %v1071
        %v1073 = vsel %vm896, %v1043, %v1072
        %1074 = vrot.lane.b32.xlu0 %v1066, 16
        %v1075 = vpop.permute.xlu0 %1074
        %1076 = vrot.lane.b32.xlu0 %v1073, 16
        %v1077 = vpop.permute.xlu0 %1076
        %vm1080 = vcmask 261248
        %1081 = vst.msk [vmem:[#allocation2] sm:$0xff] %vm1080, %v1075
        %1082 = vst.msk [vmem:[#allocation2 + $0x10] sm:$0xff] %vm1080, %v1077
        %v1083 = vlaneseq
        %v1084 = vshrl.u32 %v1083, 7
        %v1085 = vsub.s32 2, %v1084
        %v1086 = vrot.slane %v730, %v1085
        %1088 = vbcast.lane.b32.xlu0 %v1086, 256
        %v1089 = vpop.permute.xlu0 %1088
        %v1090 = vmul.f32 %v652, %v1089
        %v1091 = vmul.f32 %v657, %v1089
        %v1092 = vmul.f32 %v662, %v1089
        %v1093 = vmul.f32 %v667, %v1089
        %v1094 = vmul.f32 %v672, %v1089
        %v1095 = vmul.f32 %v677, %v1089
        %v1096 = vmul.f32 %v682, %v1089
        %v1097 = vmul.f32 %v687, %v1089
        %v1098 = vmul.f32 %v692, %v1089
        %v1099 = vmul.f32 %v697, %v1089
        %v1100 = vmul.f32 %v702, %v1089
        %v1101 = vmul.f32 %v707, %v1089
        %v1102 = vmul.f32 %v712, %v1089
        %v1103 = vmul.f32 %v717, %v1089
        %v1104 = vmul.f32 %v722, %v1089
        %v1105 = vmul.f32 %v727, %v1089
        %v1106 = vsel %vm755, %v1090, 0.0
        %v1107 = vrot.slane %v1106, 4
        %v1108 = vadd.f32 %v1106, %v1107
        %v1109 = vrot.slane %v1108, 2
        %v1110 = vadd.f32 %v1108, %v1109
        %v1111 = vrot.slane %v1110, 1
        %v1112 = vadd.f32 %v1110, %v1111
        %v1113 = vsel %vm755, %v1091, 0.0
        %v1114 = vrot.slane %v1113, 4
        %v1115 = vadd.f32 %v1113, %v1114
        %v1116 = vrot.slane %v1115, 2
        %v1117 = vadd.f32 %v1115, %v1116
        %v1118 = vrot.slane %v1117, 1
        %v1119 = vadd.f32 %v1117, %v1118
        %v1120 = vsel %vm755, %v1092, 0.0
        %v1121 = vrot.slane %v1120, 4
        %v1122 = vadd.f32 %v1120, %v1121
        %v1123 = vrot.slane %v1122, 2
        %v1124 = vadd.f32 %v1122, %v1123
        %v1125 = vrot.slane %v1124, 1
        %v1126 = vadd.f32 %v1124, %v1125
        %v1127 = vsel %vm755, %v1093, 0.0
        %v1128 = vrot.slane %v1127, 4
        %v1129 = vadd.f32 %v1127, %v1128
        %v1130 = vrot.slane %v1129, 2
        %v1131 = vadd.f32 %v1129, %v1130
        %v1132 = vrot.slane %v1131, 1
        %v1133 = vadd.f32 %v1131, %v1132
        %v1134 = vsel %vm755, %v1094, 0.0
        %v1135 = vrot.slane %v1134, 4
        %v1136 = vadd.f32 %v1134, %v1135
        %v1137 = vrot.slane %v1136, 2
        %v1138 = vadd.f32 %v1136, %v1137
        %v1139 = vrot.slane %v1138, 1
        %v1140 = vadd.f32 %v1138, %v1139
        %v1141 = vsel %vm755, %v1095, 0.0
        %v1142 = vrot.slane %v1141, 4
        %v1143 = vadd.f32 %v1141, %v1142
        %v1144 = vrot.slane %v1143, 2
        %v1145 = vadd.f32 %v1143, %v1144
        %v1146 = vrot.slane %v1145, 1
        %v1147 = vadd.f32 %v1145, %v1146
        %v1148 = vsel %vm755, %v1096, 0.0
        %v1149 = vrot.slane %v1148, 4
        %v1150 = vadd.f32 %v1148, %v1149
        %v1151 = vrot.slane %v1150, 2
        %v1152 = vadd.f32 %v1150, %v1151
        %v1153 = vrot.slane %v1152, 1
        %v1154 = vadd.f32 %v1152, %v1153
        %v1155 = vsel %vm755, %v1097, 0.0
        %v1156 = vrot.slane %v1155, 4
        %v1157 = vadd.f32 %v1155, %v1156
        %v1158 = vrot.slane %v1157, 2
        %v1159 = vadd.f32 %v1157, %v1158
        %v1160 = vrot.slane %v1159, 1
        %v1161 = vadd.f32 %v1159, %v1160
        %v1162 = vsel %vm755, %v1098, 0.0
        %v1163 = vrot.slane %v1162, 4
        %v1164 = vadd.f32 %v1162, %v1163
        %v1165 = vrot.slane %v1164, 2
        %v1166 = vadd.f32 %v1164, %v1165
        %v1167 = vrot.slane %v1166, 1
        %v1168 = vadd.f32 %v1166, %v1167
        %v1169 = vsel %vm755, %v1099, 0.0
        %v1170 = vrot.slane %v1169, 4
        %v1171 = vadd.f32 %v1169, %v1170
        %v1172 = vrot.slane %v1171, 2
        %v1173 = vadd.f32 %v1171, %v1172
        %v1174 = vrot.slane %v1173, 1
        %v1175 = vadd.f32 %v1173, %v1174
        %v1176 = vsel %vm755, %v1100, 0.0
        %v1177 = vrot.slane %v1176, 4
        %v1178 = vadd.f32 %v1176, %v1177
        %v1179 = vrot.slane %v1178, 2
        %v1180 = vadd.f32 %v1178, %v1179
        %v1181 = vrot.slane %v1180, 1
        %v1182 = vadd.f32 %v1180, %v1181
        %v1183 = vsel %vm755, %v1101, 0.0
        %v1184 = vrot.slane %v1183, 4
        %v1185 = vadd.f32 %v1183, %v1184
        %v1186 = vrot.slane %v1185, 2
        %v1187 = vadd.f32 %v1185, %v1186
        %v1188 = vrot.slane %v1187, 1
        %v1189 = vadd.f32 %v1187, %v1188
        %v1190 = vsel %vm755, %v1102, 0.0
        %v1191 = vrot.slane %v1190, 4
        %v1192 = vadd.f32 %v1190, %v1191
        %v1193 = vrot.slane %v1192, 2
        %v1194 = vadd.f32 %v1192, %v1193
        %v1195 = vrot.slane %v1194, 1
        %v1196 = vadd.f32 %v1194, %v1195
        %v1197 = vsel %vm755, %v1103, 0.0
        %v1198 = vrot.slane %v1197, 4
        %v1199 = vadd.f32 %v1197, %v1198
        %v1200 = vrot.slane %v1199, 2
        %v1201 = vadd.f32 %v1199, %v1200
        %v1202 = vrot.slane %v1201, 1
        %v1203 = vadd.f32 %v1201, %v1202
        %v1204 = vsel %vm755, %v1104, 0.0
        %v1205 = vrot.slane %v1204, 4
        %v1206 = vadd.f32 %v1204, %v1205
        %v1207 = vrot.slane %v1206, 2
        %v1208 = vadd.f32 %v1206, %v1207
        %v1209 = vrot.slane %v1208, 1
        %v1210 = vadd.f32 %v1208, %v1209
        %v1211 = vsel %vm755, %v1105, 0.0
        %v1212 = vrot.slane %v1211, 4
        %v1213 = vadd.f32 %v1211, %v1212
        %v1214 = vrot.slane %v1213, 2
        %v1215 = vadd.f32 %v1213, %v1214
        %v1216 = vrot.slane %v1215, 1
        %v1217 = vadd.f32 %v1215, %v1216
        %v1234 = vsel %vm884, %v1119, %v1112
        %v1235 = vsel %vm886, %v1126, %v1234
        %v1236 = vsel %vm888, %v1133, %v1235
        %v1237 = vsel %vm890, %v1140, %v1236
        %v1238 = vsel %vm892, %v1147, %v1237
        %v1239 = vsel %vm894, %v1154, %v1238
        %v1240 = vsel %vm896, %v1161, %v1239
        %v1241 = vsel %vm884, %v1175, %v1168
        %v1242 = vsel %vm886, %v1182, %v1241
        %v1243 = vsel %vm888, %v1189, %v1242
        %v1244 = vsel %vm890, %v1196, %v1243
        %v1245 = vsel %vm892, %v1203, %v1244
        %v1246 = vsel %vm894, %v1210, %v1245
        %v1247 = vsel %vm896, %v1217, %v1246
        %1248 = vrot.lane.b32.xlu0 %v1240, 32
        %v1249 = vpop.permute.xlu0 %1248
        %1250 = vrot.lane.b32.xlu0 %v1247, 32
        %v1251 = vpop.permute.xlu0 %1250
        %vm1254 = vcmask 392448
        %1255 = vst.msk [vmem:[#allocation2] sm:$0xff] %vm1254, %v1249
        %1256 = vst.msk [vmem:[#allocation2 + $0x10] sm:$0xff] %vm1254, %v1251
        %v1257 = vlaneseq
        %v1258 = vshrl.u32 %v1257, 7
        %v1259 = vsub.s32 3, %v1258
        %v1260 = vrot.slane %v730, %v1259
        %1262 = vbcast.lane.b32.xlu0 %v1260, 256
        %v1263 = vpop.permute.xlu0 %1262
        %v1264 = vmul.f32 %v652, %v1263
        %v1265 = vmul.f32 %v657, %v1263
        %v1266 = vmul.f32 %v662, %v1263
        %v1267 = vmul.f32 %v667, %v1263
        %v1268 = vmul.f32 %v672, %v1263
        %v1269 = vmul.f32 %v677, %v1263
        %v1270 = vmul.f32 %v682, %v1263
        %v1271 = vmul.f32 %v687, %v1263
        %v1272 = vmul.f32 %v692, %v1263
        %v1273 = vmul.f32 %v697, %v1263
        %v1274 = vmul.f32 %v702, %v1263
        %v1275 = vmul.f32 %v707, %v1263
        %v1276 = vmul.f32 %v712, %v1263
        %v1277 = vmul.f32 %v717, %v1263
        %v1278 = vmul.f32 %v722, %v1263
        %v1279 = vmul.f32 %v727, %v1263
        %v1280 = vsel %vm755, %v1264, 0.0
        %v1281 = vrot.slane %v1280, 4
        %v1282 = vadd.f32 %v1280, %v1281
        %v1283 = vrot.slane %v1282, 2
        %v1284 = vadd.f32 %v1282, %v1283
        %v1285 = vrot.slane %v1284, 1
        %v1286 = vadd.f32 %v1284, %v1285
        %v1287 = vsel %vm755, %v1265, 0.0
        %v1288 = vrot.slane %v1287, 4
        %v1289 = vadd.f32 %v1287, %v1288
        %v1290 = vrot.slane %v1289, 2
        %v1291 = vadd.f32 %v1289, %v1290
        %v1292 = vrot.slane %v1291, 1
        %v1293 = vadd.f32 %v1291, %v1292
        %v1294 = vsel %vm755, %v1266, 0.0
        %v1295 = vrot.slane %v1294, 4
        %v1296 = vadd.f32 %v1294, %v1295
        %v1297 = vrot.slane %v1296, 2
        %v1298 = vadd.f32 %v1296, %v1297
        %v1299 = vrot.slane %v1298, 1
        %v1300 = vadd.f32 %v1298, %v1299
        %v1301 = vsel %vm755, %v1267, 0.0
        %v1302 = vrot.slane %v1301, 4
        %v1303 = vadd.f32 %v1301, %v1302
        %v1304 = vrot.slane %v1303, 2
        %v1305 = vadd.f32 %v1303, %v1304
        %v1306 = vrot.slane %v1305, 1
        %v1307 = vadd.f32 %v1305, %v1306
        %v1308 = vsel %vm755, %v1268, 0.0
        %v1309 = vrot.slane %v1308, 4
        %v1310 = vadd.f32 %v1308, %v1309
        %v1311 = vrot.slane %v1310, 2
        %v1312 = vadd.f32 %v1310, %v1311
        %v1313 = vrot.slane %v1312, 1
        %v1314 = vadd.f32 %v1312, %v1313
        %v1315 = vsel %vm755, %v1269, 0.0
        %v1316 = vrot.slane %v1315, 4
        %v1317 = vadd.f32 %v1315, %v1316
        %v1318 = vrot.slane %v1317, 2
        %v1319 = vadd.f32 %v1317, %v1318
        %v1320 = vrot.slane %v1319, 1
        %v1321 = vadd.f32 %v1319, %v1320
        %v1322 = vsel %vm755, %v1270, 0.0
        %v1323 = vrot.slane %v1322, 4
        %v1324 = vadd.f32 %v1322, %v1323
        %v1325 = vrot.slane %v1324, 2
        %v1326 = vadd.f32 %v1324, %v1325
        %v1327 = vrot.slane %v1326, 1
        %v1328 = vadd.f32 %v1326, %v1327
        %v1329 = vsel %vm755, %v1271, 0.0
        %v1330 = vrot.slane %v1329, 4
        %v1331 = vadd.f32 %v1329, %v1330
        %v1332 = vrot.slane %v1331, 2
        %v1333 = vadd.f32 %v1331, %v1332
        %v1334 = vrot.slane %v1333, 1
        %v1335 = vadd.f32 %v1333, %v1334
        %v1336 = vsel %vm755, %v1272, 0.0
        %v1337 = vrot.slane %v1336, 4
        %v1338 = vadd.f32 %v1336, %v1337
        %v1339 = vrot.slane %v1338, 2
        %v1340 = vadd.f32 %v1338, %v1339
        %v1341 = vrot.slane %v1340, 1
        %v1342 = vadd.f32 %v1340, %v1341
        %v1343 = vsel %vm755, %v1273, 0.0
        %v1344 = vrot.slane %v1343, 4
        %v1345 = vadd.f32 %v1343, %v1344
        %v1346 = vrot.slane %v1345, 2
        %v1347 = vadd.f32 %v1345, %v1346
        %v1348 = vrot.slane %v1347, 1
        %v1349 = vadd.f32 %v1347, %v1348
        %v1350 = vsel %vm755, %v1274, 0.0
        %v1351 = vrot.slane %v1350, 4
        %v1352 = vadd.f32 %v1350, %v1351
        %v1353 = vrot.slane %v1352, 2
        %v1354 = vadd.f32 %v1352, %v1353
        %v1355 = vrot.slane %v1354, 1
        %v1356 = vadd.f32 %v1354, %v1355
        %v1357 = vsel %vm755, %v1275, 0.0
        %v1358 = vrot.slane %v1357, 4
        %v1359 = vadd.f32 %v1357, %v1358
        %v1360 = vrot.slane %v1359, 2
        %v1361 = vadd.f32 %v1359, %v1360
        %v1362 = vrot.slane %v1361, 1
        %v1363 = vadd.f32 %v1361, %v1362
        %v1364 = vsel %vm755, %v1276, 0.0
        %v1365 = vrot.slane %v1364, 4
        %v1366 = vadd.f32 %v1364, %v1365
        %v1367 = vrot.slane %v1366, 2
        %v1368 = vadd.f32 %v1366, %v1367
        %v1369 = vrot.slane %v1368, 1
        %v1370 = vadd.f32 %v1368, %v1369
        %v1371 = vsel %vm755, %v1277, 0.0
        %v1372 = vrot.slane %v1371, 4
        %v1373 = vadd.f32 %v1371, %v1372
        %v1374 = vrot.slane %v1373, 2
        %v1375 = vadd.f32 %v1373, %v1374
        %v1376 = vrot.slane %v1375, 1
        %v1377 = vadd.f32 %v1375, %v1376
        %v1378 = vsel %vm755, %v1278, 0.0
        %v1379 = vrot.slane %v1378, 4
        %v1380 = vadd.f32 %v1378, %v1379
        %v1381 = vrot.slane %v1380, 2
        %v1382 = vadd.f32 %v1380, %v1381
        %v1383 = vrot.slane %v1382, 1
        %v1384 = vadd.f32 %v1382, %v1383
        %v1385 = vsel %vm755, %v1279, 0.0
        %v1386 = vrot.slane %v1385, 4
        %v1387 = vadd.f32 %v1385, %v1386
        %v1388 = vrot.slane %v1387, 2
        %v1389 = vadd.f32 %v1387, %v1388
        %v1390 = vrot.slane %v1389, 1
        %v1391 = vadd.f32 %v1389, %v1390
        %v1408 = vsel %vm884, %v1293, %v1286
        %v1409 = vsel %vm886, %v1300, %v1408
        %v1410 = vsel %vm888, %v1307, %v1409
        %v1411 = vsel %vm890, %v1314, %v1410
        %v1412 = vsel %vm892, %v1321, %v1411
        %v1413 = vsel %vm894, %v1328, %v1412
        %v1414 = vsel %vm896, %v1335, %v1413
        %v1415 = vsel %vm884, %v1349, %v1342
        %v1416 = vsel %vm886, %v1356, %v1415
        %v1417 = vsel %vm888, %v1363, %v1416
        %v1418 = vsel %vm890, %v1370, %v1417
        %v1419 = vsel %vm892, %v1377, %v1418
        %v1420 = vsel %vm894, %v1384, %v1419
        %v1421 = vsel %vm896, %v1391, %v1420
        %1422 = vrot.lane.b32.xlu0 %v1414, 48
        %v1423 = vpop.permute.xlu0 %1422
        %1424 = vrot.lane.b32.xlu0 %v1421, 48
        %v1425 = vpop.permute.xlu0 %1424
        %vm1428 = vcmask 523648
        %1429 = vst.msk [vmem:[#allocation2] sm:$0xff] %vm1428, %v1423
        %1430 = vst.msk [vmem:[#allocation2 + $0x10] sm:$0xff] %vm1428, %v1425
        %v1431 = vlaneseq
        %v1432 = vshrl.u32 %v1431, 7
        %v1433 = vsub.s32 4, %v1432
        %v1434 = vrot.slane %v730, %v1433
        %1436 = vbcast.lane.b32.xlu0 %v1434, 256
        %v1437 = vpop.permute.xlu0 %1436
        %v1438 = vmul.f32 %v652, %v1437
        %v1439 = vmul.f32 %v657, %v1437
        %v1440 = vmul.f32 %v662, %v1437
        %v1441 = vmul.f32 %v667, %v1437
        %v1442 = vmul.f32 %v672, %v1437
        %v1443 = vmul.f32 %v677, %v1437
        %v1444 = vmul.f32 %v682, %v1437
        %v1445 = vmul.f32 %v687, %v1437
        %v1446 = vmul.f32 %v692, %v1437
        %v1447 = vmul.f32 %v697, %v1437
        %v1448 = vmul.f32 %v702, %v1437
        %v1449 = vmul.f32 %v707, %v1437
        %v1450 = vmul.f32 %v712, %v1437
        %v1451 = vmul.f32 %v717, %v1437
        %v1452 = vmul.f32 %v722, %v1437
        %v1453 = vmul.f32 %v727, %v1437
        %v1454 = vsel %vm755, %v1438, 0.0
        %v1455 = vrot.slane %v1454, 4
        %v1456 = vadd.f32 %v1454, %v1455
        %v1457 = vrot.slane %v1456, 2
        %v1458 = vadd.f32 %v1456, %v1457
        %v1459 = vrot.slane %v1458, 1
        %v1460 = vadd.f32 %v1458, %v1459
        %v1461 = vsel %vm755, %v1439, 0.0
        %v1462 = vrot.slane %v1461, 4
        %v1463 = vadd.f32 %v1461, %v1462
        %v1464 = vrot.slane %v1463, 2
        %v1465 = vadd.f32 %v1463, %v1464
        %v1466 = vrot.slane %v1465, 1
        %v1467 = vadd.f32 %v1465, %v1466
        %v1468 = vsel %vm755, %v1440, 0.0
        %v1469 = vrot.slane %v1468, 4
        %v1470 = vadd.f32 %v1468, %v1469
        %v1471 = vrot.slane %v1470, 2
        %v1472 = vadd.f32 %v1470, %v1471
        %v1473 = vrot.slane %v1472, 1
        %v1474 = vadd.f32 %v1472, %v1473
        %v1475 = vsel %vm755, %v1441, 0.0
        %v1476 = vrot.slane %v1475, 4
        %v1477 = vadd.f32 %v1475, %v1476
        %v1478 = vrot.slane %v1477, 2
        %v1479 = vadd.f32 %v1477, %v1478
        %v1480 = vrot.slane %v1479, 1
        %v1481 = vadd.f32 %v1479, %v1480
        %v1482 = vsel %vm755, %v1442, 0.0
        %v1483 = vrot.slane %v1482, 4
        %v1484 = vadd.f32 %v1482, %v1483
        %v1485 = vrot.slane %v1484, 2
        %v1486 = vadd.f32 %v1484, %v1485
        %v1487 = vrot.slane %v1486, 1
        %v1488 = vadd.f32 %v1486, %v1487
        %v1489 = vsel %vm755, %v1443, 0.0
        %v1490 = vrot.slane %v1489, 4
        %v1491 = vadd.f32 %v1489, %v1490
        %v1492 = vrot.slane %v1491, 2
        %v1493 = vadd.f32 %v1491, %v1492
        %v1494 = vrot.slane %v1493, 1
        %v1495 = vadd.f32 %v1493, %v1494
        %v1496 = vsel %vm755, %v1444, 0.0
        %v1497 = vrot.slane %v1496, 4
        %v1498 = vadd.f32 %v1496, %v1497
        %v1499 = vrot.slane %v1498, 2
        %v1500 = vadd.f32 %v1498, %v1499
        %v1501 = vrot.slane %v1500, 1
        %v1502 = vadd.f32 %v1500, %v1501
        %v1503 = vsel %vm755, %v1445, 0.0
        %v1504 = vrot.slane %v1503, 4
        %v1505 = vadd.f32 %v1503, %v1504
        %v1506 = vrot.slane %v1505, 2
        %v1507 = vadd.f32 %v1505, %v1506
        %v1508 = vrot.slane %v1507, 1
        %v1509 = vadd.f32 %v1507, %v1508
        %v1510 = vsel %vm755, %v1446, 0.0
        %v1511 = vrot.slane %v1510, 4
        %v1512 = vadd.f32 %v1510, %v1511
        %v1513 = vrot.slane %v1512, 2
        %v1514 = vadd.f32 %v1512, %v1513
        %v1515 = vrot.slane %v1514, 1
        %v1516 = vadd.f32 %v1514, %v1515
        %v1517 = vsel %vm755, %v1447, 0.0
        %v1518 = vrot.slane %v1517, 4
        %v1519 = vadd.f32 %v1517, %v1518
        %v1520 = vrot.slane %v1519, 2
        %v1521 = vadd.f32 %v1519, %v1520
        %v1522 = vrot.slane %v1521, 1
        %v1523 = vadd.f32 %v1521, %v1522
        %v1524 = vsel %vm755, %v1448, 0.0
        %v1525 = vrot.slane %v1524, 4
        %v1526 = vadd.f32 %v1524, %v1525
        %v1527 = vrot.slane %v1526, 2
        %v1528 = vadd.f32 %v1526, %v1527
        %v1529 = vrot.slane %v1528, 1
        %v1530 = vadd.f32 %v1528, %v1529
        %v1531 = vsel %vm755, %v1449, 0.0
        %v1532 = vrot.slane %v1531, 4
        %v1533 = vadd.f32 %v1531, %v1532
        %v1534 = vrot.slane %v1533, 2
        %v1535 = vadd.f32 %v1533, %v1534
        %v1536 = vrot.slane %v1535, 1
        %v1537 = vadd.f32 %v1535, %v1536
        %v1538 = vsel %vm755, %v1450, 0.0
        %v1539 = vrot.slane %v1538, 4
        %v1540 = vadd.f32 %v1538, %v1539
        %v1541 = vrot.slane %v1540, 2
        %v1542 = vadd.f32 %v1540, %v1541
        %v1543 = vrot.slane %v1542, 1
        %v1544 = vadd.f32 %v1542, %v1543
        %v1545 = vsel %vm755, %v1451, 0.0
        %v1546 = vrot.slane %v1545, 4
        %v1547 = vadd.f32 %v1545, %v1546
        %v1548 = vrot.slane %v1547, 2
        %v1549 = vadd.f32 %v1547, %v1548
        %v1550 = vrot.slane %v1549, 1
        %v1551 = vadd.f32 %v1549, %v1550
        %v1552 = vsel %vm755, %v1452, 0.0
        %v1553 = vrot.slane %v1552, 4
        %v1554 = vadd.f32 %v1552, %v1553
        %v1555 = vrot.slane %v1554, 2
        %v1556 = vadd.f32 %v1554, %v1555
        %v1557 = vrot.slane %v1556, 1
        %v1558 = vadd.f32 %v1556, %v1557
        %v1559 = vsel %vm755, %v1453, 0.0
        %v1560 = vrot.slane %v1559, 4
        %v1561 = vadd.f32 %v1559, %v1560
        %v1562 = vrot.slane %v1561, 2
        %v1563 = vadd.f32 %v1561, %v1562
        %v1564 = vrot.slane %v1563, 1
        %v1565 = vadd.f32 %v1563, %v1564
        %v1582 = vsel %vm884, %v1467, %v1460
        %v1583 = vsel %vm886, %v1474, %v1582
        %v1584 = vsel %vm888, %v1481, %v1583
        %v1585 = vsel %vm890, %v1488, %v1584
        %v1586 = vsel %vm892, %v1495, %v1585
        %v1587 = vsel %vm894, %v1502, %v1586
        %v1588 = vsel %vm896, %v1509, %v1587
        %v1589 = vsel %vm884, %v1523, %v1516
        %v1590 = vsel %vm886, %v1530, %v1589
        %v1591 = vsel %vm888, %v1537, %v1590
        %v1592 = vsel %vm890, %v1544, %v1591
        %v1593 = vsel %vm892, %v1551, %v1592
        %v1594 = vsel %vm894, %v1558, %v1593
        %v1595 = vsel %vm896, %v1565, %v1594
        %1596 = vrot.lane.b32.xlu0 %v1588, 64
        %v1597 = vpop.permute.xlu0 %1596
        %1598 = vrot.lane.b32.xlu0 %v1595, 64
        %v1599 = vpop.permute.xlu0 %1598
        %vm1602 = vcmask 654848
        %1603 = vst.msk [vmem:[#allocation2] sm:$0xff] %vm1602, %v1597
        %1604 = vst.msk [vmem:[#allocation2 + $0x10] sm:$0xff] %vm1602, %v1599
        %v1605 = vlaneseq
        %v1606 = vshrl.u32 %v1605, 7
        %v1607 = vsub.s32 5, %v1606
        %v1608 = vrot.slane %v730, %v1607
        %1610 = vbcast.lane.b32.xlu0 %v1608, 256
        %v1611 = vpop.permute.xlu0 %1610
        %v1612 = vmul.f32 %v652, %v1611
        %v1613 = vmul.f32 %v657, %v1611
        %v1614 = vmul.f32 %v662, %v1611
        %v1615 = vmul.f32 %v667, %v1611
        %v1616 = vmul.f32 %v672, %v1611
        %v1617 = vmul.f32 %v677, %v1611
        %v1618 = vmul.f32 %v682, %v1611
        %v1619 = vmul.f32 %v687, %v1611
        %v1620 = vmul.f32 %v692, %v1611
        %v1621 = vmul.f32 %v697, %v1611
        %v1622 = vmul.f32 %v702, %v1611
        %v1623 = vmul.f32 %v707, %v1611
        %v1624 = vmul.f32 %v712, %v1611
        %v1625 = vmul.f32 %v717, %v1611
        %v1626 = vmul.f32 %v722, %v1611
        %v1627 = vmul.f32 %v727, %v1611
        %v1628 = vsel %vm755, %v1612, 0.0
        %v1629 = vrot.slane %v1628, 4
        %v1630 = vadd.f32 %v1628, %v1629
        %v1631 = vrot.slane %v1630, 2
        %v1632 = vadd.f32 %v1630, %v1631
        %v1633 = vrot.slane %v1632, 1
        %v1634 = vadd.f32 %v1632, %v1633
        %v1635 = vsel %vm755, %v1613, 0.0
        %v1636 = vrot.slane %v1635, 4
        %v1637 = vadd.f32 %v1635, %v1636
        %v1638 = vrot.slane %v1637, 2
        %v1639 = vadd.f32 %v1637, %v1638
        %v1640 = vrot.slane %v1639, 1
        %v1641 = vadd.f32 %v1639, %v1640
        %v1642 = vsel %vm755, %v1614, 0.0
        %v1643 = vrot.slane %v1642, 4
        %v1644 = vadd.f32 %v1642, %v1643
        %v1645 = vrot.slane %v1644, 2
        %v1646 = vadd.f32 %v1644, %v1645
        %v1647 = vrot.slane %v1646, 1
        %v1648 = vadd.f32 %v1646, %v1647
        %v1649 = vsel %vm755, %v1615, 0.0
        %v1650 = vrot.slane %v1649, 4
        %v1651 = vadd.f32 %v1649, %v1650
        %v1652 = vrot.slane %v1651, 2
        %v1653 = vadd.f32 %v1651, %v1652
        %v1654 = vrot.slane %v1653, 1
        %v1655 = vadd.f32 %v1653, %v1654
        %v1656 = vsel %vm755, %v1616, 0.0
        %v1657 = vrot.slane %v1656, 4
        %v1658 = vadd.f32 %v1656, %v1657
        %v1659 = vrot.slane %v1658, 2
        %v1660 = vadd.f32 %v1658, %v1659
        %v1661 = vrot.slane %v1660, 1
        %v1662 = vadd.f32 %v1660, %v1661
        %v1663 = vsel %vm755, %v1617, 0.0
        %v1664 = vrot.slane %v1663, 4
        %v1665 = vadd.f32 %v1663, %v1664
        %v1666 = vrot.slane %v1665, 2
        %v1667 = vadd.f32 %v1665, %v1666
        %v1668 = vrot.slane %v1667, 1
        %v1669 = vadd.f32 %v1667, %v1668
        %v1670 = vsel %vm755, %v1618, 0.0
        %v1671 = vrot.slane %v1670, 4
        %v1672 = vadd.f32 %v1670, %v1671
        %v1673 = vrot.slane %v1672, 2
        %v1674 = vadd.f32 %v1672, %v1673
        %v1675 = vrot.slane %v1674, 1
        %v1676 = vadd.f32 %v1674, %v1675
        %v1677 = vsel %vm755, %v1619, 0.0
        %v1678 = vrot.slane %v1677, 4
        %v1679 = vadd.f32 %v1677, %v1678
        %v1680 = vrot.slane %v1679, 2
        %v1681 = vadd.f32 %v1679, %v1680
        %v1682 = vrot.slane %v1681, 1
        %v1683 = vadd.f32 %v1681, %v1682
        %v1684 = vsel %vm755, %v1620, 0.0
        %v1685 = vrot.slane %v1684, 4
        %v1686 = vadd.f32 %v1684, %v1685
        %v1687 = vrot.slane %v1686, 2
        %v1688 = vadd.f32 %v1686, %v1687
        %v1689 = vrot.slane %v1688, 1
        %v1690 = vadd.f32 %v1688, %v1689
        %v1691 = vsel %vm755, %v1621, 0.0
        %v1692 = vrot.slane %v1691, 4
        %v1693 = vadd.f32 %v1691, %v1692
        %v1694 = vrot.slane %v1693, 2
        %v1695 = vadd.f32 %v1693, %v1694
        %v1696 = vrot.slane %v1695, 1
        %v1697 = vadd.f32 %v1695, %v1696
        %v1698 = vsel %vm755, %v1622, 0.0
        %v1699 = vrot.slane %v1698, 4
        %v1700 = vadd.f32 %v1698, %v1699
        %v1701 = vrot.slane %v1700, 2
        %v1702 = vadd.f32 %v1700, %v1701
        %v1703 = vrot.slane %v1702, 1
        %v1704 = vadd.f32 %v1702, %v1703
        %v1705 = vsel %vm755, %v1623, 0.0
        %v1706 = vrot.slane %v1705, 4
        %v1707 = vadd.f32 %v1705, %v1706
        %v1708 = vrot.slane %v1707, 2
        %v1709 = vadd.f32 %v1707, %v1708
        %v1710 = vrot.slane %v1709, 1
        %v1711 = vadd.f32 %v1709, %v1710
        %v1712 = vsel %vm755, %v1624, 0.0
        %v1713 = vrot.slane %v1712, 4
        %v1714 = vadd.f32 %v1712, %v1713
        %v1715 = vrot.slane %v1714, 2
        %v1716 = vadd.f32 %v1714, %v1715
        %v1717 = vrot.slane %v1716, 1
        %v1718 = vadd.f32 %v1716, %v1717
        %v1719 = vsel %vm755, %v1625, 0.0
        %v1720 = vrot.slane %v1719, 4
        %v1721 = vadd.f32 %v1719, %v1720
        %v1722 = vrot.slane %v1721, 2
        %v1723 = vadd.f32 %v1721, %v1722
        %v1724 = vrot.slane %v1723, 1
        %v1725 = vadd.f32 %v1723, %v1724
        %v1726 = vsel %vm755, %v1626, 0.0
        %v1727 = vrot.slane %v1726, 4
        %v1728 = vadd.f32 %v1726, %v1727
        %v1729 = vrot.slane %v1728, 2
        %v1730 = vadd.f32 %v1728, %v1729
        %v1731 = vrot.slane %v1730, 1
        %v1732 = vadd.f32 %v1730, %v1731
        %v1733 = vsel %vm755, %v1627, 0.0
        %v1734 = vrot.slane %v1733, 4
        %v1735 = vadd.f32 %v1733, %v1734
        %v1736 = vrot.slane %v1735, 2
        %v1737 = vadd.f32 %v1735, %v1736
        %v1738 = vrot.slane %v1737, 1
        %v1739 = vadd.f32 %v1737, %v1738
        %v1756 = vsel %vm884, %v1641, %v1634
        %v1757 = vsel %vm886, %v1648, %v1756
        %v1758 = vsel %vm888, %v1655, %v1757
        %v1759 = vsel %vm890, %v1662, %v1758
        %v1760 = vsel %vm892, %v1669, %v1759
        %v1761 = vsel %vm894, %v1676, %v1760
        %v1762 = vsel %vm896, %v1683, %v1761
        %v1763 = vsel %vm884, %v1697, %v1690
        %v1764 = vsel %vm886, %v1704, %v1763
        %v1765 = vsel %vm888, %v1711, %v1764
        %v1766 = vsel %vm890, %v1718, %v1765
        %v1767 = vsel %vm892, %v1725, %v1766
        %v1768 = vsel %vm894, %v1732, %v1767
        %v1769 = vsel %vm896, %v1739, %v1768
        %1770 = vrot.lane.b32.xlu0 %v1762, 80
        %v1771 = vpop.permute.xlu0 %1770
        %1772 = vrot.lane.b32.xlu0 %v1769, 80
        %v1773 = vpop.permute.xlu0 %1772
        %vm1776 = vcmask 786048
        %1777 = vst.msk [vmem:[#allocation2] sm:$0xff] %vm1776, %v1771
        %1778 = vst.msk [vmem:[#allocation2 + $0x10] sm:$0xff] %vm1776, %v1773
        %v1779 = vlaneseq
        %v1780 = vshrl.u32 %v1779, 7
        %v1781 = vsub.s32 6, %v1780
        %v1782 = vrot.slane %v730, %v1781
        %1784 = vbcast.lane.b32.xlu0 %v1782, 256
        %v1785 = vpop.permute.xlu0 %1784
        %v1786 = vmul.f32 %v652, %v1785
        %v1787 = vmul.f32 %v657, %v1785
        %v1788 = vmul.f32 %v662, %v1785
        %v1789 = vmul.f32 %v667, %v1785
        %v1790 = vmul.f32 %v672, %v1785
        %v1791 = vmul.f32 %v677, %v1785
        %v1792 = vmul.f32 %v682, %v1785
        %v1793 = vmul.f32 %v687, %v1785
        %v1794 = vmul.f32 %v692, %v1785
        %v1795 = vmul.f32 %v697, %v1785
        %v1796 = vmul.f32 %v702, %v1785
        %v1797 = vmul.f32 %v707, %v1785
        %v1798 = vmul.f32 %v712, %v1785
        %v1799 = vmul.f32 %v717, %v1785
        %v1800 = vmul.f32 %v722, %v1785
        %v1801 = vmul.f32 %v727, %v1785
        %v1802 = vsel %vm755, %v1786, 0.0
        %v1803 = vrot.slane %v1802, 4
        %v1804 = vadd.f32 %v1802, %v1803
        %v1805 = vrot.slane %v1804, 2
        %v1806 = vadd.f32 %v1804, %v1805
        %v1807 = vrot.slane %v1806, 1
        %v1808 = vadd.f32 %v1806, %v1807
        %v1809 = vsel %vm755, %v1787, 0.0
        %v1810 = vrot.slane %v1809, 4
        %v1811 = vadd.f32 %v1809, %v1810
        %v1812 = vrot.slane %v1811, 2
        %v1813 = vadd.f32 %v1811, %v1812
        %v1814 = vrot.slane %v1813, 1
        %v1815 = vadd.f32 %v1813, %v1814
        %v1816 = vsel %vm755, %v1788, 0.0
        %v1817 = vrot.slane %v1816, 4
        %v1818 = vadd.f32 %v1816, %v1817
        %v1819 = vrot.slane %v1818, 2
        %v1820 = vadd.f32 %v1818, %v1819
        %v1821 = vrot.slane %v1820, 1
        %v1822 = vadd.f32 %v1820, %v1821
        %v1823 = vsel %vm755, %v1789, 0.0
        %v1824 = vrot.slane %v1823, 4
        %v1825 = vadd.f32 %v1823, %v1824
        %v1826 = vrot.slane %v1825, 2
        %v1827 = vadd.f32 %v1825, %v1826
        %v1828 = vrot.slane %v1827, 1
        %v1829 = vadd.f32 %v1827, %v1828
        %v1830 = vsel %vm755, %v1790, 0.0
        %v1831 = vrot.slane %v1830, 4
        %v1832 = vadd.f32 %v1830, %v1831
        %v1833 = vrot.slane %v1832, 2
        %v1834 = vadd.f32 %v1832, %v1833
        %v1835 = vrot.slane %v1834, 1
        %v1836 = vadd.f32 %v1834, %v1835
        %v1837 = vsel %vm755, %v1791, 0.0
        %v1838 = vrot.slane %v1837, 4
        %v1839 = vadd.f32 %v1837, %v1838
        %v1840 = vrot.slane %v1839, 2
        %v1841 = vadd.f32 %v1839, %v1840
        %v1842 = vrot.slane %v1841, 1
        %v1843 = vadd.f32 %v1841, %v1842
        %v1844 = vsel %vm755, %v1792, 0.0
        %v1845 = vrot.slane %v1844, 4
        %v1846 = vadd.f32 %v1844, %v1845
        %v1847 = vrot.slane %v1846, 2
        %v1848 = vadd.f32 %v1846, %v1847
        %v1849 = vrot.slane %v1848, 1
        %v1850 = vadd.f32 %v1848, %v1849
        %v1851 = vsel %vm755, %v1793, 0.0
        %v1852 = vrot.slane %v1851, 4
        %v1853 = vadd.f32 %v1851, %v1852
        %v1854 = vrot.slane %v1853, 2
        %v1855 = vadd.f32 %v1853, %v1854
        %v1856 = vrot.slane %v1855, 1
        %v1857 = vadd.f32 %v1855, %v1856
        %v1858 = vsel %vm755, %v1794, 0.0
        %v1859 = vrot.slane %v1858, 4
        %v1860 = vadd.f32 %v1858, %v1859
        %v1861 = vrot.slane %v1860, 2
        %v1862 = vadd.f32 %v1860, %v1861
        %v1863 = vrot.slane %v1862, 1
        %v1864 = vadd.f32 %v1862, %v1863
        %v1865 = vsel %vm755, %v1795, 0.0
        %v1866 = vrot.slane %v1865, 4
        %v1867 = vadd.f32 %v1865, %v1866
        %v1868 = vrot.slane %v1867, 2
        %v1869 = vadd.f32 %v1867, %v1868
        %v1870 = vrot.slane %v1869, 1
        %v1871 = vadd.f32 %v1869, %v1870
        %v1872 = vsel %vm755, %v1796, 0.0
        %v1873 = vrot.slane %v1872, 4
        %v1874 = vadd.f32 %v1872, %v1873
        %v1875 = vrot.slane %v1874, 2
        %v1876 = vadd.f32 %v1874, %v1875
        %v1877 = vrot.slane %v1876, 1
        %v1878 = vadd.f32 %v1876, %v1877
        %v1879 = vsel %vm755, %v1797, 0.0
        %v1880 = vrot.slane %v1879, 4
        %v1881 = vadd.f32 %v1879, %v1880
        %v1882 = vrot.slane %v1881, 2
        %v1883 = vadd.f32 %v1881, %v1882
        %v1884 = vrot.slane %v1883, 1
        %v1885 = vadd.f32 %v1883, %v1884
        %v1886 = vsel %vm755, %v1798, 0.0
        %v1887 = vrot.slane %v1886, 4
        %v1888 = vadd.f32 %v1886, %v1887
        %v1889 = vrot.slane %v1888, 2
        %v1890 = vadd.f32 %v1888, %v1889
        %v1891 = vrot.slane %v1890, 1
        %v1892 = vadd.f32 %v1890, %v1891
        %v1893 = vsel %vm755, %v1799, 0.0
        %v1894 = vrot.slane %v1893, 4
        %v1895 = vadd.f32 %v1893, %v1894
        %v1896 = vrot.slane %v1895, 2
        %v1897 = vadd.f32 %v1895, %v1896
        %v1898 = vrot.slane %v1897, 1
        %v1899 = vadd.f32 %v1897, %v1898
        %v1900 = vsel %vm755, %v1800, 0.0
        %v1901 = vrot.slane %v1900, 4
        %v1902 = vadd.f32 %v1900, %v1901
        %v1903 = vrot.slane %v1902, 2
        %v1904 = vadd.f32 %v1902, %v1903
        %v1905 = vrot.slane %v1904, 1
        %v1906 = vadd.f32 %v1904, %v1905
        %v1907 = vsel %vm755, %v1801, 0.0
        %v1908 = vrot.slane %v1907, 4
        %v1909 = vadd.f32 %v1907, %v1908
        %v1910 = vrot.slane %v1909, 2
        %v1911 = vadd.f32 %v1909, %v1910
        %v1912 = vrot.slane %v1911, 1
        %v1913 = vadd.f32 %v1911, %v1912
        %v1930 = vsel %vm884, %v1815, %v1808
        %v1931 = vsel %vm886, %v1822, %v1930
        %v1932 = vsel %vm888, %v1829, %v1931
        %v1933 = vsel %vm890, %v1836, %v1932
        %v1934 = vsel %vm892, %v1843, %v1933
        %v1935 = vsel %vm894, %v1850, %v1934
        %v1936 = vsel %vm896, %v1857, %v1935
        %v1937 = vsel %vm884, %v1871, %v1864
        %v1938 = vsel %vm886, %v1878, %v1937
        %v1939 = vsel %vm888, %v1885, %v1938
        %v1940 = vsel %vm890, %v1892, %v1939
        %v1941 = vsel %vm892, %v1899, %v1940
        %v1942 = vsel %vm894, %v1906, %v1941
        %v1943 = vsel %vm896, %v1913, %v1942
        %1944 = vrot.lane.b32.xlu0 %v1936, 96
        %v1945 = vpop.permute.xlu0 %1944
        %1946 = vrot.lane.b32.xlu0 %v1943, 96
        %v1947 = vpop.permute.xlu0 %1946
        %vm1950 = vcmask 917248
        %1951 = vst.msk [vmem:[#allocation2] sm:$0xff] %vm1950, %v1945
        %1952 = vst.msk [vmem:[#allocation2 + $0x10] sm:$0xff] %vm1950, %v1947
        %v1953 = vlaneseq
        %v1954 = vshrl.u32 %v1953, 7
        %v1955 = vsub.s32 7, %v1954
        %v1956 = vrot.slane %v730, %v1955
        %1958 = vbcast.lane.b32.xlu0 %v1956, 256
        %v1959 = vpop.permute.xlu0 %1958
        %v1960 = vmul.f32 %v652, %v1959
        %v1961 = vmul.f32 %v657, %v1959
        %v1962 = vmul.f32 %v662, %v1959
        %v1963 = vmul.f32 %v667, %v1959
        %v1964 = vmul.f32 %v672, %v1959
        %v1965 = vmul.f32 %v677, %v1959
        %v1966 = vmul.f32 %v682, %v1959
        %v1967 = vmul.f32 %v687, %v1959
        %v1968 = vmul.f32 %v692, %v1959
        %v1969 = vmul.f32 %v697, %v1959
        %v1970 = vmul.f32 %v702, %v1959
        %v1971 = vmul.f32 %v707, %v1959
        %v1972 = vmul.f32 %v712, %v1959
        %v1973 = vmul.f32 %v717, %v1959
        %v1974 = vmul.f32 %v722, %v1959
        %v1975 = vmul.f32 %v727, %v1959
        %v1976 = vsel %vm755, %v1960, 0.0
        %v1977 = vrot.slane %v1976, 4
        %v1978 = vadd.f32 %v1976, %v1977
        %v1979 = vrot.slane %v1978, 2
        %v1980 = vadd.f32 %v1978, %v1979
        %v1981 = vrot.slane %v1980, 1
        %v1982 = vadd.f32 %v1980, %v1981
        %v1983 = vsel %vm755, %v1961, 0.0
        %v1984 = vrot.slane %v1983, 4
        %v1985 = vadd.f32 %v1983, %v1984
        %v1986 = vrot.slane %v1985, 2
        %v1987 = vadd.f32 %v1985, %v1986
        %v1988 = vrot.slane %v1987, 1
        %v1989 = vadd.f32 %v1987, %v1988
        %v1990 = vsel %vm755, %v1962, 0.0
        %v1991 = vrot.slane %v1990, 4
        %v1992 = vadd.f32 %v1990, %v1991
        %v1993 = vrot.slane %v1992, 2
        %v1994 = vadd.f32 %v1992, %v1993
        %v1995 = vrot.slane %v1994, 1
        %v1996 = vadd.f32 %v1994, %v1995
        %v1997 = vsel %vm755, %v1963, 0.0
        %v1998 = vrot.slane %v1997, 4
        %v1999 = vadd.f32 %v1997, %v1998
        %v2000 = vrot.slane %v1999, 2
        %v2001 = vadd.f32 %v1999, %v2000
        %v2002 = vrot.slane %v2001, 1
        %v2003 = vadd.f32 %v2001, %v2002
        %v2004 = vsel %vm755, %v1964, 0.0
        %v2005 = vrot.slane %v2004, 4
        %v2006 = vadd.f32 %v2004, %v2005
        %v2007 = vrot.slane %v2006, 2
        %v2008 = vadd.f32 %v2006, %v2007
        %v2009 = vrot.slane %v2008, 1
        %v2010 = vadd.f32 %v2008, %v2009
        %v2011 = vsel %vm755, %v1965, 0.0
        %v2012 = vrot.slane %v2011, 4
        %v2013 = vadd.f32 %v2011, %v2012
        %v2014 = vrot.slane %v2013, 2
        %v2015 = vadd.f32 %v2013, %v2014
        %v2016 = vrot.slane %v2015, 1
        %v2017 = vadd.f32 %v2015, %v2016
        %v2018 = vsel %vm755, %v1966, 0.0
        %v2019 = vrot.slane %v2018, 4
        %v2020 = vadd.f32 %v2018, %v2019
        %v2021 = vrot.slane %v2020, 2
        %v2022 = vadd.f32 %v2020, %v2021
        %v2023 = vrot.slane %v2022, 1
        %v2024 = vadd.f32 %v2022, %v2023
        %v2025 = vsel %vm755, %v1967, 0.0
        %v2026 = vrot.slane %v2025, 4
        %v2027 = vadd.f32 %v2025, %v2026
        %v2028 = vrot.slane %v2027, 2
        %v2029 = vadd.f32 %v2027, %v2028
        %v2030 = vrot.slane %v2029, 1
        %v2031 = vadd.f32 %v2029, %v2030
        %v2032 = vsel %vm755, %v1968, 0.0
        %v2033 = vrot.slane %v2032, 4
        %v2034 = vadd.f32 %v2032, %v2033
        %v2035 = vrot.slane %v2034, 2
        %v2036 = vadd.f32 %v2034, %v2035
        %v2037 = vrot.slane %v2036, 1
        %v2038 = vadd.f32 %v2036, %v2037
        %v2039 = vsel %vm755, %v1969, 0.0
        %v2040 = vrot.slane %v2039, 4
        %v2041 = vadd.f32 %v2039, %v2040
        %v2042 = vrot.slane %v2041, 2
        %v2043 = vadd.f32 %v2041, %v2042
        %v2044 = vrot.slane %v2043, 1
        %v2045 = vadd.f32 %v2043, %v2044
        %v2046 = vsel %vm755, %v1970, 0.0
        %v2047 = vrot.slane %v2046, 4
        %v2048 = vadd.f32 %v2046, %v2047
        %v2049 = vrot.slane %v2048, 2
        %v2050 = vadd.f32 %v2048, %v2049
        %v2051 = vrot.slane %v2050, 1
        %v2052 = vadd.f32 %v2050, %v2051
        %v2053 = vsel %vm755, %v1971, 0.0
        %v2054 = vrot.slane %v2053, 4
        %v2055 = vadd.f32 %v2053, %v2054
        %v2056 = vrot.slane %v2055, 2
        %v2057 = vadd.f32 %v2055, %v2056
        %v2058 = vrot.slane %v2057, 1
        %v2059 = vadd.f32 %v2057, %v2058
        %v2060 = vsel %vm755, %v1972, 0.0
        %v2061 = vrot.slane %v2060, 4
        %v2062 = vadd.f32 %v2060, %v2061
        %v2063 = vrot.slane %v2062, 2
        %v2064 = vadd.f32 %v2062, %v2063
        %v2065 = vrot.slane %v2064, 1
        %v2066 = vadd.f32 %v2064, %v2065
        %v2067 = vsel %vm755, %v1973, 0.0
        %v2068 = vrot.slane %v2067, 4
        %v2069 = vadd.f32 %v2067, %v2068
        %v2070 = vrot.slane %v2069, 2
        %v2071 = vadd.f32 %v2069, %v2070
        %v2072 = vrot.slane %v2071, 1
        %v2073 = vadd.f32 %v2071, %v2072
        %v2074 = vsel %vm755, %v1974, 0.0
        %v2075 = vrot.slane %v2074, 4
        %v2076 = vadd.f32 %v2074, %v2075
        %v2077 = vrot.slane %v2076, 2
        %v2078 = vadd.f32 %v2076, %v2077
        %v2079 = vrot.slane %v2078, 1
        %v2080 = vadd.f32 %v2078, %v2079
        %v2081 = vsel %vm755, %v1975, 0.0
        %v2082 = vrot.slane %v2081, 4
        %v2083 = vadd.f32 %v2081, %v2082
        %v2084 = vrot.slane %v2083, 2
        %v2085 = vadd.f32 %v2083, %v2084
        %v2086 = vrot.slane %v2085, 1
        %v2087 = vadd.f32 %v2085, %v2086
        %v2104 = vsel %vm884, %v1989, %v1982
        %v2105 = vsel %vm886, %v1996, %v2104
        %v2106 = vsel %vm888, %v2003, %v2105
        %v2107 = vsel %vm890, %v2010, %v2106
        %v2108 = vsel %vm892, %v2017, %v2107
        %v2109 = vsel %vm894, %v2024, %v2108
        %v2110 = vsel %vm896, %v2031, %v2109
        %v2111 = vsel %vm884, %v2045, %v2038
        %v2112 = vsel %vm886, %v2052, %v2111
        %v2113 = vsel %vm888, %v2059, %v2112
        %v2114 = vsel %vm890, %v2066, %v2113
        %v2115 = vsel %vm892, %v2073, %v2114
        %v2116 = vsel %vm894, %v2080, %v2115
        %v2117 = vsel %vm896, %v2087, %v2116
        %2118 = vrot.lane.b32.xlu0 %v2110, 112
        %v2119 = vpop.permute.xlu0 %2118
        %2120 = vrot.lane.b32.xlu0 %v2117, 112
        %v2121 = vpop.permute.xlu0 %2120
        %vm2124 = vcmask 1048448
        %2125 = vst.msk [vmem:[#allocation2] sm:$0xff] %vm2124, %v2119
        %2126 = vst.msk [vmem:[#allocation2 + $0x10] sm:$0xff] %vm2124, %v2121
        %v2127 = vlaneseq
        %v2128 = vshrl.u32 %v2127, 7
        %v2129 = vsub.s32 0, %v2128
        %v2130 = vrot.slane %v731, %v2129
        %2132 = vbcast.lane.b32.xlu0 %v2130, 256
        %v2133 = vpop.permute.xlu0 %2132
        %v2134 = vmul.f32 %v652, %v2133
        %v2135 = vmul.f32 %v657, %v2133
        %v2136 = vmul.f32 %v662, %v2133
        %v2137 = vmul.f32 %v667, %v2133
        %v2138 = vmul.f32 %v672, %v2133
        %v2139 = vmul.f32 %v677, %v2133
        %v2140 = vmul.f32 %v682, %v2133
        %v2141 = vmul.f32 %v687, %v2133
        %v2142 = vmul.f32 %v692, %v2133
        %v2143 = vmul.f32 %v697, %v2133
        %v2144 = vmul.f32 %v702, %v2133
        %v2145 = vmul.f32 %v707, %v2133
        %v2146 = vmul.f32 %v712, %v2133
        %v2147 = vmul.f32 %v717, %v2133
        %v2148 = vmul.f32 %v722, %v2133
        %v2149 = vmul.f32 %v727, %v2133
        %v2150 = vsel %vm755, %v2134, 0.0
        %v2151 = vrot.slane %v2150, 4
        %v2152 = vadd.f32 %v2150, %v2151
        %v2153 = vrot.slane %v2152, 2
        %v2154 = vadd.f32 %v2152, %v2153
        %v2155 = vrot.slane %v2154, 1
        %v2156 = vadd.f32 %v2154, %v2155
        %v2157 = vsel %vm755, %v2135, 0.0
        %v2158 = vrot.slane %v2157, 4
        %v2159 = vadd.f32 %v2157, %v2158
        %v2160 = vrot.slane %v2159, 2
        %v2161 = vadd.f32 %v2159, %v2160
        %v2162 = vrot.slane %v2161, 1
        %v2163 = vadd.f32 %v2161, %v2162
        %v2164 = vsel %vm755, %v2136, 0.0
        %v2165 = vrot.slane %v2164, 4
        %v2166 = vadd.f32 %v2164, %v2165
        %v2167 = vrot.slane %v2166, 2
        %v2168 = vadd.f32 %v2166, %v2167
        %v2169 = vrot.slane %v2168, 1
        %v2170 = vadd.f32 %v2168, %v2169
        %v2171 = vsel %vm755, %v2137, 0.0
        %v2172 = vrot.slane %v2171, 4
        %v2173 = vadd.f32 %v2171, %v2172
        %v2174 = vrot.slane %v2173, 2
        %v2175 = vadd.f32 %v2173, %v2174
        %v2176 = vrot.slane %v2175, 1
        %v2177 = vadd.f32 %v2175, %v2176
        %v2178 = vsel %vm755, %v2138, 0.0
        %v2179 = vrot.slane %v2178, 4
        %v2180 = vadd.f32 %v2178, %v2179
        %v2181 = vrot.slane %v2180, 2
        %v2182 = vadd.f32 %v2180, %v2181
        %v2183 = vrot.slane %v2182, 1
        %v2184 = vadd.f32 %v2182, %v2183
        %v2185 = vsel %vm755, %v2139, 0.0
        %v2186 = vrot.slane %v2185, 4
        %v2187 = vadd.f32 %v2185, %v2186
        %v2188 = vrot.slane %v2187, 2
        %v2189 = vadd.f32 %v2187, %v2188
        %v2190 = vrot.slane %v2189, 1
        %v2191 = vadd.f32 %v2189, %v2190
        %v2192 = vsel %vm755, %v2140, 0.0
        %v2193 = vrot.slane %v2192, 4
        %v2194 = vadd.f32 %v2192, %v2193
        %v2195 = vrot.slane %v2194, 2
        %v2196 = vadd.f32 %v2194, %v2195
        %v2197 = vrot.slane %v2196, 1
        %v2198 = vadd.f32 %v2196, %v2197
        %v2199 = vsel %vm755, %v2141, 0.0
        %v2200 = vrot.slane %v2199, 4
        %v2201 = vadd.f32 %v2199, %v2200
        %v2202 = vrot.slane %v2201, 2
        %v2203 = vadd.f32 %v2201, %v2202
        %v2204 = vrot.slane %v2203, 1
        %v2205 = vadd.f32 %v2203, %v2204
        %v2206 = vsel %vm755, %v2142, 0.0
        %v2207 = vrot.slane %v2206, 4
        %v2208 = vadd.f32 %v2206, %v2207
        %v2209 = vrot.slane %v2208, 2
        %v2210 = vadd.f32 %v2208, %v2209
        %v2211 = vrot.slane %v2210, 1
        %v2212 = vadd.f32 %v2210, %v2211
        %v2213 = vsel %vm755, %v2143, 0.0
        %v2214 = vrot.slane %v2213, 4
        %v2215 = vadd.f32 %v2213, %v2214
        %v2216 = vrot.slane %v2215, 2
        %v2217 = vadd.f32 %v2215, %v2216
        %v2218 = vrot.slane %v2217, 1
        %v2219 = vadd.f32 %v2217, %v2218
        %v2220 = vsel %vm755, %v2144, 0.0
        %v2221 = vrot.slane %v2220, 4
        %v2222 = vadd.f32 %v2220, %v2221
        %v2223 = vrot.slane %v2222, 2
        %v2224 = vadd.f32 %v2222, %v2223
        %v2225 = vrot.slane %v2224, 1
        %v2226 = vadd.f32 %v2224, %v2225
        %v2227 = vsel %vm755, %v2145, 0.0
        %v2228 = vrot.slane %v2227, 4
        %v2229 = vadd.f32 %v2227, %v2228
        %v2230 = vrot.slane %v2229, 2
        %v2231 = vadd.f32 %v2229, %v2230
        %v2232 = vrot.slane %v2231, 1
        %v2233 = vadd.f32 %v2231, %v2232
        %v2234 = vsel %vm755, %v2146, 0.0
        %v2235 = vrot.slane %v2234, 4
        %v2236 = vadd.f32 %v2234, %v2235
        %v2237 = vrot.slane %v2236, 2
        %v2238 = vadd.f32 %v2236, %v2237
        %v2239 = vrot.slane %v2238, 1
        %v2240 = vadd.f32 %v2238, %v2239
        %v2241 = vsel %vm755, %v2147, 0.0
        %v2242 = vrot.slane %v2241, 4
        %v2243 = vadd.f32 %v2241, %v2242
        %v2244 = vrot.slane %v2243, 2
        %v2245 = vadd.f32 %v2243, %v2244
        %v2246 = vrot.slane %v2245, 1
        %v2247 = vadd.f32 %v2245, %v2246
        %v2248 = vsel %vm755, %v2148, 0.0
        %v2249 = vrot.slane %v2248, 4
        %v2250 = vadd.f32 %v2248, %v2249
        %v2251 = vrot.slane %v2250, 2
        %v2252 = vadd.f32 %v2250, %v2251
        %v2253 = vrot.slane %v2252, 1
        %v2254 = vadd.f32 %v2252, %v2253
        %v2255 = vsel %vm755, %v2149, 0.0
        %v2256 = vrot.slane %v2255, 4
        %v2257 = vadd.f32 %v2255, %v2256
        %v2258 = vrot.slane %v2257, 2
        %v2259 = vadd.f32 %v2257, %v2258
        %v2260 = vrot.slane %v2259, 1
        %v2261 = vadd.f32 %v2259, %v2260
        %v2278 = vsel %vm884, %v2163, %v2156
        %v2279 = vsel %vm886, %v2170, %v2278
        %v2280 = vsel %vm888, %v2177, %v2279
        %v2281 = vsel %vm890, %v2184, %v2280
        %v2282 = vsel %vm892, %v2191, %v2281
        %v2283 = vsel %vm894, %v2198, %v2282
        %v2284 = vsel %vm896, %v2205, %v2283
        %v2285 = vsel %vm884, %v2219, %v2212
        %v2286 = vsel %vm886, %v2226, %v2285
        %v2287 = vsel %vm888, %v2233, %v2286
        %v2288 = vsel %vm890, %v2240, %v2287
        %v2289 = vsel %vm892, %v2247, %v2288
        %v2290 = vsel %vm894, %v2254, %v2289
        %v2291 = vsel %vm896, %v2261, %v2290
        %2294 = vst.msk [vmem:[#allocation2 + $0x8] sm:$0xff] %vm755, %v2284
        %2295 = vst.msk [vmem:[#allocation2 + $0x18] sm:$0xff] %vm755, %v2291
        %v2296 = vlaneseq
        %v2297 = vshrl.u32 %v2296, 7
        %v2298 = vsub.s32 1, %v2297
        %v2299 = vrot.slane %v731, %v2298
        %2301 = vbcast.lane.b32.xlu0 %v2299, 256
        %v2302 = vpop.permute.xlu0 %2301
        %v2303 = vmul.f32 %v652, %v2302
        %v2304 = vmul.f32 %v657, %v2302
        %v2305 = vmul.f32 %v662, %v2302
        %v2306 = vmul.f32 %v667, %v2302
        %v2307 = vmul.f32 %v672, %v2302
        %v2308 = vmul.f32 %v677, %v2302
        %v2309 = vmul.f32 %v682, %v2302
        %v2310 = vmul.f32 %v687, %v2302
        %v2311 = vmul.f32 %v692, %v2302
        %v2312 = vmul.f32 %v697, %v2302
        %v2313 = vmul.f32 %v702, %v2302
        %v2314 = vmul.f32 %v707, %v2302
        %v2315 = vmul.f32 %v712, %v2302
        %v2316 = vmul.f32 %v717, %v2302
        %v2317 = vmul.f32 %v722, %v2302
        %v2318 = vmul.f32 %v727, %v2302
        %v2319 = vsel %vm755, %v2303, 0.0
        %v2320 = vrot.slane %v2319, 4
        %v2321 = vadd.f32 %v2319, %v2320
        %v2322 = vrot.slane %v2321, 2
        %v2323 = vadd.f32 %v2321, %v2322
        %v2324 = vrot.slane %v2323, 1
        %v2325 = vadd.f32 %v2323, %v2324
        %v2326 = vsel %vm755, %v2304, 0.0
        %v2327 = vrot.slane %v2326, 4
        %v2328 = vadd.f32 %v2326, %v2327
        %v2329 = vrot.slane %v2328, 2
        %v2330 = vadd.f32 %v2328, %v2329
        %v2331 = vrot.slane %v2330, 1
        %v2332 = vadd.f32 %v2330, %v2331
        %v2333 = vsel %vm755, %v2305, 0.0
        %v2334 = vrot.slane %v2333, 4
        %v2335 = vadd.f32 %v2333, %v2334
        %v2336 = vrot.slane %v2335, 2
        %v2337 = vadd.f32 %v2335, %v2336
        %v2338 = vrot.slane %v2337, 1
        %v2339 = vadd.f32 %v2337, %v2338
        %v2340 = vsel %vm755, %v2306, 0.0
        %v2341 = vrot.slane %v2340, 4
        %v2342 = vadd.f32 %v2340, %v2341
        %v2343 = vrot.slane %v2342, 2
        %v2344 = vadd.f32 %v2342, %v2343
        %v2345 = vrot.slane %v2344, 1
        %v2346 = vadd.f32 %v2344, %v2345
        %v2347 = vsel %vm755, %v2307, 0.0
        %v2348 = vrot.slane %v2347, 4
        %v2349 = vadd.f32 %v2347, %v2348
        %v2350 = vrot.slane %v2349, 2
        %v2351 = vadd.f32 %v2349, %v2350
        %v2352 = vrot.slane %v2351, 1
        %v2353 = vadd.f32 %v2351, %v2352
        %v2354 = vsel %vm755, %v2308, 0.0
        %v2355 = vrot.slane %v2354, 4
        %v2356 = vadd.f32 %v2354, %v2355
        %v2357 = vrot.slane %v2356, 2
        %v2358 = vadd.f32 %v2356, %v2357
        %v2359 = vrot.slane %v2358, 1
        %v2360 = vadd.f32 %v2358, %v2359
        %v2361 = vsel %vm755, %v2309, 0.0
        %v2362 = vrot.slane %v2361, 4
        %v2363 = vadd.f32 %v2361, %v2362
        %v2364 = vrot.slane %v2363, 2
        %v2365 = vadd.f32 %v2363, %v2364
        %v2366 = vrot.slane %v2365, 1
        %v2367 = vadd.f32 %v2365, %v2366
        %v2368 = vsel %vm755, %v2310, 0.0
        %v2369 = vrot.slane %v2368, 4
        %v2370 = vadd.f32 %v2368, %v2369
        %v2371 = vrot.slane %v2370, 2
        %v2372 = vadd.f32 %v2370, %v2371
        %v2373 = vrot.slane %v2372, 1
        %v2374 = vadd.f32 %v2372, %v2373
        %v2375 = vsel %vm755, %v2311, 0.0
        %v2376 = vrot.slane %v2375, 4
        %v2377 = vadd.f32 %v2375, %v2376
        %v2378 = vrot.slane %v2377, 2
        %v2379 = vadd.f32 %v2377, %v2378
        %v2380 = vrot.slane %v2379, 1
        %v2381 = vadd.f32 %v2379, %v2380
        %v2382 = vsel %vm755, %v2312, 0.0
        %v2383 = vrot.slane %v2382, 4
        %v2384 = vadd.f32 %v2382, %v2383
        %v2385 = vrot.slane %v2384, 2
        %v2386 = vadd.f32 %v2384, %v2385
        %v2387 = vrot.slane %v2386, 1
        %v2388 = vadd.f32 %v2386, %v2387
        %v2389 = vsel %vm755, %v2313, 0.0
        %v2390 = vrot.slane %v2389, 4
        %v2391 = vadd.f32 %v2389, %v2390
        %v2392 = vrot.slane %v2391, 2
        %v2393 = vadd.f32 %v2391, %v2392
        %v2394 = vrot.slane %v2393, 1
        %v2395 = vadd.f32 %v2393, %v2394
        %v2396 = vsel %vm755, %v2314, 0.0
        %v2397 = vrot.slane %v2396, 4
        %v2398 = vadd.f32 %v2396, %v2397
        %v2399 = vrot.slane %v2398, 2
        %v2400 = vadd.f32 %v2398, %v2399
        %v2401 = vrot.slane %v2400, 1
        %v2402 = vadd.f32 %v2400, %v2401
        %v2403 = vsel %vm755, %v2315, 0.0
        %v2404 = vrot.slane %v2403, 4
        %v2405 = vadd.f32 %v2403, %v2404
        %v2406 = vrot.slane %v2405, 2
        %v2407 = vadd.f32 %v2405, %v2406
        %v2408 = vrot.slane %v2407, 1
        %v2409 = vadd.f32 %v2407, %v2408
        %v2410 = vsel %vm755, %v2316, 0.0
        %v2411 = vrot.slane %v2410, 4
        %v2412 = vadd.f32 %v2410, %v2411
        %v2413 = vrot.slane %v2412, 2
        %v2414 = vadd.f32 %v2412, %v2413
        %v2415 = vrot.slane %v2414, 1
        %v2416 = vadd.f32 %v2414, %v2415
        %v2417 = vsel %vm755, %v2317, 0.0
        %v2418 = vrot.slane %v2417, 4
        %v2419 = vadd.f32 %v2417, %v2418
        %v2420 = vrot.slane %v2419, 2
        %v2421 = vadd.f32 %v2419, %v2420
        %v2422 = vrot.slane %v2421, 1
        %v2423 = vadd.f32 %v2421, %v2422
        %v2424 = vsel %vm755, %v2318, 0.0
        %v2425 = vrot.slane %v2424, 4
        %v2426 = vadd.f32 %v2424, %v2425
        %v2427 = vrot.slane %v2426, 2
        %v2428 = vadd.f32 %v2426, %v2427
        %v2429 = vrot.slane %v2428, 1
        %v2430 = vadd.f32 %v2428, %v2429
        %v2447 = vsel %vm884, %v2332, %v2325
        %v2448 = vsel %vm886, %v2339, %v2447
        %v2449 = vsel %vm888, %v2346, %v2448
        %v2450 = vsel %vm890, %v2353, %v2449
        %v2451 = vsel %vm892, %v2360, %v2450
        %v2452 = vsel %vm894, %v2367, %v2451
        %v2453 = vsel %vm896, %v2374, %v2452
        %v2454 = vsel %vm884, %v2388, %v2381
        %v2455 = vsel %vm886, %v2395, %v2454
        %v2456 = vsel %vm888, %v2402, %v2455
        %v2457 = vsel %vm890, %v2409, %v2456
        %v2458 = vsel %vm892, %v2416, %v2457
        %v2459 = vsel %vm894, %v2423, %v2458
        %v2460 = vsel %vm896, %v2430, %v2459
        %2461 = vrot.lane.b32.xlu0 %v2453, 16
        %v2462 = vpop.permute.xlu0 %2461
        %2463 = vrot.lane.b32.xlu0 %v2460, 16
        %v2464 = vpop.permute.xlu0 %2463
        %2467 = vst.msk [vmem:[#allocation2 + $0x8] sm:$0xff] %vm1080, %v2462
        %2468 = vst.msk [vmem:[#allocation2 + $0x18] sm:$0xff] %vm1080, %v2464
        %v2469 = vlaneseq
        %v2470 = vshrl.u32 %v2469, 7
        %v2471 = vsub.s32 2, %v2470
        %v2472 = vrot.slane %v731, %v2471
        %2474 = vbcast.lane.b32.xlu0 %v2472, 256
        %v2475 = vpop.permute.xlu0 %2474
        %v2476 = vmul.f32 %v652, %v2475
        %v2477 = vmul.f32 %v657, %v2475
        %v2478 = vmul.f32 %v662, %v2475
        %v2479 = vmul.f32 %v667, %v2475
        %v2480 = vmul.f32 %v672, %v2475
        %v2481 = vmul.f32 %v677, %v2475
        %v2482 = vmul.f32 %v682, %v2475
        %v2483 = vmul.f32 %v687, %v2475
        %v2484 = vmul.f32 %v692, %v2475
        %v2485 = vmul.f32 %v697, %v2475
        %v2486 = vmul.f32 %v702, %v2475
        %v2487 = vmul.f32 %v707, %v2475
        %v2488 = vmul.f32 %v712, %v2475
        %v2489 = vmul.f32 %v717, %v2475
        %v2490 = vmul.f32 %v722, %v2475
        %v2491 = vmul.f32 %v727, %v2475
        %v2492 = vsel %vm755, %v2476, 0.0
        %v2493 = vrot.slane %v2492, 4
        %v2494 = vadd.f32 %v2492, %v2493
        %v2495 = vrot.slane %v2494, 2
        %v2496 = vadd.f32 %v2494, %v2495
        %v2497 = vrot.slane %v2496, 1
        %v2498 = vadd.f32 %v2496, %v2497
        %v2499 = vsel %vm755, %v2477, 0.0
        %v2500 = vrot.slane %v2499, 4
        %v2501 = vadd.f32 %v2499, %v2500
        %v2502 = vrot.slane %v2501, 2
        %v2503 = vadd.f32 %v2501, %v2502
        %v2504 = vrot.slane %v2503, 1
        %v2505 = vadd.f32 %v2503, %v2504
        %v2506 = vsel %vm755, %v2478, 0.0
        %v2507 = vrot.slane %v2506, 4
        %v2508 = vadd.f32 %v2506, %v2507
        %v2509 = vrot.slane %v2508, 2
        %v2510 = vadd.f32 %v2508, %v2509
        %v2511 = vrot.slane %v2510, 1
        %v2512 = vadd.f32 %v2510, %v2511
        %v2513 = vsel %vm755, %v2479, 0.0
        %v2514 = vrot.slane %v2513, 4
        %v2515 = vadd.f32 %v2513, %v2514
        %v2516 = vrot.slane %v2515, 2
        %v2517 = vadd.f32 %v2515, %v2516
        %v2518 = vrot.slane %v2517, 1
        %v2519 = vadd.f32 %v2517, %v2518
        %v2520 = vsel %vm755, %v2480, 0.0
        %v2521 = vrot.slane %v2520, 4
        %v2522 = vadd.f32 %v2520, %v2521
        %v2523 = vrot.slane %v2522, 2
        %v2524 = vadd.f32 %v2522, %v2523
        %v2525 = vrot.slane %v2524, 1
        %v2526 = vadd.f32 %v2524, %v2525
        %v2527 = vsel %vm755, %v2481, 0.0
        %v2528 = vrot.slane %v2527, 4
        %v2529 = vadd.f32 %v2527, %v2528
        %v2530 = vrot.slane %v2529, 2
        %v2531 = vadd.f32 %v2529, %v2530
        %v2532 = vrot.slane %v2531, 1
        %v2533 = vadd.f32 %v2531, %v2532
        %v2534 = vsel %vm755, %v2482, 0.0
        %v2535 = vrot.slane %v2534, 4
        %v2536 = vadd.f32 %v2534, %v2535
        %v2537 = vrot.slane %v2536, 2
        %v2538 = vadd.f32 %v2536, %v2537
        %v2539 = vrot.slane %v2538, 1
        %v2540 = vadd.f32 %v2538, %v2539
        %v2541 = vsel %vm755, %v2483, 0.0
        %v2542 = vrot.slane %v2541, 4
        %v2543 = vadd.f32 %v2541, %v2542
        %v2544 = vrot.slane %v2543, 2
        %v2545 = vadd.f32 %v2543, %v2544
        %v2546 = vrot.slane %v2545, 1
        %v2547 = vadd.f32 %v2545, %v2546
        %v2548 = vsel %vm755, %v2484, 0.0
        %v2549 = vrot.slane %v2548, 4
        %v2550 = vadd.f32 %v2548, %v2549
        %v2551 = vrot.slane %v2550, 2
        %v2552 = vadd.f32 %v2550, %v2551
        %v2553 = vrot.slane %v2552, 1
        %v2554 = vadd.f32 %v2552, %v2553
        %v2555 = vsel %vm755, %v2485, 0.0
        %v2556 = vrot.slane %v2555, 4
        %v2557 = vadd.f32 %v2555, %v2556
        %v2558 = vrot.slane %v2557, 2
        %v2559 = vadd.f32 %v2557, %v2558
        %v2560 = vrot.slane %v2559, 1
        %v2561 = vadd.f32 %v2559, %v2560
        %v2562 = vsel %vm755, %v2486, 0.0
        %v2563 = vrot.slane %v2562, 4
        %v2564 = vadd.f32 %v2562, %v2563
        %v2565 = vrot.slane %v2564, 2
        %v2566 = vadd.f32 %v2564, %v2565
        %v2567 = vrot.slane %v2566, 1
        %v2568 = vadd.f32 %v2566, %v2567
        %v2569 = vsel %vm755, %v2487, 0.0
        %v2570 = vrot.slane %v2569, 4
        %v2571 = vadd.f32 %v2569, %v2570
        %v2572 = vrot.slane %v2571, 2
        %v2573 = vadd.f32 %v2571, %v2572
        %v2574 = vrot.slane %v2573, 1
        %v2575 = vadd.f32 %v2573, %v2574
        %v2576 = vsel %vm755, %v2488, 0.0
        %v2577 = vrot.slane %v2576, 4
        %v2578 = vadd.f32 %v2576, %v2577
        %v2579 = vrot.slane %v2578, 2
        %v2580 = vadd.f32 %v2578, %v2579
        %v2581 = vrot.slane %v2580, 1
        %v2582 = vadd.f32 %v2580, %v2581
        %v2583 = vsel %vm755, %v2489, 0.0
        %v2584 = vrot.slane %v2583, 4
        %v2585 = vadd.f32 %v2583, %v2584
        %v2586 = vrot.slane %v2585, 2
        %v2587 = vadd.f32 %v2585, %v2586
        %v2588 = vrot.slane %v2587, 1
        %v2589 = vadd.f32 %v2587, %v2588
        %v2590 = vsel %vm755, %v2490, 0.0
        %v2591 = vrot.slane %v2590, 4
        %v2592 = vadd.f32 %v2590, %v2591
        %v2593 = vrot.slane %v2592, 2
        %v2594 = vadd.f32 %v2592, %v2593
        %v2595 = vrot.slane %v2594, 1
        %v2596 = vadd.f32 %v2594, %v2595
        %v2597 = vsel %vm755, %v2491, 0.0
        %v2598 = vrot.slane %v2597, 4
        %v2599 = vadd.f32 %v2597, %v2598
        %v2600 = vrot.slane %v2599, 2
        %v2601 = vadd.f32 %v2599, %v2600
        %v2602 = vrot.slane %v2601, 1
        %v2603 = vadd.f32 %v2601, %v2602
        %v2620 = vsel %vm884, %v2505, %v2498
        %v2621 = vsel %vm886, %v2512, %v2620
        %v2622 = vsel %vm888, %v2519, %v2621
        %v2623 = vsel %vm890, %v2526, %v2622
        %v2624 = vsel %vm892, %v2533, %v2623
        %v2625 = vsel %vm894, %v2540, %v2624
        %v2626 = vsel %vm896, %v2547, %v2625
        %v2627 = vsel %vm884, %v2561, %v2554
        %v2628 = vsel %vm886, %v2568, %v2627
        %v2629 = vsel %vm888, %v2575, %v2628
        %v2630 = vsel %vm890, %v2582, %v2629
        %v2631 = vsel %vm892, %v2589, %v2630
        %v2632 = vsel %vm894, %v2596, %v2631
        %v2633 = vsel %vm896, %v2603, %v2632
        %2634 = vrot.lane.b32.xlu0 %v2626, 32
        %v2635 = vpop.permute.xlu0 %2634
        %2636 = vrot.lane.b32.xlu0 %v2633, 32
        %v2637 = vpop.permute.xlu0 %2636
        %2640 = vst.msk [vmem:[#allocation2 + $0x8] sm:$0xff] %vm1254, %v2635
        %2641 = vst.msk [vmem:[#allocation2 + $0x18] sm:$0xff] %vm1254, %v2637
        %v2642 = vlaneseq
        %v2643 = vshrl.u32 %v2642, 7
        %v2644 = vsub.s32 3, %v2643
        %v2645 = vrot.slane %v731, %v2644
        %2647 = vbcast.lane.b32.xlu0 %v2645, 256
        %v2648 = vpop.permute.xlu0 %2647
        %v2649 = vmul.f32 %v652, %v2648
        %v2650 = vmul.f32 %v657, %v2648
        %v2651 = vmul.f32 %v662, %v2648
        %v2652 = vmul.f32 %v667, %v2648
        %v2653 = vmul.f32 %v672, %v2648
        %v2654 = vmul.f32 %v677, %v2648
        %v2655 = vmul.f32 %v682, %v2648
        %v2656 = vmul.f32 %v687, %v2648
        %v2657 = vmul.f32 %v692, %v2648
        %v2658 = vmul.f32 %v697, %v2648
        %v2659 = vmul.f32 %v702, %v2648
        %v2660 = vmul.f32 %v707, %v2648
        %v2661 = vmul.f32 %v712, %v2648
        %v2662 = vmul.f32 %v717, %v2648
        %v2663 = vmul.f32 %v722, %v2648
        %v2664 = vmul.f32 %v727, %v2648
        %v2665 = vsel %vm755, %v2649, 0.0
        %v2666 = vrot.slane %v2665, 4
        %v2667 = vadd.f32 %v2665, %v2666
        %v2668 = vrot.slane %v2667, 2
        %v2669 = vadd.f32 %v2667, %v2668
        %v2670 = vrot.slane %v2669, 1
        %v2671 = vadd.f32 %v2669, %v2670
        %v2672 = vsel %vm755, %v2650, 0.0
        %v2673 = vrot.slane %v2672, 4
        %v2674 = vadd.f32 %v2672, %v2673
        %v2675 = vrot.slane %v2674, 2
        %v2676 = vadd.f32 %v2674, %v2675
        %v2677 = vrot.slane %v2676, 1
        %v2678 = vadd.f32 %v2676, %v2677
        %v2679 = vsel %vm755, %v2651, 0.0
        %v2680 = vrot.slane %v2679, 4
        %v2681 = vadd.f32 %v2679, %v2680
        %v2682 = vrot.slane %v2681, 2
        %v2683 = vadd.f32 %v2681, %v2682
        %v2684 = vrot.slane %v2683, 1
        %v2685 = vadd.f32 %v2683, %v2684
        %v2686 = vsel %vm755, %v2652, 0.0
        %v2687 = vrot.slane %v2686, 4
        %v2688 = vadd.f32 %v2686, %v2687
        %v2689 = vrot.slane %v2688, 2
        %v2690 = vadd.f32 %v2688, %v2689
        %v2691 = vrot.slane %v2690, 1
        %v2692 = vadd.f32 %v2690, %v2691
        %v2693 = vsel %vm755, %v2653, 0.0
        %v2694 = vrot.slane %v2693, 4
        %v2695 = vadd.f32 %v2693, %v2694
        %v2696 = vrot.slane %v2695, 2
        %v2697 = vadd.f32 %v2695, %v2696
        %v2698 = vrot.slane %v2697, 1
        %v2699 = vadd.f32 %v2697, %v2698
        %v2700 = vsel %vm755, %v2654, 0.0
        %v2701 = vrot.slane %v2700, 4
        %v2702 = vadd.f32 %v2700, %v2701
        %v2703 = vrot.slane %v2702, 2
        %v2704 = vadd.f32 %v2702, %v2703
        %v2705 = vrot.slane %v2704, 1
        %v2706 = vadd.f32 %v2704, %v2705
        %v2707 = vsel %vm755, %v2655, 0.0
        %v2708 = vrot.slane %v2707, 4
        %v2709 = vadd.f32 %v2707, %v2708
        %v2710 = vrot.slane %v2709, 2
        %v2711 = vadd.f32 %v2709, %v2710
        %v2712 = vrot.slane %v2711, 1
        %v2713 = vadd.f32 %v2711, %v2712
        %v2714 = vsel %vm755, %v2656, 0.0
        %v2715 = vrot.slane %v2714, 4
        %v2716 = vadd.f32 %v2714, %v2715
        %v2717 = vrot.slane %v2716, 2
        %v2718 = vadd.f32 %v2716, %v2717
        %v2719 = vrot.slane %v2718, 1
        %v2720 = vadd.f32 %v2718, %v2719
        %v2721 = vsel %vm755, %v2657, 0.0
        %v2722 = vrot.slane %v2721, 4
        %v2723 = vadd.f32 %v2721, %v2722
        %v2724 = vrot.slane %v2723, 2
        %v2725 = vadd.f32 %v2723, %v2724
        %v2726 = vrot.slane %v2725, 1
        %v2727 = vadd.f32 %v2725, %v2726
        %v2728 = vsel %vm755, %v2658, 0.0
        %v2729 = vrot.slane %v2728, 4
        %v2730 = vadd.f32 %v2728, %v2729
        %v2731 = vrot.slane %v2730, 2
        %v2732 = vadd.f32 %v2730, %v2731
        %v2733 = vrot.slane %v2732, 1
        %v2734 = vadd.f32 %v2732, %v2733
        %v2735 = vsel %vm755, %v2659, 0.0
        %v2736 = vrot.slane %v2735, 4
        %v2737 = vadd.f32 %v2735, %v2736
        %v2738 = vrot.slane %v2737, 2
        %v2739 = vadd.f32 %v2737, %v2738
        %v2740 = vrot.slane %v2739, 1
        %v2741 = vadd.f32 %v2739, %v2740
        %v2742 = vsel %vm755, %v2660, 0.0
        %v2743 = vrot.slane %v2742, 4
        %v2744 = vadd.f32 %v2742, %v2743
        %v2745 = vrot.slane %v2744, 2
        %v2746 = vadd.f32 %v2744, %v2745
        %v2747 = vrot.slane %v2746, 1
        %v2748 = vadd.f32 %v2746, %v2747
        %v2749 = vsel %vm755, %v2661, 0.0
        %v2750 = vrot.slane %v2749, 4
        %v2751 = vadd.f32 %v2749, %v2750
        %v2752 = vrot.slane %v2751, 2
        %v2753 = vadd.f32 %v2751, %v2752
        %v2754 = vrot.slane %v2753, 1
        %v2755 = vadd.f32 %v2753, %v2754
        %v2756 = vsel %vm755, %v2662, 0.0
        %v2757 = vrot.slane %v2756, 4
        %v2758 = vadd.f32 %v2756, %v2757
        %v2759 = vrot.slane %v2758, 2
        %v2760 = vadd.f32 %v2758, %v2759
        %v2761 = vrot.slane %v2760, 1
        %v2762 = vadd.f32 %v2760, %v2761
        %v2763 = vsel %vm755, %v2663, 0.0
        %v2764 = vrot.slane %v2763, 4
        %v2765 = vadd.f32 %v2763, %v2764
        %v2766 = vrot.slane %v2765, 2
        %v2767 = vadd.f32 %v2765, %v2766
        %v2768 = vrot.slane %v2767, 1
        %v2769 = vadd.f32 %v2767, %v2768
        %v2770 = vsel %vm755, %v2664, 0.0
        %v2771 = vrot.slane %v2770, 4
        %v2772 = vadd.f32 %v2770, %v2771
        %v2773 = vrot.slane %v2772, 2
        %v2774 = vadd.f32 %v2772, %v2773
        %v2775 = vrot.slane %v2774, 1
        %v2776 = vadd.f32 %v2774, %v2775
        %v2793 = vsel %vm884, %v2678, %v2671
        %v2794 = vsel %vm886, %v2685, %v2793
        %v2795 = vsel %vm888, %v2692, %v2794
        %v2796 = vsel %vm890, %v2699, %v2795
        %v2797 = vsel %vm892, %v2706, %v2796
        %v2798 = vsel %vm894, %v2713, %v2797
        %v2799 = vsel %vm896, %v2720, %v2798
        %v2800 = vsel %vm884, %v2734, %v2727
        %v2801 = vsel %vm886, %v2741, %v2800
        %v2802 = vsel %vm888, %v2748, %v2801
        %v2803 = vsel %vm890, %v2755, %v2802
        %v2804 = vsel %vm892, %v2762, %v2803
        %v2805 = vsel %vm894, %v2769, %v2804
        %v2806 = vsel %vm896, %v2776, %v2805
        %2807 = vrot.lane.b32.xlu0 %v2799, 48
        %v2808 = vpop.permute.xlu0 %2807
        %2809 = vrot.lane.b32.xlu0 %v2806, 48
        %v2810 = vpop.permute.xlu0 %2809
        %2813 = vst.msk [vmem:[#allocation2 + $0x8] sm:$0xff] %vm1428, %v2808
        %2814 = vst.msk [vmem:[#allocation2 + $0x18] sm:$0xff] %vm1428, %v2810
        %v2815 = vlaneseq
        %v2816 = vshrl.u32 %v2815, 7
        %v2817 = vsub.s32 4, %v2816
        %v2818 = vrot.slane %v731, %v2817
        %2820 = vbcast.lane.b32.xlu0 %v2818, 256
        %v2821 = vpop.permute.xlu0 %2820
        %v2822 = vmul.f32 %v652, %v2821
        %v2823 = vmul.f32 %v657, %v2821
        %v2824 = vmul.f32 %v662, %v2821
        %v2825 = vmul.f32 %v667, %v2821
        %v2826 = vmul.f32 %v672, %v2821
        %v2827 = vmul.f32 %v677, %v2821
        %v2828 = vmul.f32 %v682, %v2821
        %v2829 = vmul.f32 %v687, %v2821
        %v2830 = vmul.f32 %v692, %v2821
        %v2831 = vmul.f32 %v697, %v2821
        %v2832 = vmul.f32 %v702, %v2821
        %v2833 = vmul.f32 %v707, %v2821
        %v2834 = vmul.f32 %v712, %v2821
        %v2835 = vmul.f32 %v717, %v2821
        %v2836 = vmul.f32 %v722, %v2821
        %v2837 = vmul.f32 %v727, %v2821
        %v2838 = vsel %vm755, %v2822, 0.0
        %v2839 = vrot.slane %v2838, 4
        %v2840 = vadd.f32 %v2838, %v2839
        %v2841 = vrot.slane %v2840, 2
        %v2842 = vadd.f32 %v2840, %v2841
        %v2843 = vrot.slane %v2842, 1
        %v2844 = vadd.f32 %v2842, %v2843
        %v2845 = vsel %vm755, %v2823, 0.0
        %v2846 = vrot.slane %v2845, 4
        %v2847 = vadd.f32 %v2845, %v2846
        %v2848 = vrot.slane %v2847, 2
        %v2849 = vadd.f32 %v2847, %v2848
        %v2850 = vrot.slane %v2849, 1
        %v2851 = vadd.f32 %v2849, %v2850
        %v2852 = vsel %vm755, %v2824, 0.0
        %v2853 = vrot.slane %v2852, 4
        %v2854 = vadd.f32 %v2852, %v2853
        %v2855 = vrot.slane %v2854, 2
        %v2856 = vadd.f32 %v2854, %v2855
        %v2857 = vrot.slane %v2856, 1
        %v2858 = vadd.f32 %v2856, %v2857
        %v2859 = vsel %vm755, %v2825, 0.0
        %v2860 = vrot.slane %v2859, 4
        %v2861 = vadd.f32 %v2859, %v2860
        %v2862 = vrot.slane %v2861, 2
        %v2863 = vadd.f32 %v2861, %v2862
        %v2864 = vrot.slane %v2863, 1
        %v2865 = vadd.f32 %v2863, %v2864
        %v2866 = vsel %vm755, %v2826, 0.0
        %v2867 = vrot.slane %v2866, 4
        %v2868 = vadd.f32 %v2866, %v2867
        %v2869 = vrot.slane %v2868, 2
        %v2870 = vadd.f32 %v2868, %v2869
        %v2871 = vrot.slane %v2870, 1
        %v2872 = vadd.f32 %v2870, %v2871
        %v2873 = vsel %vm755, %v2827, 0.0
        %v2874 = vrot.slane %v2873, 4
        %v2875 = vadd.f32 %v2873, %v2874
        %v2876 = vrot.slane %v2875, 2
        %v2877 = vadd.f32 %v2875, %v2876
        %v2878 = vrot.slane %v2877, 1
        %v2879 = vadd.f32 %v2877, %v2878
        %v2880 = vsel %vm755, %v2828, 0.0
        %v2881 = vrot.slane %v2880, 4
        %v2882 = vadd.f32 %v2880, %v2881
        %v2883 = vrot.slane %v2882, 2
        %v2884 = vadd.f32 %v2882, %v2883
        %v2885 = vrot.slane %v2884, 1
        %v2886 = vadd.f32 %v2884, %v2885
        %v2887 = vsel %vm755, %v2829, 0.0
        %v2888 = vrot.slane %v2887, 4
        %v2889 = vadd.f32 %v2887, %v2888
        %v2890 = vrot.slane %v2889, 2
        %v2891 = vadd.f32 %v2889, %v2890
        %v2892 = vrot.slane %v2891, 1
        %v2893 = vadd.f32 %v2891, %v2892
        %v2894 = vsel %vm755, %v2830, 0.0
        %v2895 = vrot.slane %v2894, 4
        %v2896 = vadd.f32 %v2894, %v2895
        %v2897 = vrot.slane %v2896, 2
        %v2898 = vadd.f32 %v2896, %v2897
        %v2899 = vrot.slane %v2898, 1
        %v2900 = vadd.f32 %v2898, %v2899
        %v2901 = vsel %vm755, %v2831, 0.0
        %v2902 = vrot.slane %v2901, 4
        %v2903 = vadd.f32 %v2901, %v2902
        %v2904 = vrot.slane %v2903, 2
        %v2905 = vadd.f32 %v2903, %v2904
        %v2906 = vrot.slane %v2905, 1
        %v2907 = vadd.f32 %v2905, %v2906
        %v2908 = vsel %vm755, %v2832, 0.0
        %v2909 = vrot.slane %v2908, 4
        %v2910 = vadd.f32 %v2908, %v2909
        %v2911 = vrot.slane %v2910, 2
        %v2912 = vadd.f32 %v2910, %v2911
        %v2913 = vrot.slane %v2912, 1
        %v2914 = vadd.f32 %v2912, %v2913
        %v2915 = vsel %vm755, %v2833, 0.0
        %v2916 = vrot.slane %v2915, 4
        %v2917 = vadd.f32 %v2915, %v2916
        %v2918 = vrot.slane %v2917, 2
        %v2919 = vadd.f32 %v2917, %v2918
        %v2920 = vrot.slane %v2919, 1
        %v2921 = vadd.f32 %v2919, %v2920
        %v2922 = vsel %vm755, %v2834, 0.0
        %v2923 = vrot.slane %v2922, 4
        %v2924 = vadd.f32 %v2922, %v2923
        %v2925 = vrot.slane %v2924, 2
        %v2926 = vadd.f32 %v2924, %v2925
        %v2927 = vrot.slane %v2926, 1
        %v2928 = vadd.f32 %v2926, %v2927
        %v2929 = vsel %vm755, %v2835, 0.0
        %v2930 = vrot.slane %v2929, 4
        %v2931 = vadd.f32 %v2929, %v2930
        %v2932 = vrot.slane %v2931, 2
        %v2933 = vadd.f32 %v2931, %v2932
        %v2934 = vrot.slane %v2933, 1
        %v2935 = vadd.f32 %v2933, %v2934
        %v2936 = vsel %vm755, %v2836, 0.0
        %v2937 = vrot.slane %v2936, 4
        %v2938 = vadd.f32 %v2936, %v2937
        %v2939 = vrot.slane %v2938, 2
        %v2940 = vadd.f32 %v2938, %v2939
        %v2941 = vrot.slane %v2940, 1
        %v2942 = vadd.f32 %v2940, %v2941
        %v2943 = vsel %vm755, %v2837, 0.0
        %v2944 = vrot.slane %v2943, 4
        %v2945 = vadd.f32 %v2943, %v2944
        %v2946 = vrot.slane %v2945, 2
        %v2947 = vadd.f32 %v2945, %v2946
        %v2948 = vrot.slane %v2947, 1
        %v2949 = vadd.f32 %v2947, %v2948
        %v2966 = vsel %vm884, %v2851, %v2844
        %v2967 = vsel %vm886, %v2858, %v2966
        %v2968 = vsel %vm888, %v2865, %v2967
        %v2969 = vsel %vm890, %v2872, %v2968
        %v2970 = vsel %vm892, %v2879, %v2969
        %v2971 = vsel %vm894, %v2886, %v2970
        %v2972 = vsel %vm896, %v2893, %v2971
        %v2973 = vsel %vm884, %v2907, %v2900
        %v2974 = vsel %vm886, %v2914, %v2973
        %v2975 = vsel %vm888, %v2921, %v2974
        %v2976 = vsel %vm890, %v2928, %v2975
        %v2977 = vsel %vm892, %v2935, %v2976
        %v2978 = vsel %vm894, %v2942, %v2977
        %v2979 = vsel %vm896, %v2949, %v2978
        %2980 = vrot.lane.b32.xlu0 %v2972, 64
        %v2981 = vpop.permute.xlu0 %2980
        %2982 = vrot.lane.b32.xlu0 %v2979, 64
        %v2983 = vpop.permute.xlu0 %2982
        %2986 = vst.msk [vmem:[#allocation2 + $0x8] sm:$0xff] %vm1602, %v2981
        %2987 = vst.msk [vmem:[#allocation2 + $0x18] sm:$0xff] %vm1602, %v2983
        %v2988 = vlaneseq
        %v2989 = vshrl.u32 %v2988, 7
        %v2990 = vsub.s32 5, %v2989
        %v2991 = vrot.slane %v731, %v2990
        %2993 = vbcast.lane.b32.xlu0 %v2991, 256
        %v2994 = vpop.permute.xlu0 %2993
        %v2995 = vmul.f32 %v652, %v2994
        %v2996 = vmul.f32 %v657, %v2994
        %v2997 = vmul.f32 %v662, %v2994
        %v2998 = vmul.f32 %v667, %v2994
        %v2999 = vmul.f32 %v672, %v2994
        %v3000 = vmul.f32 %v677, %v2994
        %v3001 = vmul.f32 %v682, %v2994
        %v3002 = vmul.f32 %v687, %v2994
        %v3003 = vmul.f32 %v692, %v2994
        %v3004 = vmul.f32 %v697, %v2994
        %v3005 = vmul.f32 %v702, %v2994
        %v3006 = vmul.f32 %v707, %v2994
        %v3007 = vmul.f32 %v712, %v2994
        %v3008 = vmul.f32 %v717, %v2994
        %v3009 = vmul.f32 %v722, %v2994
        %v3010 = vmul.f32 %v727, %v2994
        %v3011 = vsel %vm755, %v2995, 0.0
        %v3012 = vrot.slane %v3011, 4
        %v3013 = vadd.f32 %v3011, %v3012
        %v3014 = vrot.slane %v3013, 2
        %v3015 = vadd.f32 %v3013, %v3014
        %v3016 = vrot.slane %v3015, 1
        %v3017 = vadd.f32 %v3015, %v3016
        %v3018 = vsel %vm755, %v2996, 0.0
        %v3019 = vrot.slane %v3018, 4
        %v3020 = vadd.f32 %v3018, %v3019
        %v3021 = vrot.slane %v3020, 2
        %v3022 = vadd.f32 %v3020, %v3021
        %v3023 = vrot.slane %v3022, 1
        %v3024 = vadd.f32 %v3022, %v3023
        %v3025 = vsel %vm755, %v2997, 0.0
        %v3026 = vrot.slane %v3025, 4
        %v3027 = vadd.f32 %v3025, %v3026
        %v3028 = vrot.slane %v3027, 2
        %v3029 = vadd.f32 %v3027, %v3028
        %v3030 = vrot.slane %v3029, 1
        %v3031 = vadd.f32 %v3029, %v3030
        %v3032 = vsel %vm755, %v2998, 0.0
        %v3033 = vrot.slane %v3032, 4
        %v3034 = vadd.f32 %v3032, %v3033
        %v3035 = vrot.slane %v3034, 2
        %v3036 = vadd.f32 %v3034, %v3035
        %v3037 = vrot.slane %v3036, 1
        %v3038 = vadd.f32 %v3036, %v3037
        %v3039 = vsel %vm755, %v2999, 0.0
        %v3040 = vrot.slane %v3039, 4
        %v3041 = vadd.f32 %v3039, %v3040
        %v3042 = vrot.slane %v3041, 2
        %v3043 = vadd.f32 %v3041, %v3042
        %v3044 = vrot.slane %v3043, 1
        %v3045 = vadd.f32 %v3043, %v3044
        %v3046 = vsel %vm755, %v3000, 0.0
        %v3047 = vrot.slane %v3046, 4
        %v3048 = vadd.f32 %v3046, %v3047
        %v3049 = vrot.slane %v3048, 2
        %v3050 = vadd.f32 %v3048, %v3049
        %v3051 = vrot.slane %v3050, 1
        %v3052 = vadd.f32 %v3050, %v3051
        %v3053 = vsel %vm755, %v3001, 0.0
        %v3054 = vrot.slane %v3053, 4
        %v3055 = vadd.f32 %v3053, %v3054
        %v3056 = vrot.slane %v3055, 2
        %v3057 = vadd.f32 %v3055, %v3056
        %v3058 = vrot.slane %v3057, 1
        %v3059 = vadd.f32 %v3057, %v3058
        %v3060 = vsel %vm755, %v3002, 0.0
        %v3061 = vrot.slane %v3060, 4
        %v3062 = vadd.f32 %v3060, %v3061
        %v3063 = vrot.slane %v3062, 2
        %v3064 = vadd.f32 %v3062, %v3063
        %v3065 = vrot.slane %v3064, 1
        %v3066 = vadd.f32 %v3064, %v3065
        %v3067 = vsel %vm755, %v3003, 0.0
        %v3068 = vrot.slane %v3067, 4
        %v3069 = vadd.f32 %v3067, %v3068
        %v3070 = vrot.slane %v3069, 2
        %v3071 = vadd.f32 %v3069, %v3070
        %v3072 = vrot.slane %v3071, 1
        %v3073 = vadd.f32 %v3071, %v3072
        %v3074 = vsel %vm755, %v3004, 0.0
        %v3075 = vrot.slane %v3074, 4
        %v3076 = vadd.f32 %v3074, %v3075
        %v3077 = vrot.slane %v3076, 2
        %v3078 = vadd.f32 %v3076, %v3077
        %v3079 = vrot.slane %v3078, 1
        %v3080 = vadd.f32 %v3078, %v3079
        %v3081 = vsel %vm755, %v3005, 0.0
        %v3082 = vrot.slane %v3081, 4
        %v3083 = vadd.f32 %v3081, %v3082
        %v3084 = vrot.slane %v3083, 2
        %v3085 = vadd.f32 %v3083, %v3084
        %v3086 = vrot.slane %v3085, 1
        %v3087 = vadd.f32 %v3085, %v3086
        %v3088 = vsel %vm755, %v3006, 0.0
        %v3089 = vrot.slane %v3088, 4
        %v3090 = vadd.f32 %v3088, %v3089
        %v3091 = vrot.slane %v3090, 2
        %v3092 = vadd.f32 %v3090, %v3091
        %v3093 = vrot.slane %v3092, 1
        %v3094 = vadd.f32 %v3092, %v3093
        %v3095 = vsel %vm755, %v3007, 0.0
        %v3096 = vrot.slane %v3095, 4
        %v3097 = vadd.f32 %v3095, %v3096
        %v3098 = vrot.slane %v3097, 2
        %v3099 = vadd.f32 %v3097, %v3098
        %v3100 = vrot.slane %v3099, 1
        %v3101 = vadd.f32 %v3099, %v3100
        %v3102 = vsel %vm755, %v3008, 0.0
        %v3103 = vrot.slane %v3102, 4
        %v3104 = vadd.f32 %v3102, %v3103
        %v3105 = vrot.slane %v3104, 2
        %v3106 = vadd.f32 %v3104, %v3105
        %v3107 = vrot.slane %v3106, 1
        %v3108 = vadd.f32 %v3106, %v3107
        %v3109 = vsel %vm755, %v3009, 0.0
        %v3110 = vrot.slane %v3109, 4
        %v3111 = vadd.f32 %v3109, %v3110
        %v3112 = vrot.slane %v3111, 2
        %v3113 = vadd.f32 %v3111, %v3112
        %v3114 = vrot.slane %v3113, 1
        %v3115 = vadd.f32 %v3113, %v3114
        %v3116 = vsel %vm755, %v3010, 0.0
        %v3117 = vrot.slane %v3116, 4
        %v3118 = vadd.f32 %v3116, %v3117
        %v3119 = vrot.slane %v3118, 2
        %v3120 = vadd.f32 %v3118, %v3119
        %v3121 = vrot.slane %v3120, 1
        %v3122 = vadd.f32 %v3120, %v3121
        %v3139 = vsel %vm884, %v3024, %v3017
        %v3140 = vsel %vm886, %v3031, %v3139
        %v3141 = vsel %vm888, %v3038, %v3140
        %v3142 = vsel %vm890, %v3045, %v3141
        %v3143 = vsel %vm892, %v3052, %v3142
        %v3144 = vsel %vm894, %v3059, %v3143
        %v3145 = vsel %vm896, %v3066, %v3144
        %v3146 = vsel %vm884, %v3080, %v3073
        %v3147 = vsel %vm886, %v3087, %v3146
        %v3148 = vsel %vm888, %v3094, %v3147
        %v3149 = vsel %vm890, %v3101, %v3148
        %v3150 = vsel %vm892, %v3108, %v3149
        %v3151 = vsel %vm894, %v3115, %v3150
        %v3152 = vsel %vm896, %v3122, %v3151
        %3153 = vrot.lane.b32.xlu0 %v3145, 80
        %v3154 = vpop.permute.xlu0 %3153
        %3155 = vrot.lane.b32.xlu0 %v3152, 80
        %v3156 = vpop.permute.xlu0 %3155
        %3159 = vst.msk [vmem:[#allocation2 + $0x8] sm:$0xff] %vm1776, %v3154
        %3160 = vst.msk [vmem:[#allocation2 + $0x18] sm:$0xff] %vm1776, %v3156
        %v3161 = vlaneseq
        %v3162 = vshrl.u32 %v3161, 7
        %v3163 = vsub.s32 6, %v3162
        %v3164 = vrot.slane %v731, %v3163
        %3166 = vbcast.lane.b32.xlu0 %v3164, 256
        %v3167 = vpop.permute.xlu0 %3166
        %v3168 = vmul.f32 %v652, %v3167
        %v3169 = vmul.f32 %v657, %v3167
        %v3170 = vmul.f32 %v662, %v3167
        %v3171 = vmul.f32 %v667, %v3167
        %v3172 = vmul.f32 %v672, %v3167
        %v3173 = vmul.f32 %v677, %v3167
        %v3174 = vmul.f32 %v682, %v3167
        %v3175 = vmul.f32 %v687, %v3167
        %v3176 = vmul.f32 %v692, %v3167
        %v3177 = vmul.f32 %v697, %v3167
        %v3178 = vmul.f32 %v702, %v3167
        %v3179 = vmul.f32 %v707, %v3167
        %v3180 = vmul.f32 %v712, %v3167
        %v3181 = vmul.f32 %v717, %v3167
        %v3182 = vmul.f32 %v722, %v3167
        %v3183 = vmul.f32 %v727, %v3167
        %v3184 = vsel %vm755, %v3168, 0.0
        %v3185 = vrot.slane %v3184, 4
        %v3186 = vadd.f32 %v3184, %v3185
        %v3187 = vrot.slane %v3186, 2
        %v3188 = vadd.f32 %v3186, %v3187
        %v3189 = vrot.slane %v3188, 1
        %v3190 = vadd.f32 %v3188, %v3189
        %v3191 = vsel %vm755, %v3169, 0.0
        %v3192 = vrot.slane %v3191, 4
        %v3193 = vadd.f32 %v3191, %v3192
        %v3194 = vrot.slane %v3193, 2
        %v3195 = vadd.f32 %v3193, %v3194
        %v3196 = vrot.slane %v3195, 1
        %v3197 = vadd.f32 %v3195, %v3196
        %v3198 = vsel %vm755, %v3170, 0.0
        %v3199 = vrot.slane %v3198, 4
        %v3200 = vadd.f32 %v3198, %v3199
        %v3201 = vrot.slane %v3200, 2
        %v3202 = vadd.f32 %v3200, %v3201
        %v3203 = vrot.slane %v3202, 1
        %v3204 = vadd.f32 %v3202, %v3203
        %v3205 = vsel %vm755, %v3171, 0.0
        %v3206 = vrot.slane %v3205, 4
        %v3207 = vadd.f32 %v3205, %v3206
        %v3208 = vrot.slane %v3207, 2
        %v3209 = vadd.f32 %v3207, %v3208
        %v3210 = vrot.slane %v3209, 1
        %v3211 = vadd.f32 %v3209, %v3210
        %v3212 = vsel %vm755, %v3172, 0.0
        %v3213 = vrot.slane %v3212, 4
        %v3214 = vadd.f32 %v3212, %v3213
        %v3215 = vrot.slane %v3214, 2
        %v3216 = vadd.f32 %v3214, %v3215
        %v3217 = vrot.slane %v3216, 1
        %v3218 = vadd.f32 %v3216, %v3217
        %v3219 = vsel %vm755, %v3173, 0.0
        %v3220 = vrot.slane %v3219, 4
        %v3221 = vadd.f32 %v3219, %v3220
        %v3222 = vrot.slane %v3221, 2
        %v3223 = vadd.f32 %v3221, %v3222
        %v3224 = vrot.slane %v3223, 1
        %v3225 = vadd.f32 %v3223, %v3224
        %v3226 = vsel %vm755, %v3174, 0.0
        %v3227 = vrot.slane %v3226, 4
        %v3228 = vadd.f32 %v3226, %v3227
        %v3229 = vrot.slane %v3228, 2
        %v3230 = vadd.f32 %v3228, %v3229
        %v3231 = vrot.slane %v3230, 1
        %v3232 = vadd.f32 %v3230, %v3231
        %v3233 = vsel %vm755, %v3175, 0.0
        %v3234 = vrot.slane %v3233, 4
        %v3235 = vadd.f32 %v3233, %v3234
        %v3236 = vrot.slane %v3235, 2
        %v3237 = vadd.f32 %v3235, %v3236
        %v3238 = vrot.slane %v3237, 1
        %v3239 = vadd.f32 %v3237, %v3238
        %v3240 = vsel %vm755, %v3176, 0.0
        %v3241 = vrot.slane %v3240, 4
        %v3242 = vadd.f32 %v3240, %v3241
        %v3243 = vrot.slane %v3242, 2
        %v3244 = vadd.f32 %v3242, %v3243
        %v3245 = vrot.slane %v3244, 1
        %v3246 = vadd.f32 %v3244, %v3245
        %v3247 = vsel %vm755, %v3177, 0.0
        %v3248 = vrot.slane %v3247, 4
        %v3249 = vadd.f32 %v3247, %v3248
        %v3250 = vrot.slane %v3249, 2
        %v3251 = vadd.f32 %v3249, %v3250
        %v3252 = vrot.slane %v3251, 1
        %v3253 = vadd.f32 %v3251, %v3252
        %v3254 = vsel %vm755, %v3178, 0.0
        %v3255 = vrot.slane %v3254, 4
        %v3256 = vadd.f32 %v3254, %v3255
        %v3257 = vrot.slane %v3256, 2
        %v3258 = vadd.f32 %v3256, %v3257
        %v3259 = vrot.slane %v3258, 1
        %v3260 = vadd.f32 %v3258, %v3259
        %v3261 = vsel %vm755, %v3179, 0.0
        %v3262 = vrot.slane %v3261, 4
        %v3263 = vadd.f32 %v3261, %v3262
        %v3264 = vrot.slane %v3263, 2
        %v3265 = vadd.f32 %v3263, %v3264
        %v3266 = vrot.slane %v3265, 1
        %v3267 = vadd.f32 %v3265, %v3266
        %v3268 = vsel %vm755, %v3180, 0.0
        %v3269 = vrot.slane %v3268, 4
        %v3270 = vadd.f32 %v3268, %v3269
        %v3271 = vrot.slane %v3270, 2
        %v3272 = vadd.f32 %v3270, %v3271
        %v3273 = vrot.slane %v3272, 1
        %v3274 = vadd.f32 %v3272, %v3273
        %v3275 = vsel %vm755, %v3181, 0.0
        %v3276 = vrot.slane %v3275, 4
        %v3277 = vadd.f32 %v3275, %v3276
        %v3278 = vrot.slane %v3277, 2
        %v3279 = vadd.f32 %v3277, %v3278
        %v3280 = vrot.slane %v3279, 1
        %v3281 = vadd.f32 %v3279, %v3280
        %v3282 = vsel %vm755, %v3182, 0.0
        %v3283 = vrot.slane %v3282, 4
        %v3284 = vadd.f32 %v3282, %v3283
        %v3285 = vrot.slane %v3284, 2
        %v3286 = vadd.f32 %v3284, %v3285
        %v3287 = vrot.slane %v3286, 1
        %v3288 = vadd.f32 %v3286, %v3287
        %v3289 = vsel %vm755, %v3183, 0.0
        %v3290 = vrot.slane %v3289, 4
        %v3291 = vadd.f32 %v3289, %v3290
        %v3292 = vrot.slane %v3291, 2
        %v3293 = vadd.f32 %v3291, %v3292
        %v3294 = vrot.slane %v3293, 1
        %v3295 = vadd.f32 %v3293, %v3294
        %v3312 = vsel %vm884, %v3197, %v3190
        %v3313 = vsel %vm886, %v3204, %v3312
        %v3314 = vsel %vm888, %v3211, %v3313
        %v3315 = vsel %vm890, %v3218, %v3314
        %v3316 = vsel %vm892, %v3225, %v3315
        %v3317 = vsel %vm894, %v3232, %v3316
        %v3318 = vsel %vm896, %v3239, %v3317
        %v3319 = vsel %vm884, %v3253, %v3246
        %v3320 = vsel %vm886, %v3260, %v3319
        %v3321 = vsel %vm888, %v3267, %v3320
        %v3322 = vsel %vm890, %v3274, %v3321
        %v3323 = vsel %vm892, %v3281, %v3322
        %v3324 = vsel %vm894, %v3288, %v3323
        %v3325 = vsel %vm896, %v3295, %v3324
        %3326 = vrot.lane.b32.xlu0 %v3318, 96
        %v3327 = vpop.permute.xlu0 %3326
        %3328 = vrot.lane.b32.xlu0 %v3325, 96
        %v3329 = vpop.permute.xlu0 %3328
        %3332 = vst.msk [vmem:[#allocation2 + $0x8] sm:$0xff] %vm1950, %v3327
        %3333 = vst.msk [vmem:[#allocation2 + $0x18] sm:$0xff] %vm1950, %v3329
        %v3334 = vlaneseq
        %v3335 = vshrl.u32 %v3334, 7
        %v3336 = vsub.s32 7, %v3335
        %v3337 = vrot.slane %v731, %v3336
        %3339 = vbcast.lane.b32.xlu0 %v3337, 256
        %v3340 = vpop.permute.xlu0 %3339
        %v3341 = vmul.f32 %v652, %v3340
        %v3342 = vmul.f32 %v657, %v3340
        %v3343 = vmul.f32 %v662, %v3340
        %v3344 = vmul.f32 %v667, %v3340
        %v3345 = vmul.f32 %v672, %v3340
        %v3346 = vmul.f32 %v677, %v3340
        %v3347 = vmul.f32 %v682, %v3340
        %v3348 = vmul.f32 %v687, %v3340
        %v3349 = vmul.f32 %v692, %v3340
        %v3350 = vmul.f32 %v697, %v3340
        %v3351 = vmul.f32 %v702, %v3340
        %v3352 = vmul.f32 %v707, %v3340
        %v3353 = vmul.f32 %v712, %v3340
        %v3354 = vmul.f32 %v717, %v3340
        %v3355 = vmul.f32 %v722, %v3340
        %v3356 = vmul.f32 %v727, %v3340
        %v3357 = vsel %vm755, %v3341, 0.0
        %v3358 = vrot.slane %v3357, 4
        %v3359 = vadd.f32 %v3357, %v3358
        %v3360 = vrot.slane %v3359, 2
        %v3361 = vadd.f32 %v3359, %v3360
        %v3362 = vrot.slane %v3361, 1
        %v3363 = vadd.f32 %v3361, %v3362
        %v3364 = vsel %vm755, %v3342, 0.0
        %v3365 = vrot.slane %v3364, 4
        %v3366 = vadd.f32 %v3364, %v3365
        %v3367 = vrot.slane %v3366, 2
        %v3368 = vadd.f32 %v3366, %v3367
        %v3369 = vrot.slane %v3368, 1
        %v3370 = vadd.f32 %v3368, %v3369
        %v3371 = vsel %vm755, %v3343, 0.0
        %v3372 = vrot.slane %v3371, 4
        %v3373 = vadd.f32 %v3371, %v3372
        %v3374 = vrot.slane %v3373, 2
        %v3375 = vadd.f32 %v3373, %v3374
        %v3376 = vrot.slane %v3375, 1
        %v3377 = vadd.f32 %v3375, %v3376
        %v3378 = vsel %vm755, %v3344, 0.0
        %v3379 = vrot.slane %v3378, 4
        %v3380 = vadd.f32 %v3378, %v3379
        %v3381 = vrot.slane %v3380, 2
        %v3382 = vadd.f32 %v3380, %v3381
        %v3383 = vrot.slane %v3382, 1
        %v3384 = vadd.f32 %v3382, %v3383
        %v3385 = vsel %vm755, %v3345, 0.0
        %v3386 = vrot.slane %v3385, 4
        %v3387 = vadd.f32 %v3385, %v3386
        %v3388 = vrot.slane %v3387, 2
        %v3389 = vadd.f32 %v3387, %v3388
        %v3390 = vrot.slane %v3389, 1
        %v3391 = vadd.f32 %v3389, %v3390
        %v3392 = vsel %vm755, %v3346, 0.0
        %v3393 = vrot.slane %v3392, 4
        %v3394 = vadd.f32 %v3392, %v3393
        %v3395 = vrot.slane %v3394, 2
        %v3396 = vadd.f32 %v3394, %v3395
        %v3397 = vrot.slane %v3396, 1
        %v3398 = vadd.f32 %v3396, %v3397
        %v3399 = vsel %vm755, %v3347, 0.0
        %v3400 = vrot.slane %v3399, 4
        %v3401 = vadd.f32 %v3399, %v3400
        %v3402 = vrot.slane %v3401, 2
        %v3403 = vadd.f32 %v3401, %v3402
        %v3404 = vrot.slane %v3403, 1
        %v3405 = vadd.f32 %v3403, %v3404
        %v3406 = vsel %vm755, %v3348, 0.0
        %v3407 = vrot.slane %v3406, 4
        %v3408 = vadd.f32 %v3406, %v3407
        %v3409 = vrot.slane %v3408, 2
        %v3410 = vadd.f32 %v3408, %v3409
        %v3411 = vrot.slane %v3410, 1
        %v3412 = vadd.f32 %v3410, %v3411
        %v3413 = vsel %vm755, %v3349, 0.0
        %v3414 = vrot.slane %v3413, 4
        %v3415 = vadd.f32 %v3413, %v3414
        %v3416 = vrot.slane %v3415, 2
        %v3417 = vadd.f32 %v3415, %v3416
        %v3418 = vrot.slane %v3417, 1
        %v3419 = vadd.f32 %v3417, %v3418
        %v3420 = vsel %vm755, %v3350, 0.0
        %v3421 = vrot.slane %v3420, 4
        %v3422 = vadd.f32 %v3420, %v3421
        %v3423 = vrot.slane %v3422, 2
        %v3424 = vadd.f32 %v3422, %v3423
        %v3425 = vrot.slane %v3424, 1
        %v3426 = vadd.f32 %v3424, %v3425
        %v3427 = vsel %vm755, %v3351, 0.0
        %v3428 = vrot.slane %v3427, 4
        %v3429 = vadd.f32 %v3427, %v3428
        %v3430 = vrot.slane %v3429, 2
        %v3431 = vadd.f32 %v3429, %v3430
        %v3432 = vrot.slane %v3431, 1
        %v3433 = vadd.f32 %v3431, %v3432
        %v3434 = vsel %vm755, %v3352, 0.0
        %v3435 = vrot.slane %v3434, 4
        %v3436 = vadd.f32 %v3434, %v3435
        %v3437 = vrot.slane %v3436, 2
        %v3438 = vadd.f32 %v3436, %v3437
        %v3439 = vrot.slane %v3438, 1
        %v3440 = vadd.f32 %v3438, %v3439
        %v3441 = vsel %vm755, %v3353, 0.0
        %v3442 = vrot.slane %v3441, 4
        %v3443 = vadd.f32 %v3441, %v3442
        %v3444 = vrot.slane %v3443, 2
        %v3445 = vadd.f32 %v3443, %v3444
        %v3446 = vrot.slane %v3445, 1
        %v3447 = vadd.f32 %v3445, %v3446
        %v3448 = vsel %vm755, %v3354, 0.0
        %v3449 = vrot.slane %v3448, 4
        %v3450 = vadd.f32 %v3448, %v3449
        %v3451 = vrot.slane %v3450, 2
        %v3452 = vadd.f32 %v3450, %v3451
        %v3453 = vrot.slane %v3452, 1
        %v3454 = vadd.f32 %v3452, %v3453
        %v3455 = vsel %vm755, %v3355, 0.0
        %v3456 = vrot.slane %v3455, 4
        %v3457 = vadd.f32 %v3455, %v3456
        %v3458 = vrot.slane %v3457, 2
        %v3459 = vadd.f32 %v3457, %v3458
        %v3460 = vrot.slane %v3459, 1
        %v3461 = vadd.f32 %v3459, %v3460
        %v3462 = vsel %vm755, %v3356, 0.0
        %v3463 = vrot.slane %v3462, 4
        %v3464 = vadd.f32 %v3462, %v3463
        %v3465 = vrot.slane %v3464, 2
        %v3466 = vadd.f32 %v3464, %v3465
        %v3467 = vrot.slane %v3466, 1
        %v3468 = vadd.f32 %v3466, %v3467
        %v3485 = vsel %vm884, %v3370, %v3363
        %v3486 = vsel %vm886, %v3377, %v3485
        %v3487 = vsel %vm888, %v3384, %v3486
        %v3488 = vsel %vm890, %v3391, %v3487
        %v3489 = vsel %vm892, %v3398, %v3488
        %v3490 = vsel %vm894, %v3405, %v3489
        %v3491 = vsel %vm896, %v3412, %v3490
        %v3492 = vsel %vm884, %v3426, %v3419
        %v3493 = vsel %vm886, %v3433, %v3492
        %v3494 = vsel %vm888, %v3440, %v3493
        %v3495 = vsel %vm890, %v3447, %v3494
        %v3496 = vsel %vm892, %v3454, %v3495
        %v3497 = vsel %vm894, %v3461, %v3496
        %v3498 = vsel %vm896, %v3468, %v3497
        %3499 = vrot.lane.b32.xlu0 %v3491, 112
        %v3500 = vpop.permute.xlu0 %3499
        %3501 = vrot.lane.b32.xlu0 %v3498, 112
        %v3502 = vpop.permute.xlu0 %3501
        %3505 = vst.msk [vmem:[#allocation2 + $0x8] sm:$0xff] %vm2124, %v3500
        %3506 = vst.msk [vmem:[#allocation2 + $0x18] sm:$0xff] %vm2124, %v3502
        %v3507 = vld [vmem:[#allocation2] sm:$0xff]
        %v3508 = vld [vmem:[#allocation2 + $0x8] sm:$0xff]
        %v3509 = vld [vmem:[#allocation2 + $0x10] sm:$0xff]
        %v3510 = vld [vmem:[#allocation2 + $0x18] sm:$0xff]
        %v3511 = vld [vmem:[%s4] sm:$0x3]
        %v3512 = vld [vmem:[%s5] sm:$0xf]
        %v3513 = vld [vmem:[%s6] sm:$0xf]
        %3515 = vset.pattern.permute.xlu0 0
        %3516 = vperm.xlu0 %3515, %v3513
        %v3517 = vpop.permute.xlu0 %3516
        %v3520 = vsel %vm755, %v3512, 0
        %3522 = vmatprep.subr.mxu0 %v3508
        %3523 = vmatpush1.msra.mxu0 %v3507
        %3524 = vmatprep.subr.mxu0 %v3510
        %3525 = vmatpush1.msra.mxu0 %v3509
        %3526 = vmatprep.subr.mxu0 0.0
        %3527 = vmatpush1.msra.mxu0 0.0
        %3528 = vmatprep.subr.mxu0 0.0
        %3529 = vmatpush1.msra.mxu0 0.0
        %3530 = vmatprep.subr.mxu0 0.0
        %3531 = vmatpush1.msra.mxu0 0.0
        %3532 = vmatprep.subr.mxu0 0.0
        %3533 = vmatpush1.msra.mxu0 0.0
        %3534 = vmatprep.subr.mxu0 0.0
        %3535 = vmatpush1.msra.mxu0 0.0
        %3536 = vmatprep.subr.mxu0 0.0
        %3537 = vmatpush1.msra.mxu0 0.0
        %3538 = vmatprep.subr.mxu0 0.0
        %3539 = vmatpush1.msra.mxu0 0.0
        %3540 = vmatprep.subr.mxu0 0.0
        %3541 = vmatpush1.msra.mxu0 0.0
        %3542 = vmatprep.subr.mxu0 0.0
        %3543 = vmatpush1.msra.mxu0 0.0
        %3544 = vmatprep.subr.mxu0 0.0
        %3545 = vmatpush1.msra.mxu0 0.0
        %3546 = vmatprep.subr.mxu0 0.0
        %3547 = vmatpush1.msra.mxu0 0.0
        %3548 = vmatprep.subr.mxu0 0.0
        %3549 = vmatpush1.msra.mxu0 0.0
        %3550 = vmatprep.subr.mxu0 0.0
        %3551 = vmatpush1.msra.mxu0 0.0
        %3552 = vmatprep.subr.mxu0 0.0
        %3553 = vmatpush1.msra.mxu0 0.0
        %3554 = vmatprep.subr.mxu0 0.0
        %3555 = vmatpush1.msra.mxu0 0.0
        %3556 = vmatprep.subr.mxu0 0.0
        %3557 = vmatpush1.msra.mxu0 0.0
        %3558 = vmatprep.subr.mxu0 0.0
        %3559 = vmatpush1.msra.mxu0 0.0
        %3560 = vmatprep.subr.mxu0 0.0
        %3561 = vmatpush1.msra.mxu0 0.0
        %3562 = vmatprep.subr.mxu0 0.0
        %3563 = vmatpush1.msra.mxu0 0.0
        %3564 = vmatprep.subr.mxu0 0.0
        %3565 = vmatpush1.msra.mxu0 0.0
        %3566 = vmatprep.subr.mxu0 0.0
        %3567 = vmatpush1.msra.mxu0 0.0
        %3568 = vmatprep.subr.mxu0 0.0
        %3569 = vmatpush1.msra.mxu0 0.0
        %3570 = vmatprep.subr.mxu0 0.0
        %3571 = vmatpush1.msra.mxu0 0.0
        %3572 = vmatprep.subr.mxu0 0.0
        %3573 = vmatpush1.msra.mxu0 0.0
        %3574 = vmatprep.subr.mxu0 0.0
        %3575 = vmatpush1.msra.mxu0 0.0
        %3576 = vmatprep.subr.mxu0 0.0
        %3577 = vmatpush1.msra.mxu0 0.0
        %3578 = vmatprep.subr.mxu0 0.0
        %3579 = vmatpush1.msra.mxu0 0.0
        %3580 = vmatprep.subr.mxu0 0.0
        %3581 = vmatpush1.msra.mxu0 0.0
        %3582 = vmatprep.subr.mxu0 0.0
        %3583 = vmatpush1.msra.mxu0 0.0
        %3584 = vmatprep.subr.mxu0 0.0
        %3585 = vmatpush1.msra.mxu0 0.0
        %3586 = vmatprep.mubr.f32.mxu0 0.0
        %3587 = vmatmul.mubr.f32.gmra.mrb[0].mxu0 %v3520
        %v3588 = vpop.f32.mrb[0].mxu0
        %v3589 = vadd.f32 %v3517, %v3588
        %v3590 = vpop.f32.mrb[0].mxu0
        %v3591 = vadd.f32 %v3517, %v3590
        %3592 = vdwg.mxu0
        %v3594 = vunpack.c.l.b16 %v502
        %v3595 = vunpack.c.h.b16 %v502
        %v3596 = vpack.c.b16 %v3594, %v3594
        %v3597 = vpack.c.b16 %v3595, %v3595
        %v3599 = vsel %vm536, %v3511, 0
        %vm3601 = vcmask 1043456
        %v3603 = vsel %vm3601, %v3596, 0
        %v3606 = vsel %vm3601, %v3597, 0
        %3608 = vmatprep.subr.bf16.mxu0 %v3606
        %3609 = vmatpush1.bf16.msra.mxu0 %v3603
        %3610 = vmatprep.subr.bf16.mxu0 0
        %3611 = vmatpush1.bf16.msra.mxu0 0
        %3612 = vmatprep.subr.bf16.mxu0 0
        %3613 = vmatpush1.bf16.msra.mxu0 0
        %3614 = vmatprep.subr.bf16.mxu0 0
        %3615 = vmatpush1.bf16.msra.mxu0 0
        %3616 = vmatprep.subr.bf16.mxu0 0
        %3617 = vmatpush1.bf16.msra.mxu0 0
        %3618 = vmatprep.subr.bf16.mxu0 0
        %3619 = vmatpush1.bf16.msra.mxu0 0
        %3620 = vmatprep.subr.bf16.mxu0 0
        %3621 = vmatpush1.bf16.msra.mxu0 0
        %3622 = vmatprep.subr.bf16.mxu0 0
        %3623 = vmatpush1.bf16.msra.mxu0 0
        %3624 = vmatprep.subr.bf16.mxu0 0
        %3625 = vmatpush1.bf16.msra.mxu0 0
        %3626 = vmatprep.subr.bf16.mxu0 0
        %3627 = vmatpush1.bf16.msra.mxu0 0
        %3628 = vmatprep.subr.bf16.mxu0 0
        %3629 = vmatpush1.bf16.msra.mxu0 0
        %3630 = vmatprep.subr.bf16.mxu0 0
        %3631 = vmatpush1.bf16.msra.mxu0 0
        %3632 = vmatprep.subr.bf16.mxu0 0
        %3633 = vmatpush1.bf16.msra.mxu0 0
        %3634 = vmatprep.subr.bf16.mxu0 0
        %3635 = vmatpush1.bf16.msra.mxu0 0
        %3636 = vmatprep.subr.bf16.mxu0 0
        %3637 = vmatpush1.bf16.msra.mxu0 0
        %3638 = vmatprep.subr.bf16.mxu0 0
        %3639 = vmatpush1.bf16.msra.mxu0 0
        %3640 = vmatprep.mubr.bf16.mxu0 0
        %3641 = vmatmul.mubr.bf16.gmra.mrb[0].mxu0 %v3599
        %v3642 = vpop.f32.mrb[0].mxu0
        %v3643 = vadd.f32 %v3589, %v3642
        %v3644 = vpop.f32.mrb[0].mxu0
        %v3645 = vadd.f32 %v3591, %v3644
        %v3646 = vpop.f32.mrb[0].mxu0
        %v3647 = vpop.f32.mrb[0].mxu0
        %3648 = vdwg.mxu0
        %v3649 = vmax.f32 %v3643, 0.0
        %v3650 = vmax.f32 %v3645, 0.0
        %v3651 = vld [vmem:[%s7] sm:$0xf]
        %3653 = vset.pattern.permute.xlu0 0
        %3654 = vperm.xlu0 %3653, %v3651
        %v3655 = vpop.permute.xlu0 %3654
        %v3657 = vmul.f32 %v3649, %v3655
        %v3658 = vmul.f32 %v3650, %v3655
        %v3659 = vsel %vm3601, %v3657, 0.0
        %v3660 = vrot.slane %v3659, 4
        %v3661 = vadd.f32 %v3659, %v3660
        %v3662 = vrot.slane %v3661, 2
        %v3663 = vadd.f32 %v3661, %v3662
        %v3664 = vrot.slane %v3663, 1
        %v3665 = vadd.f32 %v3663, %v3664
        %v3666 = vsel %vm3601, %v3658, 0.0
        %v3667 = vrot.slane %v3666, 4
        %v3668 = vadd.f32 %v3666, %v3667
        %v3669 = vrot.slane %v3668, 2
        %v3670 = vadd.f32 %v3668, %v3669
        %v3671 = vrot.slane %v3670, 1
        %v3672 = vadd.f32 %v3670, %v3671
        %v3673 = vld [vmem:[#allocation3] sm:$0x1]
        %3675 = vset.pattern.permute.xlu0 0
        %3676 = vperm.xlu0 %3675, %v3673
        %v3677 = vpop.permute.xlu0 %3676
        %v3679 = vlaneseq
        %v3680 = vshrl.u32 %v3679, 7
        %v3681 = vsub.s32 0, %v3680
        %v3682 = vrot.slane %v3677, %v3681
        %v3683 = vadd.f32 %v3665, %v3682
        %v3684 = vadd.f32 %v3672, %v3682
        %v3685 = vxor.u32 %v3683, 2147483648
        %v3686 = vxor.u32 %v3684, 2147483648
        %v3687 = vmul.f32 %v3685, 1.442695
        %v3688 = vpow.pop %v3687
        %v3689 = vmul.f32 %v3686, 1.442695
        %v3690 = vpow.pop %v3689
        %v3691 = vadd.f32 %v3688, 1.0
        %v3692 = vadd.f32 %v3690, 1.0
        %v3693 = vrcp.pop %v3691
        %v3694 = vmul.f32 1.0, %v3693
        %v3695 = vrcp.pop %v3692
        %v3696 = vmul.f32 1.0, %v3695
        %v3697 = vunpack.c.l.bf16 %v502
        %v3698 = vunpack.c.h.bf16 %v502
        %v3699 = vmul.f32 %v3694, %v3697
        %v3700 = vmul.f32 %v3696, %v3698
        %v3701 = vpack.c.bf16 %v3699, %v3699
        %v3702 = vpack.c.bf16 %v3700, %v3700
        %v3703 = vld [vmem:[%s9] sm:$0xf]
        %v3704 = vld [vmem:[%s10] sm:$0xff]
        %3706 = vset.pattern.permute.xlu0 0
        %3707 = vperm.xlu0 %3706, %v3704
        %v3708 = vpop.permute.xlu0 %3707
        %v3711 = vsel %vm536, %v3703, 0
        %v3714 = vsel %vm3601, %v3701, 0
        %v3717 = vsel %vm3601, %v3702, 0
        %3719 = vmatprep.subr.bf16.mxu0 %v3717
        %3720 = vmatpush1.bf16.msra.mxu0 %v3714
        %3721 = vmatprep.subr.bf16.mxu0 0
        %3722 = vmatpush1.bf16.msra.mxu0 0
        %3723 = vmatprep.subr.bf16.mxu0 0
        %3724 = vmatpush1.bf16.msra.mxu0 0
        %3725 = vmatprep.subr.bf16.mxu0 0
        %3726 = vmatpush1.bf16.msra.mxu0 0
        %3727 = vmatprep.subr.bf16.mxu0 0
        %3728 = vmatpush1.bf16.msra.mxu0 0
        %3729 = vmatprep.subr.bf16.mxu0 0
        %3730 = vmatpush1.bf16.msra.mxu0 0
        %3731 = vmatprep.subr.bf16.mxu0 0
        %3732 = vmatpush1.bf16.msra.mxu0 0
        %3733 = vmatprep.subr.bf16.mxu0 0
        %3734 = vmatpush1.bf16.msra.mxu0 0
        %3735 = vmatprep.subr.bf16.mxu0 0
        %3736 = vmatpush1.bf16.msra.mxu0 0
        %3737 = vmatprep.subr.bf16.mxu0 0
        %3738 = vmatpush1.bf16.msra.mxu0 0
        %3739 = vmatprep.subr.bf16.mxu0 0
        %3740 = vmatpush1.bf16.msra.mxu0 0
        %3741 = vmatprep.subr.bf16.mxu0 0
        %3742 = vmatpush1.bf16.msra.mxu0 0
        %3743 = vmatprep.subr.bf16.mxu0 0
        %3744 = vmatpush1.bf16.msra.mxu0 0
        %3745 = vmatprep.subr.bf16.mxu0 0
        %3746 = vmatpush1.bf16.msra.mxu0 0
        %3747 = vmatprep.subr.bf16.mxu0 0
        %3748 = vmatpush1.bf16.msra.mxu0 0
        %3749 = vmatprep.subr.bf16.mxu0 0
        %3750 = vmatpush1.bf16.msra.mxu0 0
        %3751 = vmatprep.mubr.bf16.mxu0 0
        %3752 = vmatmul.mubr.bf16.gmra.mrb[0].mxu0 %v3711
        %v3753 = vpop.f32.mrb[0].mxu0
        %v3754 = vadd.f32 %v3708, %v3753
        %v3755 = vpop.f32.mrb[0].mxu0
        %v3756 = vadd.f32 %v3708, %v3755
        %v3757 = vpop.f32.mrb[0].mxu0
        %v3758 = vpop.f32.mrb[0].mxu0
        %3759 = vdwg.mxu0
        %3760 = vst [vmem:[%s470] sm:$0xff] %v3754
        %3761 = vst [vmem:[%s470 + $0x8] sm:$0xff] %v3756
        %v3764 = vcombine.low %v3694, %v3696
        %v3766 = vunpack.c.l.s4 1966171168
        %v3767 = vunpack.c.0.s8 %v3766
        %v3768 = vlaneseq
        %v3769 = vshrl.u32 %v3768, 7
        %v3770 = vsub.s32 %v3767, %v3769
        %v3771 = vrot.slane %v3764, %v3770
        %v3773 = vunpack.c.l.s4 1966171168
        %v3774 = vunpack.c.0.s8 %v3773
        %v3775 = vlaneseq
        %v3776 = vshrl.u32 %v3775, 7
        %v3777 = vsub.s32 %v3774, %v3776
        %v3778 = vrot.slane %v3771, %v3777
        %v3780 = vlaneseq
        %vm3781 = vcmp.ge.s32.totalorder %v3780, 0
        %vm3782 = vcmp.lt.s32.totalorder %v3780, 256
        %vm3783 = vmand %vm3781, %vm3782
        %3784 = vst.msk [vmem:[%s477] sm:$0x3] %vm3783, %v3778
        %s3785 = sand.u32 %s302, 1
        %s3786 = scalar_lea.sflag [#allocation5], %s3785
        %s3787 = sand.u32 %s302, 1
        %s3788 = smul.addr %s3787, 16
        %s3789 = scalar_lea.vmem [#allocation4], %s3788
        %s3790 = sand.u32 %s330, 1
        %s3791 = scalar_lea.sflag [#allocation7], %s3790
        %s3792 = sand.u32 %s330, 1
        %s3793 = smul.addr %s3792, 2
        %s3794 = scalar_lea.vmem [#allocation6], %s3793
        // Predicated region
        $region65: #{tpu_custom_call.1} parent=63 // pred_check
          %p3795 = pneg %p312
        $region66: #{tpu_custom_call.1} parent=63 // pred_check_branch
          %3797 = sbr.rel (%p3795) target = $region68
        $region67: #{tpu_custom_call.1} parent=63 // pred_region
          %s3798 = smul.u32 2, %s37
          %s3800 = ssub.s32 256, 256
          %3801 = vsyncadd %s3786, %s3800
          %s3802 = smul.addr %s36, 2
          %s3803 = sadd.s32 %s3798, %s3802
          %s3804 = smul.addr %s3803, 128
          %s3805 = scalar_lea.hbm %s11, %s3804
          %s3807 = sshll.u32 %s3789, 4
          %s3808 = int_to_ptr.vmem [resolvable:$true] %s3807
          %3810 = dma.vmem_to_hbm [thread:$0]  %s3808, 256, %s3805, %s3786
        $region68: #{tpu_custom_call.1} parent=63 // pred_fallthru
          _
        // Predicated region
        $region69: #{tpu_custom_call.1} parent=63 // pred_check
          %p3811 = pneg %p340
        $region70: #{tpu_custom_call.1} parent=63 // pred_check_branch
          %3813 = sbr.rel (%p3811) target = $region72
        $region71: #{tpu_custom_call.1} parent=63 // pred_region
          %s3814 = smul.u32 2, %s37
          %s3816 = ssub.s32 32, 32
          %3817 = vsyncadd %s3791, %s3816
          %s3818 = smul.addr %s36, 2
          %s3819 = sadd.s32 %s3814, %s3818
          %s3820 = smul.addr %s3819, 16
          %s3821 = scalar_lea.hbm %s12, %s3820
          %s3823 = sshll.u32 %s3794, 4
          %s3824 = int_to_ptr.vmem [resolvable:$true] %s3823
          %3826 = dma.vmem_to_hbm [thread:$0]  %s3824, 32, %s3821, %s3791
        $region72: #{tpu_custom_call.1} parent=63 // pred_fallthru
          _
      $region64: #{tpu_custom_call.1} parent=5 // pred_fallthru
        _
      %p3827 = scmp.le.s32.totalorder 2, %s27
      // Predicated region
      $region73: #{tpu_custom_call.1} parent=5 // pred_check
        %p3828 = pneg %p3827
      $region74: #{tpu_custom_call.1} parent=5 // pred_check_branch
        %3830 = sbr.rel (%p3828) target = $region76
      $region75: #{tpu_custom_call.1} parent=5 // pred_region
        %s3831 = ssub.s32 %s27, 2
        // Predicated region
        $region77: #{tpu_custom_call.1} parent=75 // pred_check
          %p3832 = pneg %p318
        $region78: #{tpu_custom_call.1} parent=75 // pred_check_branch
          %3834 = sbr.rel (%p3832) target = $region80
        $region79: #{tpu_custom_call.1} parent=75 // pred_region
          %s3835 = sand.u32 %s303, 1
          %s3836 = scalar_lea.sflag [#allocation5], %s3835
          %s3837 = sand.u32 %s303, 1
          %s3838 = smul.addr %s3837, 16
          %s3839 = scalar_lea.vmem [#allocation4], %s3838
          %3840 = dma.done %s3836, 256
        $region80: #{tpu_custom_call.1} parent=75 // pred_fallthru
          _
        // Predicated region
        $region81: #{tpu_custom_call.1} parent=75 // pred_check
          %p3841 = pneg %p346
        $region82: #{tpu_custom_call.1} parent=75 // pred_check_branch
          %3843 = sbr.rel (%p3841) target = $region84
        $region83: #{tpu_custom_call.1} parent=75 // pred_region
          %s3844 = sand.u32 %s331, 1
          %s3845 = scalar_lea.sflag [#allocation7], %s3844
          %s3846 = sand.u32 %s331, 1
          %s3847 = smul.addr %s3846, 2
          %s3848 = scalar_lea.vmem [#allocation6], %s3847
          %3849 = dma.done %s3845, 32
        $region84: #{tpu_custom_call.1} parent=75 // pred_fallthru
          _
      $region76: #{tpu_custom_call.1} parent=5 // pred_fallthru
        _
    $region6: #{tpu_custom_call.1} parent=1 // loop_footer
      %s31 = sadd.s32 1, %s27
    $region7: #{tpu_custom_call.1} parent=1 // loop_footer_branch
      %26 = sbr.rel target = $region3
    $region8: #{tpu_custom_call.1} parent=1 // loop_exit
      _
    %3850 = vsyncpa [#allocation5], 1
    %s3851 = scalar_lea.sflag [#allocation5], 1
    %3852 = vsyncpa %s3851, 1
    %3853 = vsyncpa [#allocation7], 1
    %s3854 = scalar_lea.sflag [#allocation7], 1
    %3855 = vsyncpa %s3854, 1

</llo_original>
